<compile_context>
chip_gen: v6e
topology: v6e:2x2x1
jax: 0.10.0
libtpu: 0.0.40
codegen_flags: <defaults>
</compile_context>

<pallas_src>
import functools
from typing import List, Optional

import numpy as np
import jax
import jax.numpy as jnp
from jax.experimental import pallas as pl
from jax.experimental.pallas import tpu as pltpu

_VMEM_LIMIT_BYTES = 32 * 1024 * 1024   # fits v5e/v6e/v7x at these block sizes
_GN_EPS = 1e-5                          # torch.nn.GroupNorm default
_RCE_PALLAS_MIN_ELEMENTS = 1 << 14      # below this a kernel launch costs more than XLA
_SQRT_HALF = 0.7071067811865476


# -----------------------------------------------------------------------------
# helpers (same semantics as the PyTorch module)
# -----------------------------------------------------------------------------
def check_if_involution(indices: List[int]) -> bool:
    return all(indices[indices[idx]] == idx for idx in range(len(indices)))


def get_involution_indices(size: int) -> List[int]:
    return list(reversed(range(size)))


def get_conv1d_output_length(input_length: int, kernel_size: int, stride_size: int = 1,
                             pad_size: int = 0, dilation_rate: int = 1) -> int:
    return (input_length + 2 * pad_size - dilation_rate * (kernel_size - 1) - 1) // stride_size + 1


def _gelu(x):
    # Exact GELU (erf form) -- matches torch.nn.GELU(approximate='none').
    return 0.5 * x * (1.0 + jax.lax.erf(x * _SQRT_HALF))


def _gn_gelu(x, gamma, beta, eps):
    # GroupNorm(num_groups=1) over a per-sample (C, L) slab, single-pass stats,
    # followed by exact GELU.  gamma/beta arrive as (C, 1) columns.
    mean = jnp.mean(x, keepdims=True)
    mean_sq = jnp.mean(x * x, keepdims=True)
    var = mean_sq - mean * mean
    xn = (x - mean) * jax.lax.rsqrt(var + eps)
    return _gelu(gamma * xn + beta)


# -----------------------------------------------------------------------------
# Weight / bias parametrizations
# -----------------------------------------------------------------------------
def ie_bias(b, involution_indices):
    # (b + b[inv]) / 2 on a tiny 1-D bias: plain XLA (launch overhead would dominate).
    return (b + b[jnp.asarray(involution_indices)]) * 0.5


def ie_weight(w, input_involution_indices, output_involution_indices):
    # (w + w[in_inv][:, out_inv]) / 2 on the tiny (vocab, dim) embedding table: plain XLA.
    in_idx = jnp.asarray(input_involution_indices)
    out_idx = jnp.asarray(output_involution_indices)
    return (w + w[in_idx][:, out_idx]) * 0.5


def _rce_weight_kernel(x_ref, pout_ref, pin_ref, o_ref):
    """Whole-slab RCEWeight on a lane-dense (K, O, I) layout, one invocation.

    out[k] = (x[k] + P_out @ x[K-1-k] @ P_in) / 2.  The kernel-width flip is a
    static first-axis index (no copies); the two channel involutions run as
    one-hot matmuls on the otherwise-idle MXU.  The weight is read from HBM once.
    """
    K = x_ref.shape[0]
    for k in range(K):                           # K is tiny (<= 5) and static
        xk = x_ref[k].astype(jnp.float32)        # (O, I)
        xf = x_ref[K - 1 - k].astype(jnp.float32)
        y = jnp.dot(pout_ref[...], xf, preferred_element_type=jnp.float32)
        y = jnp.dot(y, pin_ref[...], preferred_element_type=jnp.float32)
        o_ref[k] = ((xk + y) * 0.5).astype(o_ref.dtype)


def rce_weight_koi(w, input_involution_indices, output_involution_indices,
                   *, use_pallas: Optional[bool] = None,
                   vmem_limit_bytes: int = _VMEM_LIMIT_BYTES):
    """RCEWeight parametrization on a (K, O, I) (tap, out-ch, in-ch) weight layout.

    Equivalent to PyTorch RCEWeight.forward on the usual (O, I, K) layout:
        out[k, o, i] = (w[k, o, i] + w[K-1-k, out_inv[o], in_inv[i]]) / 2
    """
    if not check_if_involution(input_involution_indices) or \
       not check_if_involution(output_involution_indices):
        raise ValueError('`input_involution_indices` and `output_involution_indices` '
                         'must be involutions')
    K, O, I = w.shape
    assert len(output_involution_indices) == O
    assert len(input_involution_indices) == I

    if use_pallas is None:
        use_pallas = (K * O * I) >= _RCE_PALLAS_MIN_ELEMENTS
    if not use_pallas:
        # Tiny conv weights: one fused XLA gather+flip+average beats a kernel launch.
        out_idx = jnp.asarray(output_involution_indices)
        in_idx = jnp.asarray(input_involution_indices)
        return (w + jnp.flip(w, axis=0)[:, out_idx][:, :, in_idx]) * 0.5

    # Static one-hot involution matrices (built on host once per shape).
    p_out = np.zeros((O, O), np.float32)
    p_out[np.arange(O), np.asarray(output_involution_indices)] = 1.0
    p_in = np.zeros((I, I), np.float32)
    p_in[np.asarray(input_involution_indices), np.arange(I)] = 1.0

    # Whole slab in one invocation (a (5, 256, 256) f32 slab is ~1.25 MiB).
    return pl.pallas_call(
        _rce_weight_kernel,
        out_shape=jax.ShapeDtypeStruct((K, O, I), w.dtype),
        compiler_params=pltpu.CompilerParams(vmem_limit_bytes=vmem_limit_bytes),
    )(w, jnp.asarray(p_out), jnp.asarray(p_in))


def rce_weight(x, input_involution_indices, output_involution_indices,
               *, use_pallas: Optional[bool] = None):
    """RCEWeight on the PyTorch Conv1d (O, I, K) layout (API parity with the module)."""
    w_koi = jnp.transpose(x, (2, 0, 1))     # lane-dense relayout (layout plumbing only)
    out = rce_weight_koi(w_koi, input_involution_indices, output_involution_indices,
                         use_pallas=use_pallas)
    return jnp.transpose(out, (1, 2, 0))


def rce_weight_ref(x, input_involution_indices, output_involution_indices):
    """Pure-XLA reference, identical to PyTorch RCEWeight.forward."""
    out_idx = jnp.asarray(output_involution_indices)
    in_idx = jnp.asarray(input_involution_indices)
    return (x + jnp.flip(x[out_idx][:, in_idx], axis=2)) * 0.5


# -----------------------------------------------------------------------------
# Forward-pass kernels
# -----------------------------------------------------------------------------
def _embed_kernel(ids_ref, wt_ref, o_ref):
    # 4-way VPU select-accumulate (vocab is tiny); avoids a 97%-zero MXU matmul
    # and produces channels-first output directly (no post-hoc swapaxes copy).
    ids = ids_ref[0]                                   # (1, L) int32
    D, V = wt_ref.shape
    L = ids.shape[1]
    acc = jnp.zeros((D, L), jnp.float32)
    for v in range(V):                                 # V static and tiny (DNA: 4)
        col = wt_ref[:, v:v + 1].astype(jnp.float32)   # (D, 1)
        acc = acc + jnp.where(ids == v, col, 0.0)
    o_ref[0] = acc.astype(o_ref.dtype)


def embed_tokens(tokens, emb_w_t, *, vmem_limit_bytes: int = _VMEM_LIMIT_BYTES):
    """Embedding lookup producing channels-first (B, D, L) directly."""
    B, L = tokens.shape
    D, V = emb_w_t.shape
    tokens3 = tokens.reshape(B, 1, L).astype(jnp.int32)
    return pl.pallas_call(
        _embed_kernel,
        out_shape=jax.ShapeDtypeStruct((B, D, L), emb_w_t.dtype),
        grid=(B,),
        in_specs=[
            pl.BlockSpec((1, 1, L), lambda b: (b, 0, 0)),
            pl.BlockSpec((D, V), lambda b: (0, 0)),
        ],
        out_specs=pl.BlockSpec((1, D, L), lambda b: (b, 0, 0)),
        compiler_params=pltpu.CompilerParams(
            dimension_semantics=("parallel",),
            vmem_limit_bytes=vmem_limit_bytes),
    )(tokens3, emb_w_t)


def _rce_block_kernel(x_ref,
                      g1_ref, be1_ref, w1_ref, c1_ref,
                      g2_ref, be2_ref, w2_ref, c2_ref,
                      g3_ref, be3_ref, w3_ref, c3_ref,
                      o_ref, *, eps, dilation):
    """One fused RCEByteNet residual block for a single batch sample.

    GN1 -> GELU -> 1x1 conv -> GN2 -> GELU -> dilated 'valid' conv
        -> GN3 -> GELU -> 1x1 conv -> + center-cropped residual.
    All intermediates stay in VMEM/vregs; only x is read and the block output
    written to HBM.
    """
    x = x_ref[0].astype(jnp.float32)                      # (outer, L)
    L = x.shape[1]
    K, inner, _ = w2_ref.shape
    out_len = o_ref.shape[2]
    a = (L - out_len) // 2                                # residual crop offset

    # --- GN1 -> GELU -> 1x1 conv -------------------------------------------
    h = _gn_gelu(x, g1_ref[...], be1_ref[...], eps)       # (outer, L)
    h = jnp.dot(w1_ref[...], h, preferred_element_type=jnp.float32) + c1_ref[...]  # (inner, L)

    # --- GN2 -> GELU -> dilated un-padded conv ------------------------------
    h = _gn_gelu(h, g2_ref[...], be2_ref[...], eps)       # (inner, L)
    acc = jnp.zeros((inner, out_len), jnp.float32)
    # TODO(synk): the shifted tap views could be pltpu.roll + a single crop to
    # keep the shift on the XLU; static prefix/offset slices are kept here for
    # exactness at these sizes.
    for t in range(K):                                    # K static and small
        acc = acc + jnp.dot(w2_ref[t], h[:, t * dilation:t * dilation + out_len],
                            preferred_element_type=jnp.float32)
    h = acc + c2_ref[...]                                 # (inner, out_len)

    # --- GN3 -> GELU -> 1x1 conv + residual ----------------------------------
    h = _gn_gelu(h, g3_ref[...], be3_ref[...], eps)
    out = jnp.dot(w3_ref[...], h, preferred_element_type=jnp.float32) + c3_ref[...]
    out = out + x[:, a:a + out_len]                       # fused crop + add
    o_ref[0] = out.astype(o_ref.dtype)


def rce_block(x, g1, be1, w1, c1, g2, be2, w2, c2, g3, be3, w3, c3, *,
              dilation, eps=_GN_EPS, vmem_limit_bytes: int = _VMEM_LIMIT_BYTES):
    """Fused residual block.  x: (B, outer, L); w1: (inner, outer);
    w2: (K, inner, inner) tap-major; w3: (outer, inner)."""
    B, outer, L = x.shape
    K, inner, inner_in = w2.shape
    assert inner_in == inner and w1.shape == (inner, outer) and w3.shape == (outer, inner)
    out_len = get_conv1d_output_length(L, K, dilation_rate=dilation)
    assert out_len > 0
    col = lambda v: v.reshape(-1, 1)
    zero2 = lambda b: (0, 0)
    kernel = functools.partial(_rce_block_kernel, eps=eps, dilation=dilation)
    return pl.pallas_call(
        kernel,
        out_shape=jax.ShapeDtypeStruct((B, outer, out_len), x.dtype),
        grid=(B,),
        in_specs=[
            pl.BlockSpec((1, outer, L), lambda b: (b, 0, 0)),
            pl.BlockSpec((outer, 1), zero2), pl.BlockSpec((outer, 1), zero2),
            pl.BlockSpec((inner, outer), zero2), pl.BlockSpec((inner, 1), zero2),
            pl.BlockSpec((inner, 1), zero2), pl.BlockSpec((inner, 1), zero2),
            pl.BlockSpec((K, inner, inner), lambda b: (0, 0, 0)),
            pl.BlockSpec((inner, 1), zero2),
            pl.BlockSpec((inner, 1), zero2), pl.BlockSpec((inner, 1), zero2),
            pl.BlockSpec((outer, inner), zero2), pl.BlockSpec((outer, 1), zero2),
        ],
        out_specs=pl.BlockSpec((1, outer, out_len), lambda b: (b, 0, 0)),
        compiler_params=pltpu.CompilerParams(
            dimension_semantics=("parallel",),      # batch samples are independent
            vmem_limit_bytes=vmem_limit_bytes),
    )(x, col(g1), col(be1), w1, col(c1),
      col(g2), col(be2), w2, col(c2),
      col(g3), col(be3), w3, col(c3))


def _gn_gelu_conv1x1_kernel(x_ref, g_ref, be_ref, w_ref, c_ref, o_ref, *, eps):
    x = x_ref[0].astype(jnp.float32)                      # (Cin, L)
    h = _gn_gelu(x, g_ref[...], be_ref[...], eps)
    o_ref[0] = (jnp.dot(w_ref[...], h, preferred_element_type=jnp.float32)
                + c_ref[...]).astype(o_ref.dtype)


def gn_gelu_conv1x1(x, gamma, beta, w, bias, *, eps=_GN_EPS,
                    vmem_limit_bytes: int = _VMEM_LIMIT_BYTES):
    """Fused GroupNorm(1, Cin) -> exact GELU -> 1x1 Conv1d (used for the head)."""
    B, Cin, L = x.shape
    Cout, Cin_w = w.shape
    assert Cin_w == Cin
    zero2 = lambda b: (0, 0)
    kernel = functools.partial(_gn_gelu_conv1x1_kernel, eps=eps)
    return pl.pallas_call(
        kernel,
        out_shape=jax.ShapeDtypeStruct((B, Cout, L), x.dtype),
        grid=(B,),
        in_specs=[
            pl.BlockSpec((1, Cin, L), lambda b: (b, 0, 0)),
            pl.BlockSpec((Cin, 1), zero2), pl.BlockSpec((Cin, 1), zero2),
            pl.BlockSpec((Cout, Cin), zero2), pl.BlockSpec((Cout, 1), zero2),
        ],
        out_specs=pl.BlockSpec((1, Cout, L), lambda b: (b, 0, 0)),
        compiler_params=pltpu.CompilerParams(
            dimension_semantics=("parallel",),
            vmem_limit_bytes=vmem_limit_bytes),
    )(x, gamma.reshape(Cin, 1), beta.reshape(Cin, 1), w, bias.reshape(Cout, 1))


# -----------------------------------------------------------------------------
# RCEByteNet: parameters + forward
# -----------------------------------------------------------------------------
def init_rce_bytenet_params(key, *, vocab_size, outer_dim, inner_dim, kernel_size,
                            num_blocks, output_dim):
    def nrm(shape, scale=1.0):
        nonlocal key
        key, sub = jax.random.split(key)
        return scale * jax.random.normal(sub, shape, dtype=jnp.float32)

    params = {'emb_w': nrm((vocab_size, outer_dim), 2.0 ** 0.5), 'blocks': []}
    for _ in range(num_blocks):
        params['blocks'].append({
            'gn1_g': 1.0 + nrm((outer_dim,), 0.1), 'gn1_b': nrm((outer_dim,), 0.05),
            'w1': nrm((1, inner_dim, outer_dim), outer_dim ** -0.5),
            'b1': nrm((inner_dim,), 0.05),
            'gn2_g': 1.0 + nrm((inner_dim,), 0.1), 'gn2_b': nrm((inner_dim,), 0.05),
            'w2': nrm((kernel_size, inner_dim, inner_dim), (inner_dim * kernel_size) ** -0.5),
            'b2': nrm((inner_dim,), 0.05),
            'gn3_g': 1.0 + nrm((inner_dim,), 0.1), 'gn3_b': nrm((inner_dim,), 0.05),
            'w3': nrm((1, outer_dim, inner_dim), inner_dim ** -0.5),
            'b3': nrm((outer_dim,), 0.05),
        })
    params['head_gn_g'] = 1.0 + nrm((outer_dim,), 0.1)
    params['head_gn_b'] = nrm((outer_dim,), 0.05)
    params['head_w'] = nrm((1, output_dim, outer_dim), outer_dim ** -0.5)
    params['head_b'] = nrm((output_dim,), 0.05)
    return params


def _effective_block_params(blk, outer_inv, inner_inv, use_pallas):
    # Same parametrizations the PyTorch module registers (recomputed per forward).
    w1 = rce_weight_koi(blk['w1'], outer_inv, inner_inv, use_pallas=use_pallas)[0]  # (inner, outer)
    b1 = ie_bias(blk['b1'], inner_inv)
    w2 = rce_weight_koi(blk['w2'], inner_inv, inner_inv, use_pallas=use_pallas)     # (K, inner, inner)
    b2 = ie_bias(blk['b2'], inner_inv)
    w3 = rce_weight_koi(blk['w3'], inner_inv, outer_inv, use_pallas=use_pallas)[0]  # (outer, inner)
    b3 = ie_bias(blk['b3'], outer_inv)
    return w1, b1, w2, b2, w3, b3


def rce_bytenet_forward(tokens, params, *, input_involution_indices,
                        output_involution_indices, dilation_rates, outer_dim,
                        inner_dim, kernel_size, use_pallas_rce=None):
    outer_inv = get_involution_indices(outer_dim)
    inner_inv = get_involution_indices(inner_dim)

    emb_eff = ie_weight(params['emb_w'], input_involution_indices, outer_inv)
    x = embed_tokens(tokens, jnp.transpose(emb_eff))                     # (B, outer, L)

    for blk, r in zip(params['blocks'], dilation_rates):
        w1, b1, w2, b2, w3, b3 = _effective_block_params(blk, outer_inv, inner_inv,
                                                         use_pallas_rce)
        x = rce_block(x, blk['gn1_g'], blk['gn1_b'], w1, b1,
                      blk['gn2_g'], blk['gn2_b'], w2, b2,
                      blk['gn3_g'], blk['gn3_b'], w3, b3, dilation=r)

    wh = rce_weight_koi(params['head_w'], outer_inv, output_involution_indices,
                        use_pallas=use_pallas_rce)[0]                    # (output_dim, outer)
    bh = ie_bias(params['head_b'], output_involution_indices)
    y = gn_gelu_conv1x1(x, params['head_gn_g'], params['head_gn_b'], wh, bh)
    return jnp.swapaxes(y, 1, 2)                                         # (B, L_out, output_dim)


# -----------------------------------------------------------------------------
# Pure-JAX reference (no Pallas) for validation
# -----------------------------------------------------------------------------
def _gn_gelu_ref(x, gamma, beta, eps=_GN_EPS):
    mean = jnp.mean(x, axis=(1, 2), keepdims=True)
    var = jnp.mean(jnp.square(x - mean), axis=(1, 2), keepdims=True)
    xn = (x - mean) * jax.lax.rsqrt(var + eps)
    return _gelu(gamma[None, :, None] * xn + beta[None, :, None])


def rce_bytenet_forward_ref(tokens, params, *, input_involution_indices,
                            output_involution_indices, dilation_rates, outer_dim,
                            inner_dim, kernel_size):
    outer_inv = get_involution_indices(outer_dim)
    inner_inv = get_involution_indices(inner_dim)

    emb_eff = ie_weight(params['emb_w'], input_involution_indices, outer_inv)
    x = jnp.swapaxes(emb_eff[tokens], 1, 2)

    for blk, r in zip(params['blocks'], dilation_rates):
        w1, b1, w2, b2, w3, b3 = _effective_block_params(blk, outer_inv, inner_inv, False)
        L = x.shape[2]
        out_len = get_conv1d_output_length(L, kernel_size, dilation_rate=r)
        a = (L - out_len) // 2
        h1 = jnp.einsum('oi,bil->bol', w1,
                        _gn_gelu_ref(x, blk['gn1_g'], blk['gn1_b'])) + b1[None, :, None]
        g2 = _gn_gelu_ref(h1, blk['gn2_g'], blk['gn2_b'])
        h2 = sum(jnp.einsum('oi,bil->bol', w2[t], g2[:, :, t * r:t * r + out_len])
                 for t in range(kernel_size)) + b2[None, :, None]
        h3 = jnp.einsum('oi,bil->bol', w3,
                        _gn_gelu_ref(h2, blk['gn3_g'], blk['gn3_b'])) + b3[None, :, None]
        x = h3 + x[:, :, a:a + out_len]

    wh = rce_weight_koi(params['head_w'], outer_inv, output_involution_indices,
                        use_pallas=False)[0]
    bh = ie_bias(params['head_b'], output_involution_indices)
    y = jnp.einsum('oi,bil->bol', wh,
                   _gn_gelu_ref(x, params['head_gn_g'], params['head_gn_b'])) + bh[None, :, None]
    return jnp.swapaxes(y, 1, 2)


if __name__ == "__main__":
    # --- small deterministic RCEByteNet config --------------------------------
    input_involution_indices = [3, 2, 1, 0]       # DNA reverse-complement (A<->T, C<->G)
    output_involution_indices = [3, 2, 1, 0]
    vocab_size = len(input_involution_indices)
    output_dim = len(output_involution_indices)
    outer_dim, inner_dim = 16, 32
    kernel_size = 3
    dilation_rates = [1, 2]
    batch, seq_len = 2, 128

    key = jax.random.PRNGKey(0)
    kp, kt, kw = jax.random.split(key, 3)
    params = init_rce_bytenet_params(kp, vocab_size=vocab_size, outer_dim=outer_dim,
                                     inner_dim=inner_dim, kernel_size=kernel_size,
                                     num_blocks=len(dilation_rates), output_dim=output_dim)
    tokens = jax.random.randint(kt, (batch, seq_len), 0, vocab_size, dtype=jnp.int32)

    fwd = jax.jit(functools.partial(
        rce_bytenet_forward,
        input_involution_indices=input_involution_indices,
        output_involution_indices=output_involution_indices,
        dilation_rates=dilation_rates, outer_dim=outer_dim,
        inner_dim=inner_dim, kernel_size=kernel_size))
    out = jax.block_until_ready(fwd(tokens, params))

    expected_len = seq_len - sum((kernel_size - 1) * r for r in dilation_rates)
    assert out.shape == (batch, expected_len, output_dim)
    assert bool(jnp.all(jnp.isfinite(out)))

    ref = rce_bytenet_forward_ref(
        tokens, params,
        input_involution_indices=input_involution_indices,
        output_involution_indices=output_involution_indices,
        dilation_rates=dilation_rates, outer_dim=outer_dim,
        inner_dim=inner_dim, kernel_size=kernel_size)
    assert ref.shape == out.shape and ref.dtype == out.dtype
    # Tolerance covers default-precision f32 MXU passes in both the Mosaic
    # kernels and the XLA reference (a structural bug would be an O(1) mismatch).
    assert jnp.allclose(out, ref, atol=4e-2, rtol=4e-2)

    # --- standalone check of the large-weight Pallas RCEWeight path ------------
    O, I, K = 256, 256, 5
    w = jax.random.normal(kw, (O, I, K), dtype=jnp.float32)
    in_inv = [i ^ 1 for i in range(I)]            # pairwise-swap involution
    out_inv = get_involution_indices(O)           # reversal involution
    got = jax.block_until_ready(rce_weight(w, in_inv, out_inv, use_pallas=True))
    want = rce_weight_ref(w, in_inv, out_inv)
    assert got.shape == want.shape and got.dtype == want.dtype
    # Tolerance covers bf16-pass rounding of the one-hot MXU permutation matmuls
    # at default matmul precision (permutation matrices themselves are exact).
    assert jnp.allclose(got, want, atol=3e-2, rtol=3e-2)

    print("KERNEL_OK")
</pallas_src>

<mosaic_0001>
module attributes {stable_mosaic.version = 11 : i64} {
  func.func @_rce_block_kernel(%arg0: i32, %arg1: memref<1x16x128xf32, #tpu.memory_space<vmem>>, %arg2: memref<16x1xf32, #tpu.memory_space<vmem>>, %arg3: memref<16x1xf32, #tpu.memory_space<vmem>>, %arg4: memref<32x16xf32, #tpu.memory_space<vmem>>, %arg5: memref<32x1xf32, #tpu.memory_space<vmem>>, %arg6: memref<32x1xf32, #tpu.memory_space<vmem>>, %arg7: memref<32x1xf32, #tpu.memory_space<vmem>>, %arg8: memref<3x32x32xf32, #tpu.memory_space<vmem>>, %arg9: memref<32x1xf32, #tpu.memory_space<vmem>>, %arg10: memref<32x1xf32, #tpu.memory_space<vmem>>, %arg11: memref<32x1xf32, #tpu.memory_space<vmem>>, %arg12: memref<16x32xf32, #tpu.memory_space<vmem>>, %arg13: memref<16x1xf32, #tpu.memory_space<vmem>>, %arg14: memref<1x16x126xf32, #tpu.memory_space<vmem>>) attributes {dimension_semantics = [#tpu.dimension_semantics<parallel>], iteration_bounds = array<i64: 2>, scalar_prefetch = 0 : i64, scratch_operands = 0 : i64, tpu.core_type = #tpu.core_type<tc>, window_params = [{transform_indices = @transform_0, window_bounds = array<i64: 1, 16, 128>}, {pipeline_mode = #tpu.pipeline_mode<synchronous>, transform_indices = @transform_1, window_bounds = array<i64: 16, 1>}, {pipeline_mode = #tpu.pipeline_mode<synchronous>, transform_indices = @transform_2, window_bounds = array<i64: 16, 1>}, {pipeline_mode = #tpu.pipeline_mode<synchronous>, transform_indices = @transform_3, window_bounds = array<i64: 32, 16>}, {pipeline_mode = #tpu.pipeline_mode<synchronous>, transform_indices = @transform_4, window_bounds = array<i64: 32, 1>}, {pipeline_mode = #tpu.pipeline_mode<synchronous>, transform_indices = @transform_5, window_bounds = array<i64: 32, 1>}, {pipeline_mode = #tpu.pipeline_mode<synchronous>, transform_indices = @transform_6, window_bounds = array<i64: 32, 1>}, {pipeline_mode = #tpu.pipeline_mode<synchronous>, transform_indices = @transform_7, window_bounds = array<i64: 3, 32, 32>}, {pipeline_mode = #tpu.pipeline_mode<synchronous>, transform_indices = @transform_8, window_bounds = array<i64: 32, 1>}, {pipeline_mode = #tpu.pipeline_mode<synchronous>, transform_indices = @transform_9, window_bounds = array<i64: 32, 1>}, {pipeline_mode = #tpu.pipeline_mode<synchronous>, transform_indices = @transform_10, window_bounds = array<i64: 32, 1>}, {pipeline_mode = #tpu.pipeline_mode<synchronous>, transform_indices = @transform_11, window_bounds = array<i64: 16, 32>}, {pipeline_mode = #tpu.pipeline_mode<synchronous>, transform_indices = @transform_12, window_bounds = array<i64: 16, 1>}, {transform_indices = @transform_13, window_bounds = array<i64: 1, 16, 126>}]} {
    %c0 = arith.constant 0 : index
    %c0_0 = arith.constant 0 : index
    %c0_1 = arith.constant 0 : index
    %0 = vector.load %arg1[%c0, %c0_0, %c0_1] : memref<1x16x128xf32, #tpu.memory_space<vmem>>, vector<1x16x128xf32>
    %1 = vector.shape_cast %0 : vector<1x16x128xf32> to vector<16x128xf32>
    %c0_2 = arith.constant 0 : index
    %c0_3 = arith.constant 0 : index
    %2 = vector.load %arg2[%c0_2, %c0_3] : memref<16x1xf32, #tpu.memory_space<vmem>>, vector<16x1xf32>
    %c0_4 = arith.constant 0 : index
    %c0_5 = arith.constant 0 : index
    %3 = vector.load %arg3[%c0_4, %c0_5] : memref<16x1xf32, #tpu.memory_space<vmem>>, vector<16x1xf32>
    %4 = vector.shape_cast %1 : vector<16x128xf32> to vector<1x16x128xf32>
    %cst = arith.constant dense<0.000000e+00> : vector<1xf32>
    %5 = vector.multi_reduction <add>, %4, %cst [1, 2] : vector<1x16x128xf32> to vector<1xf32>
    %6 = vector.shape_cast %5 : vector<1xf32> to vector<1x1x1xf32>
    %7 = vector.extract %6[0, 0, 0] : f32 from vector<1x1x1xf32>
    %8 = vector.broadcast %7 : f32 to vector<1x1xf32>
    %cst_6 = arith.constant 2.048000e+03 : f32
    %9 = vector.broadcast %cst_6 : f32 to vector<1x1xf32>
    %10 = arith.divf %8, %9 : vector<1x1xf32>
    %11 = arith.mulf %1, %1 : vector<16x128xf32>
    %12 = vector.shape_cast %11 : vector<16x128xf32> to vector<1x16x128xf32>
    %cst_7 = arith.constant dense<0.000000e+00> : vector<1xf32>
    %13 = vector.multi_reduction <add>, %12, %cst_7 [1, 2] : vector<1x16x128xf32> to vector<1xf32>
    %14 = vector.shape_cast %13 : vector<1xf32> to vector<1x1x1xf32>
    %15 = vector.extract %14[0, 0, 0] : f32 from vector<1x1x1xf32>
    %16 = vector.broadcast %15 : f32 to vector<1x1xf32>
    %cst_8 = arith.constant 2.048000e+03 : f32
    %17 = vector.broadcast %cst_8 : f32 to vector<1x1xf32>
    %18 = arith.divf %16, %17 : vector<1x1xf32>
    %19 = arith.mulf %10, %10 : vector<1x1xf32>
    %20 = arith.subf %18, %19 : vector<1x1xf32>
    %21 = vector.broadcast %10 : vector<1x1xf32> to vector<16x128xf32>
    %22 = arith.subf %1, %21 : vector<16x128xf32>
    %cst_9 = arith.constant 9.99999974E-6 : f32
    %23 = vector.broadcast %cst_9 : f32 to vector<1x1xf32>
    %24 = arith.addf %20, %23 : vector<1x1xf32>
    %25 = math.rsqrt %24 : vector<1x1xf32>
    %26 = vector.broadcast %25 : vector<1x1xf32> to vector<16x128xf32>
    %27 = arith.mulf %22, %26 : vector<16x128xf32>
    %28 = vector.broadcast %2 : vector<16x1xf32> to vector<16x128xf32>
    %29 = arith.mulf %28, %27 : vector<16x128xf32>
    %30 = vector.broadcast %3 : vector<16x1xf32> to vector<16x128xf32>
    %31 = arith.addf %29, %30 : vector<16x128xf32>
    %cst_10 = arith.constant 5.000000e-01 : f32
    %32 = vector.broadcast %cst_10 : f32 to vector<16x128xf32>
    %33 = arith.mulf %32, %31 : vector<16x128xf32>
    %cst_11 = arith.constant 0.707106769 : f32
    %34 = vector.broadcast %cst_11 : f32 to vector<16x128xf32>
    %35 = arith.mulf %31, %34 : vector<16x128xf32>
    %36 = math.erf %35 : vector<16x128xf32>
    %cst_12 = arith.constant 1.000000e+00 : f32
    %37 = vector.broadcast %cst_12 : f32 to vector<16x128xf32>
    %38 = arith.addf %37, %36 : vector<16x128xf32>
    %39 = arith.mulf %33, %38 : vector<16x128xf32>
    %c0_13 = arith.constant 0 : index
    %c0_14 = arith.constant 0 : index
    %40 = vector.load %arg4[%c0_13, %c0_14] : memref<32x16xf32, #tpu.memory_space<vmem>>, vector<32x16xf32>
    %cst_15 = arith.constant dense<0.000000e+00> : vector<32x128xf32>
    %41 = tpu.matmul %40, %39, %cst_15 {dimension_numbers = #tpu.dot_dimension_numbers<[1], [0], [0], [1], [0, 0, 1, 1], [], []>} : vector<32x16xf32>, vector<16x128xf32>, vector<32x128xf32> -> vector<32x128xf32>
    %c0_16 = arith.constant 0 : index
    %c0_17 = arith.constant 0 : index
    %42 = vector.load %arg5[%c0_16, %c0_17] : memref<32x1xf32, #tpu.memory_space<vmem>>, vector<32x1xf32>
    %43 = vector.broadcast %42 : vector<32x1xf32> to vector<32x128xf32>
    %44 = arith.addf %41, %43 : vector<32x128xf32>
    %c0_18 = arith.constant 0 : index
    %c0_19 = arith.constant 0 : index
    %45 = vector.load %arg6[%c0_18, %c0_19] : memref<32x1xf32, #tpu.memory_space<vmem>>, vector<32x1xf32>
    %c0_20 = arith.constant 0 : index
    %c0_21 = arith.constant 0 : index
    %46 = vector.load %arg7[%c0_20, %c0_21] : memref<32x1xf32, #tpu.memory_space<vmem>>, vector<32x1xf32>
    %47 = vector.shape_cast %44 : vector<32x128xf32> to vector<1x32x128xf32>
    %cst_22 = arith.constant dense<0.000000e+00> : vector<1xf32>
    %48 = vector.multi_reduction <add>, %47, %cst_22 [1, 2] : vector<1x32x128xf32> to vector<1xf32>
    %49 = vector.shape_cast %48 : vector<1xf32> to vector<1x1x1xf32>
    %50 = vector.extract %49[0, 0, 0] : f32 from vector<1x1x1xf32>
    %51 = vector.broadcast %50 : f32 to vector<1x1xf32>
    %cst_23 = arith.constant 4.096000e+03 : f32
    %52 = vector.broadcast %cst_23 : f32 to vector<1x1xf32>
    %53 = arith.divf %51, %52 : vector<1x1xf32>
    %54 = arith.mulf %44, %44 : vector<32x128xf32>
    %55 = vector.shape_cast %54 : vector<32x128xf32> to vector<1x32x128xf32>
    %cst_24 = arith.constant dense<0.000000e+00> : vector<1xf32>
    %56 = vector.multi_reduction <add>, %55, %cst_24 [1, 2] : vector<1x32x128xf32> to vector<1xf32>
    %57 = vector.shape_cast %56 : vector<1xf32> to vector<1x1x1xf32>
    %58 = vector.extract %57[0, 0, 0] : f32 from vector<1x1x1xf32>
    %59 = vector.broadcast %58 : f32 to vector<1x1xf32>
    %cst_25 = arith.constant 4.096000e+03 : f32
    %60 = vector.broadcast %cst_25 : f32 to vector<1x1xf32>
    %61 = arith.divf %59, %60 : vector<1x1xf32>
    %62 = arith.mulf %53, %53 : vector<1x1xf32>
    %63 = arith.subf %61, %62 : vector<1x1xf32>
    %64 = vector.broadcast %53 : vector<1x1xf32> to vector<32x128xf32>
    %65 = arith.subf %44, %64 : vector<32x128xf32>
    %cst_26 = arith.constant 9.99999974E-6 : f32
    %66 = vector.broadcast %cst_26 : f32 to vector<1x1xf32>
    %67 = arith.addf %63, %66 : vector<1x1xf32>
    %68 = math.rsqrt %67 : vector<1x1xf32>
    %69 = vector.broadcast %68 : vector<1x1xf32> to vector<32x128xf32>
    %70 = arith.mulf %65, %69 : vector<32x128xf32>
    %71 = vector.broadcast %45 : vector<32x1xf32> to vector<32x128xf32>
    %72 = arith.mulf %71, %70 : vector<32x128xf32>
    %73 = vector.broadcast %46 : vector<32x1xf32> to vector<32x128xf32>
    %74 = arith.addf %72, %73 : vector<32x128xf32>
    %cst_27 = arith.constant 5.000000e-01 : f32
    %75 = vector.broadcast %cst_27 : f32 to vector<32x128xf32>
    %76 = arith.mulf %75, %74 : vector<32x128xf32>
    %cst_28 = arith.constant 0.707106769 : f32
    %77 = vector.broadcast %cst_28 : f32 to vector<32x128xf32>
    %78 = arith.mulf %74, %77 : vector<32x128xf32>
    %79 = math.erf %78 : vector<32x128xf32>
    %cst_29 = arith.constant 1.000000e+00 : f32
    %80 = vector.broadcast %cst_29 : f32 to vector<32x128xf32>
    %81 = arith.addf %80, %79 : vector<32x128xf32>
    %82 = arith.mulf %76, %81 : vector<32x128xf32>
    %cst_30 = arith.constant 0.000000e+00 : f32
    %83 = vector.broadcast %cst_30 : f32 to vector<32x126xf32>
    %c0_31 = arith.constant 0 : index
    %c0_32 = arith.constant 0 : index
    %c0_33 = arith.constant 0 : index
    %84 = vector.load %arg8[%c0_31, %c0_32, %c0_33] : memref<3x32x32xf32, #tpu.memory_space<vmem>>, vector<1x32x32xf32>
    %85 = vector.shape_cast %84 : vector<1x32x32xf32> to vector<32x32xf32>
    %86 = vector.extract_strided_slice %82 {offsets = [0, 0], sizes = [32, 126], strides = [1, 1]} : vector<32x128xf32> to vector<32x126xf32>
    %cst_34 = arith.constant dense<0.000000e+00> : vector<32x126xf32>
    %87 = tpu.matmul %85, %86, %cst_34 {dimension_numbers = #tpu.dot_dimension_numbers<[1], [0], [0], [1], [0, 0, 1, 1], [], []>} : vector<32x32xf32>, vector<32x126xf32>, vector<32x126xf32> -> vector<32x126xf32>
    %88 = arith.addf %83, %87 : vector<32x126xf32>
    %c1 = arith.constant 1 : index
    %c0_35 = arith.constant 0 : index
    %c0_36 = arith.constant 0 : index
    %89 = vector.load %arg8[%c1, %c0_35, %c0_36] : memref<3x32x32xf32, #tpu.memory_space<vmem>>, vector<1x32x32xf32>
    %90 = vector.shape_cast %89 : vector<1x32x32xf32> to vector<32x32xf32>
    %91 = vector.extract_strided_slice %82 {offsets = [0, 1], sizes = [32, 126], strides = [1, 1]} : vector<32x128xf32> to vector<32x126xf32>
    %cst_37 = arith.constant dense<0.000000e+00> : vector<32x126xf32>
    %92 = tpu.matmul %90, %91, %cst_37 {dimension_numbers = #tpu.dot_dimension_numbers<[1], [0], [0], [1], [0, 0, 1, 1], [], []>} : vector<32x32xf32>, vector<32x126xf32>, vector<32x126xf32> -> vector<32x126xf32>
    %93 = arith.addf %88, %92 : vector<32x126xf32>
    %c2 = arith.constant 2 : index
    %c0_38 = arith.constant 0 : index
    %c0_39 = arith.constant 0 : index
    %94 = vector.load %arg8[%c2, %c0_38, %c0_39] : memref<3x32x32xf32, #tpu.memory_space<vmem>>, vector<1x32x32xf32>
    %95 = vector.shape_cast %94 : vector<1x32x32xf32> to vector<32x32xf32>
    %96 = vector.extract_strided_slice %82 {offsets = [0, 2], sizes = [32, 126], strides = [1, 1]} : vector<32x128xf32> to vector<32x126xf32>
    %cst_40 = arith.constant dense<0.000000e+00> : vector<32x126xf32>
    %97 = tpu.matmul %95, %96, %cst_40 {dimension_numbers = #tpu.dot_dimension_numbers<[1], [0], [0], [1], [0, 0, 1, 1], [], []>} : vector<32x32xf32>, vector<32x126xf32>, vector<32x126xf32> -> vector<32x126xf32>
    %98 = arith.addf %93, %97 : vector<32x126xf32>
    %c0_41 = arith.constant 0 : index
    %c0_42 = arith.constant 0 : index
    %99 = vector.load %arg9[%c0_41, %c0_42] : memref<32x1xf32, #tpu.memory_space<vmem>>, vector<32x1xf32>
    %100 = vector.broadcast %99 : vector<32x1xf32> to vector<32x126xf32>
    %101 = arith.addf %98, %100 : vector<32x126xf32>
    %c0_43 = arith.constant 0 : index
    %c0_44 = arith.constant 0 : index
    %102 = vector.load %arg10[%c0_43, %c0_44] : memref<32x1xf32, #tpu.memory_space<vmem>>, vector<32x1xf32>
    %c0_45 = arith.constant 0 : index
    %c0_46 = arith.constant 0 : index
    %103 = vector.load %arg11[%c0_45, %c0_46] : memref<32x1xf32, #tpu.memory_space<vmem>>, vector<32x1xf32>
    %104 = vector.shape_cast %101 : vector<32x126xf32> to vector<1x32x126xf32>
    %cst_47 = arith.constant dense<0.000000e+00> : vector<1xf32>
    %105 = vector.multi_reduction <add>, %104, %cst_47 [1, 2] : vector<1x32x126xf32> to vector<1xf32>
    %106 = vector.shape_cast %105 : vector<1xf32> to vector<1x1x1xf32>
    %107 = vector.extract %106[0, 0, 0] : f32 from vector<1x1x1xf32>
    %108 = vector.broadcast %107 : f32 to vector<1x1xf32>
    %cst_48 = arith.constant 4.032000e+03 : f32
    %109 = vector.broadcast %cst_48 : f32 to vector<1x1xf32>
    %110 = arith.divf %108, %109 : vector<1x1xf32>
    %111 = arith.mulf %101, %101 : vector<32x126xf32>
    %112 = vector.shape_cast %111 : vector<32x126xf32> to vector<1x32x126xf32>
    %cst_49 = arith.constant dense<0.000000e+00> : vector<1xf32>
    %113 = vector.multi_reduction <add>, %112, %cst_49 [1, 2] : vector<1x32x126xf32> to vector<1xf32>
    %114 = vector.shape_cast %113 : vector<1xf32> to vector<1x1x1xf32>
    %115 = vector.extract %114[0, 0, 0] : f32 from vector<1x1x1xf32>
    %116 = vector.broadcast %115 : f32 to vector<1x1xf32>
    %cst_50 = arith.constant 4.032000e+03 : f32
    %117 = vector.broadcast %cst_50 : f32 to vector<1x1xf32>
    %118 = arith.divf %116, %117 : vector<1x1xf32>
    %119 = arith.mulf %110, %110 : vector<1x1xf32>
    %120 = arith.subf %118, %119 : vector<1x1xf32>
    %121 = vector.broadcast %110 : vector<1x1xf32> to vector<32x126xf32>
    %122 = arith.subf %101, %121 : vector<32x126xf32>
    %cst_51 = arith.constant 9.99999974E-6 : f32
    %123 = vector.broadcast %cst_51 : f32 to vector<1x1xf32>
    %124 = arith.addf %120, %123 : vector<1x1xf32>
    %125 = math.rsqrt %124 : vector<1x1xf32>
    %126 = vector.broadcast %125 : vector<1x1xf32> to vector<32x126xf32>
    %127 = arith.mulf %122, %126 : vector<32x126xf32>
    %128 = vector.broadcast %102 : vector<32x1xf32> to vector<32x126xf32>
    %129 = arith.mulf %128, %127 : vector<32x126xf32>
    %130 = vector.broadcast %103 : vector<32x1xf32> to vector<32x126xf32>
    %131 = arith.addf %129, %130 : vector<32x126xf32>
    %cst_52 = arith.constant 5.000000e-01 : f32
    %132 = vector.broadcast %cst_52 : f32 to vector<32x126xf32>
    %133 = arith.mulf %132, %131 : vector<32x126xf32>
    %cst_53 = arith.constant 0.707106769 : f32
    %134 = vector.broadcast %cst_53 : f32 to vector<32x126xf32>
    %135 = arith.mulf %131, %134 : vector<32x126xf32>
    %136 = math.erf %135 : vector<32x126xf32>
    %cst_54 = arith.constant 1.000000e+00 : f32
    %137 = vector.broadcast %cst_54 : f32 to vector<32x126xf32>
    %138 = arith.addf %137, %136 : vector<32x126xf32>
    %139 = arith.mulf %133, %138 : vector<32x126xf32>
    %c0_55 = arith.constant 0 : index
    %c0_56 = arith.constant 0 : index
    %140 = vector.load %arg12[%c0_55, %c0_56] : memref<16x32xf32, #tpu.memory_space<vmem>>, vector<16x32xf32>
    %cst_57 = arith.constant dense<0.000000e+00> : vector<16x126xf32>
    %141 = tpu.matmul %140, %139, %cst_57 {dimension_numbers = #tpu.dot_dimension_numbers<[1], [0], [0], [1], [0, 0, 1, 1], [], []>} : vector<16x32xf32>, vector<32x126xf32>, vector<16x126xf32> -> vector<16x126xf32>
    %c0_58 = arith.constant 0 : index
    %c0_59 = arith.constant 0 : index
    %142 = vector.load %arg13[%c0_58, %c0_59] : memref<16x1xf32, #tpu.memory_space<vmem>>, vector<16x1xf32>
    %143 = vector.broadcast %142 : vector<16x1xf32> to vector<16x126xf32>
    %144 = arith.addf %141, %143 : vector<16x126xf32>
    %145 = vector.extract_strided_slice %1 {offsets = [0, 1], sizes = [16, 126], strides = [1, 1]} : vector<16x128xf32> to vector<16x126xf32>
    %146 = arith.addf %144, %145 : vector<16x126xf32>
    %c0_60 = arith.constant 0 : index
    %c0_61 = arith.constant 0 : index
    %c0_62 = arith.constant 0 : index
    %147 = vector.load %arg14[%c0_60, %c0_61, %c0_62] : memref<1x16x126xf32, #tpu.memory_space<vmem>>, vector<1x16x126xf32>
    %148 = vector.shape_cast %147 : vector<1x16x126xf32> to vector<16x126xf32>
    %149 = vector.shape_cast %146 : vector<16x126xf32> to vector<1x16x126xf32>
    tpu.vector_store %arg14[%c0_60, %c0_61, %c0_62], %149 {strides = array<i32>} : memref<1x16x126xf32, #tpu.memory_space<vmem>>, vector<1x16x126xf32>,
    return
  }
  func.func @transform_0(%arg0: i32) -> (i32, i32, i32) {
    %c0_i32 = arith.constant 0 : i32
    %c0_i32_0 = arith.constant 0 : i32
    %c0_i32_1 = arith.constant 0 : i32
    return %arg0, %c0_i32, %c0_i32_0 : i32, i32, i32
  }
  func.func @transform_1(%arg0: i32) -> (i32, i32) {
    %c0_i32 = arith.constant 0 : i32
    %c0_i32_0 = arith.constant 0 : i32
    %c0_i32_1 = arith.constant 0 : i32
    return %c0_i32, %c0_i32_0 : i32, i32
  }
  func.func @transform_2(%arg0: i32) -> (i32, i32) {
    %c0_i32 = arith.constant 0 : i32
    %c0_i32_0 = arith.constant 0 : i32
    %c0_i32_1 = arith.constant 0 : i32
    return %c0_i32, %c0_i32_0 : i32, i32
  }
  func.func @transform_3(%arg0: i32) -> (i32, i32) {
    %c0_i32 = arith.constant 0 : i32
    %c0_i32_0 = arith.constant 0 : i32
    %c0_i32_1 = arith.constant 0 : i32
    return %c0_i32, %c0_i32_0 : i32, i32
  }
  func.func @transform_4(%arg0: i32) -> (i32, i32) {
    %c0_i32 = arith.constant 0 : i32
    %c0_i32_0 = arith.constant 0 : i32
    %c0_i32_1 = arith.constant 0 : i32
    return %c0_i32, %c0_i32_0 : i32, i32
  }
  func.func @transform_5(%arg0: i32) -> (i32, i32) {
    %c0_i32 = arith.constant 0 : i32
    %c0_i32_0 = arith.constant 0 : i32
    %c0_i32_1 = arith.constant 0 : i32
    return %c0_i32, %c0_i32_0 : i32, i32
  }
  func.func @transform_6(%arg0: i32) -> (i32, i32) {
    %c0_i32 = arith.constant 0 : i32
    %c0_i32_0 = arith.constant 0 : i32
    %c0_i32_1 = arith.constant 0 : i32
    return %c0_i32, %c0_i32_0 : i32, i32
  }
  func.func @transform_7(%arg0: i32) -> (i32, i32, i32) {
    %c0_i32 = arith.constant 0 : i32
    %c0_i32_0 = arith.constant 0 : i32
    %c0_i32_1 = arith.constant 0 : i32
    %c0_i32_2 = arith.constant 0 : i32
    return %c0_i32, %c0_i32_0, %c0_i32_1 : i32, i32, i32
  }
  func.func @transform_8(%arg0: i32) -> (i32, i32) {
    %c0_i32 = arith.constant 0 : i32
    %c0_i32_0 = arith.constant 0 : i32
    %c0_i32_1 = arith.constant 0 : i32
    return %c0_i32, %c0_i32_0 : i32, i32
  }
  func.func @transform_9(%arg0: i32) -> (i32, i32) {
    %c0_i32 = arith.constant 0 : i32
    %c0_i32_0 = arith.constant 0 : i32
    %c0_i32_1 = arith.constant 0 : i32
    return %c0_i32, %c0_i32_0 : i32, i32
  }
  func.func @transform_10(%arg0: i32) -> (i32, i32) {
    %c0_i32 = arith.constant 0 : i32
    %c0_i32_0 = arith.constant 0 : i32
    %c0_i32_1 = arith.constant 0 : i32
    return %c0_i32, %c0_i32_0 : i32, i32
  }
  func.func @transform_11(%arg0: i32) -> (i32, i32) {
    %c0_i32 = arith.constant 0 : i32
    %c0_i32_0 = arith.constant 0 : i32
    %c0_i32_1 = arith.constant 0 : i32
    return %c0_i32, %c0_i32_0 : i32, i32
  }
  func.func @transform_12(%arg0: i32) -> (i32, i32) {
    %c0_i32 = arith.constant 0 : i32
    %c0_i32_0 = arith.constant 0 : i32
    %c0_i32_1 = arith.constant 0 : i32
    return %c0_i32, %c0_i32_0 : i32, i32
  }
  func.func @transform_13(%arg0: i32) -> (i32, i32, i32) {
    %c0_i32 = arith.constant 0 : i32
    %c0_i32_0 = arith.constant 0 : i32
    %c0_i32_1 = arith.constant 0 : i32
    return %arg0, %c0_i32, %c0_i32_0 : i32, i32, i32
  }
}

module attributes {stable_mosaic.version = 11 : i64} {
  func.func @_embed_kernel(%arg0: i32, %arg1: memref<1x1x128xi32, #tpu.memory_space<vmem>>, %arg2: memref<16x4xf32, #tpu.memory_space<vmem>>, %arg3: memref<1x16x128xf32, #tpu.memory_space<vmem>>) attributes {dimension_semantics = [#tpu.dimension_semantics<parallel>], iteration_bounds = array<i64: 2>, scalar_prefetch = 0 : i64, scratch_operands = 0 : i64, tpu.core_type = #tpu.core_type<tc>, window_params = [{transform_indices = @transform_0, window_bounds = array<i64: 1, 1, 128>}, {pipeline_mode = #tpu.pipeline_mode<synchronous>, transform_indices = @transform_1, window_bounds = array<i64: 16, 4>}, {transform_indices = @transform_2, window_bounds = array<i64: 1, 16, 128>}]} {
    %c0 = arith.constant 0 : index
    %c0_0 = arith.constant 0 : index
    %c0_1 = arith.constant 0 : index
    %0 = vector.load %arg1[%c0, %c0_0, %c0_1] : memref<1x1x128xi32, #tpu.memory_space<vmem>>, vector<1x1x128xi32>
    %1 = vector.shape_cast %0 : vector<1x1x128xi32> to vector<1x128xi32>
    %cst = arith.constant 0.000000e+00 : f32
    %2 = vector.broadcast %cst : f32 to vector<16x128xf32>
    %c0_2 = arith.constant 0 : index
    %c0_3 = arith.constant 0 : index
    %3 = vector.load %arg2[%c0_2, %c0_3] : memref<16x4xf32, #tpu.memory_space<vmem>>, vector<16x1xf32>
    %c0_i32 = arith.constant 0 : i32
    %4 = vector.broadcast %c0_i32 : i32 to vector<1x128xi32>
    %5 = arith.cmpi eq, %1, %4 : vector<1x128xi32>
    %cst_4 = arith.constant 0.000000e+00 : f32
    %6 = vector.shape_cast %5 : vector<1x128xi1> to vector<1x128xi1>
    %7 = vector.broadcast %6 : vector<1x128xi1> to vector<16x128xi1>
    %8 = vector.shape_cast %3 : vector<16x1xf32> to vector<16x1xf32>
    %9 = vector.broadcast %8 : vector<16x1xf32> to vector<16x128xf32>
    %10 = vector.broadcast %cst_4 : f32 to vector<16x128xf32>
    %11 = arith.select %7, %9, %10 : vector<16x128xi1>, vector<16x128xf32>
    %12 = arith.addf %2, %11 : vector<16x128xf32>
    %c0_5 = arith.constant 0 : index
    %c1 = arith.constant 1 : index
    %13 = vector.load %arg2[%c0_5, %c1] : memref<16x4xf32, #tpu.memory_space<vmem>>, vector<16x1xf32>
    %c1_i32 = arith.constant 1 : i32
    %14 = vector.broadcast %c1_i32 : i32 to vector<1x128xi32>
    %15 = arith.cmpi eq, %1, %14 : vector<1x128xi32>
    %cst_6 = arith.constant 0.000000e+00 : f32
    %16 = vector.shape_cast %15 : vector<1x128xi1> to vector<1x128xi1>
    %17 = vector.broadcast %16 : vector<1x128xi1> to vector<16x128xi1>
    %18 = vector.shape_cast %13 : vector<16x1xf32> to vector<16x1xf32>
    %19 = vector.broadcast %18 : vector<16x1xf32> to vector<16x128xf32>
    %20 = vector.broadcast %cst_6 : f32 to vector<16x128xf32>
    %21 = arith.select %17, %19, %20 : vector<16x128xi1>, vector<16x128xf32>
    %22 = arith.addf %12, %21 : vector<16x128xf32>
    %c0_7 = arith.constant 0 : index
    %c2 = arith.constant 2 : index
    %23 = vector.load %arg2[%c0_7, %c2] : memref<16x4xf32, #tpu.memory_space<vmem>>, vector<16x1xf32>
    %c2_i32 = arith.constant 2 : i32
    %24 = vector.broadcast %c2_i32 : i32 to vector<1x128xi32>
    %25 = arith.cmpi eq, %1, %24 : vector<1x128xi32>
    %cst_8 = arith.constant 0.000000e+00 : f32
    %26 = vector.shape_cast %25 : vector<1x128xi1> to vector<1x128xi1>
    %27 = vector.broadcast %26 : vector<1x128xi1> to vector<16x128xi1>
    %28 = vector.shape_cast %23 : vector<16x1xf32> to vector<16x1xf32>
    %29 = vector.broadcast %28 : vector<16x1xf32> to vector<16x128xf32>
    %30 = vector.broadcast %cst_8 : f32 to vector<16x128xf32>
    %31 = arith.select %27, %29, %30 : vector<16x128xi1>, vector<16x128xf32>
    %32 = arith.addf %22, %31 : vector<16x128xf32>
    %c0_9 = arith.constant 0 : index
    %c3 = arith.constant 3 : index
    %33 = vector.load %arg2[%c0_9, %c3] : memref<16x4xf32, #tpu.memory_space<vmem>>, vector<16x1xf32>
    %c3_i32 = arith.constant 3 : i32
    %34 = vector.broadcast %c3_i32 : i32 to vector<1x128xi32>
    %35 = arith.cmpi eq, %1, %34 : vector<1x128xi32>
    %cst_10 = arith.constant 0.000000e+00 : f32
    %36 = vector.shape_cast %35 : vector<1x128xi1> to vector<1x128xi1>
    %37 = vector.broadcast %36 : vector<1x128xi1> to vector<16x128xi1>
    %38 = vector.shape_cast %33 : vector<16x1xf32> to vector<16x1xf32>
    %39 = vector.broadcast %38 : vector<16x1xf32> to vector<16x128xf32>
    %40 = vector.broadcast %cst_10 : f32 to vector<16x128xf32>
    %41 = arith.select %37, %39, %40 : vector<16x128xi1>, vector<16x128xf32>
    %42 = arith.addf %32, %41 : vector<16x128xf32>
    %c0_11 = arith.constant 0 : index
    %c0_12 = arith.constant 0 : index
    %c0_13 = arith.constant 0 : index
    %43 = vector.load %arg3[%c0_11, %c0_12, %c0_13] : memref<1x16x128xf32, #tpu.memory_space<vmem>>, vector<1x16x128xf32>
    %44 = vector.shape_cast %43 : vector<1x16x128xf32> to vector<16x128xf32>
    %45 = vector.shape_cast %42 : vector<16x128xf32> to vector<1x16x128xf32>
    tpu.vector_store %arg3[%c0_11, %c0_12, %c0_13], %45 {strides = array<i32>} : memref<1x16x128xf32, #tpu.memory_space<vmem>>, vector<1x16x128xf32>,
    return
  }
  func.func @transform_0(%arg0: i32) -> (i32, i32, i32) {
    %c0_i32 = arith.constant 0 : i32
    %c0_i32_0 = arith.constant 0 : i32
    %c0_i32_1 = arith.constant 0 : i32
    return %arg0, %c0_i32, %c0_i32_0 : i32, i32, i32
  }
  func.func @transform_1(%arg0: i32) -> (i32, i32) {
    %c0_i32 = arith.constant 0 : i32
    %c0_i32_0 = arith.constant 0 : i32
    %c0_i32_1 = arith.constant 0 : i32
    return %c0_i32, %c0_i32_0 : i32, i32
  }
  func.func @transform_2(%arg0: i32) -> (i32, i32, i32) {
    %c0_i32 = arith.constant 0 : i32
    %c0_i32_0 = arith.constant 0 : i32
    %c0_i32_1 = arith.constant 0 : i32
    return %arg0, %c0_i32, %c0_i32_0 : i32, i32, i32
  }
}

module attributes {stable_mosaic.version = 11 : i64} {
  func.func @_rce_block_kernel(%arg0: i32, %arg1: memref<1x16x126xf32, #tpu.memory_space<vmem>>, %arg2: memref<16x1xf32, #tpu.memory_space<vmem>>, %arg3: memref<16x1xf32, #tpu.memory_space<vmem>>, %arg4: memref<32x16xf32, #tpu.memory_space<vmem>>, %arg5: memref<32x1xf32, #tpu.memory_space<vmem>>, %arg6: memref<32x1xf32, #tpu.memory_space<vmem>>, %arg7: memref<32x1xf32, #tpu.memory_space<vmem>>, %arg8: memref<3x32x32xf32, #tpu.memory_space<vmem>>, %arg9: memref<32x1xf32, #tpu.memory_space<vmem>>, %arg10: memref<32x1xf32, #tpu.memory_space<vmem>>, %arg11: memref<32x1xf32, #tpu.memory_space<vmem>>, %arg12: memref<16x32xf32, #tpu.memory_space<vmem>>, %arg13: memref<16x1xf32, #tpu.memory_space<vmem>>, %arg14: memref<1x16x122xf32, #tpu.memory_space<vmem>>) attributes {dimension_semantics = [#tpu.dimension_semantics<parallel>], iteration_bounds = array<i64: 2>, scalar_prefetch = 0 : i64, scratch_operands = 0 : i64, tpu.core_type = #tpu.core_type<tc>, window_params = [{transform_indices = @transform_0, window_bounds = array<i64: 1, 16, 126>}, {pipeline_mode = #tpu.pipeline_mode<synchronous>, transform_indices = @transform_1, window_bounds = array<i64: 16, 1>}, {pipeline_mode = #tpu.pipeline_mode<synchronous>, transform_indices = @transform_2, window_bounds = array<i64: 16, 1>}, {pipeline_mode = #tpu.pipeline_mode<synchronous>, transform_indices = @transform_3, window_bounds = array<i64: 32, 16>}, {pipeline_mode = #tpu.pipeline_mode<synchronous>, transform_indices = @transform_4, window_bounds = array<i64: 32, 1>}, {pipeline_mode = #tpu.pipeline_mode<synchronous>, transform_indices = @transform_5, window_bounds = array<i64: 32, 1>}, {pipeline_mode = #tpu.pipeline_mode<synchronous>, transform_indices = @transform_6, window_bounds = array<i64: 32, 1>}, {pipeline_mode = #tpu.pipeline_mode<synchronous>, transform_indices = @transform_7, window_bounds = array<i64: 3, 32, 32>}, {pipeline_mode = #tpu.pipeline_mode<synchronous>, transform_indices = @transform_8, window_bounds = array<i64: 32, 1>}, {pipeline_mode = #tpu.pipeline_mode<synchronous>, transform_indices = @transform_9, window_bounds = array<i64: 32, 1>}, {pipeline_mode = #tpu.pipeline_mode<synchronous>, transform_indices = @transform_10, window_bounds = array<i64: 32, 1>}, {pipeline_mode = #tpu.pipeline_mode<synchronous>, transform_indices = @transform_11, window_bounds = array<i64: 16, 32>}, {pipeline_mode = #tpu.pipeline_mode<synchronous>, transform_indices = @transform_12, window_bounds = array<i64: 16, 1>}, {transform_indices = @transform_13, window_bounds = array<i64: 1, 16, 122>}]} {
    %c0 = arith.constant 0 : index
    %c0_0 = arith.constant 0 : index
    %c0_1 = arith.constant 0 : index
    %0 = vector.load %arg1[%c0, %c0_0, %c0_1] : memref<1x16x126xf32, #tpu.memory_space<vmem>>, vector<1x16x126xf32>
    %1 = vector.shape_cast %0 : vector<1x16x126xf32> to vector<16x126xf32>
    %c0_2 = arith.constant 0 : index
    %c0_3 = arith.constant 0 : index
    %2 = vector.load %arg2[%c0_2, %c0_3] : memref<16x1xf32, #tpu.memory_space<vmem>>, vector<16x1xf32>
    %c0_4 = arith.constant 0 : index
    %c0_5 = arith.constant 0 : index
    %3 = vector.load %arg3[%c0_4, %c0_5] : memref<16x1xf32, #tpu.memory_space<vmem>>, vector<16x1xf32>
    %4 = vector.shape_cast %1 : vector<16x126xf32> to vector<1x16x126xf32>
    %cst = arith.constant dense<0.000000e+00> : vector<1xf32>
    %5 = vector.multi_reduction <add>, %4, %cst [1, 2] : vector<1x16x126xf32> to vector<1xf32>
    %6 = vector.shape_cast %5 : vector<1xf32> to vector<1x1x1xf32>
    %7 = vector.extract %6[0, 0, 0] : f32 from vector<1x1x1xf32>
    %8 = vector.broadcast %7 : f32 to vector<1x1xf32>
    %cst_6 = arith.constant 2.016000e+03 : f32
    %9 = vector.broadcast %cst_6 : f32 to vector<1x1xf32>
    %10 = arith.divf %8, %9 : vector<1x1xf32>
    %11 = arith.mulf %1, %1 : vector<16x126xf32>
    %12 = vector.shape_cast %11 : vector<16x126xf32> to vector<1x16x126xf32>
    %cst_7 = arith.constant dense<0.000000e+00> : vector<1xf32>
    %13 = vector.multi_reduction <add>, %12, %cst_7 [1, 2] : vector<1x16x126xf32> to vector<1xf32>
    %14 = vector.shape_cast %13 : vector<1xf32> to vector<1x1x1xf32>
    %15 = vector.extract %14[0, 0, 0] : f32 from vector<1x1x1xf32>
    %16 = vector.broadcast %15 : f32 to vector<1x1xf32>
    %cst_8 = arith.constant 2.016000e+03 : f32
    %17 = vector.broadcast %cst_8 : f32 to vector<1x1xf32>
    %18 = arith.divf %16, %17 : vector<1x1xf32>
    %19 = arith.mulf %10, %10 : vector<1x1xf32>
    %20 = arith.subf %18, %19 : vector<1x1xf32>
    %21 = vector.broadcast %10 : vector<1x1xf32> to vector<16x126xf32>
    %22 = arith.subf %1, %21 : vector<16x126xf32>
    %cst_9 = arith.constant 9.99999974E-6 : f32
    %23 = vector.broadcast %cst_9 : f32 to vector<1x1xf32>
    %24 = arith.addf %20, %23 : vector<1x1xf32>
    %25 = math.rsqrt %24 : vector<1x1xf32>
    %26 = vector.broadcast %25 : vector<1x1xf32> to vector<16x126xf32>
    %27 = arith.mulf %22, %26 : vector<16x126xf32>
    %28 = vector.broadcast %2 : vector<16x1xf32> to vector<16x126xf32>
    %29 = arith.mulf %28, %27 : vector<16x126xf32>
    %30 = vector.broadcast %3 : vector<16x1xf32> to vector<16x126xf32>
    %31 = arith.addf %29, %30 : vector<16x126xf32>
    %cst_10 = arith.constant 5.000000e-01 : f32
    %32 = vector.broadcast %cst_10 : f32 to vector<16x126xf32>
    %33 = arith.mulf %32, %31 : vector<16x126xf32>
    %cst_11 = arith.constant 0.707106769 : f32
    %34 = vector.broadcast %cst_11 : f32 to vector<16x126xf32>
    %35 = arith.mulf %31, %34 : vector<16x126xf32>
    %36 = math.erf %35 : vector<16x126xf32>
    %cst_12 = arith.constant 1.000000e+00 : f32
    %37 = vector.broadcast %cst_12 : f32 to vector<16x126xf32>
    %38 = arith.addf %37, %36 : vector<16x126xf32>
    %39 = arith.mulf %33, %38 : vector<16x126xf32>
    %c0_13 = arith.constant 0 : index
    %c0_14 = arith.constant 0 : index
    %40 = vector.load %arg4[%c0_13, %c0_14] : memref<32x16xf32, #tpu.memory_space<vmem>>, vector<32x16xf32>
    %cst_15 = arith.constant dense<0.000000e+00> : vector<32x126xf32>
    %41 = tpu.matmul %40, %39, %cst_15 {dimension_numbers = #tpu.dot_dimension_numbers<[1], [0], [0], [1], [0, 0, 1, 1], [], []>} : vector<32x16xf32>, vector<16x126xf32>, vector<32x126xf32> -> vector<32x126xf32>
    %c0_16 = arith.constant 0 : index
    %c0_17 = arith.constant 0 : index
    %42 = vector.load %arg5[%c0_16, %c0_17] : memref<32x1xf32, #tpu.memory_space<vmem>>, vector<32x1xf32>
    %43 = vector.broadcast %42 : vector<32x1xf32> to vector<32x126xf32>
    %44 = arith.addf %41, %43 : vector<32x126xf32>
    %c0_18 = arith.constant 0 : index
    %c0_19 = arith.constant 0 : index
    %45 = vector.load %arg6[%c0_18, %c0_19] : memref<32x1xf32, #tpu.memory_space<vmem>>, vector<32x1xf32>
    %c0_20 = arith.constant 0 : index
    %c0_21 = arith.constant 0 : index
    %46 = vector.load %arg7[%c0_20, %c0_21] : memref<32x1xf32, #tpu.memory_space<vmem>>, vector<32x1xf32>
    %47 = vector.shape_cast %44 : vector<32x126xf32> to vector<1x32x126xf32>
    %cst_22 = arith.constant dense<0.000000e+00> : vector<1xf32>
    %48 = vector.multi_reduction <add>, %47, %cst_22 [1, 2] : vector<1x32x126xf32> to vector<1xf32>
    %49 = vector.shape_cast %48 : vector<1xf32> to vector<1x1x1xf32>
    %50 = vector.extract %49[0, 0, 0] : f32 from vector<1x1x1xf32>
    %51 = vector.broadcast %50 : f32 to vector<1x1xf32>
    %cst_23 = arith.constant 4.032000e+03 : f32
    %52 = vector.broadcast %cst_23 : f32 to vector<1x1xf32>
    %53 = arith.divf %51, %52 : vector<1x1xf32>
    %54 = arith.mulf %44, %44 : vector<32x126xf32>
    %55 = vector.shape_cast %54 : vector<32x126xf32> to vector<1x32x126xf32>
    %cst_24 = arith.constant dense<0.000000e+00> : vector<1xf32>
    %56 = vector.multi_reduction <add>, %55, %cst_24 [1, 2] : vector<1x32x126xf32> to vector<1xf32>
    %57 = vector.shape_cast %56 : vector<1xf32> to vector<1x1x1xf32>
    %58 = vector.extract %57[0, 0, 0] : f32 from vector<1x1x1xf32>
    %59 = vector.broadcast %58 : f32 to vector<1x1xf32>
    %cst_25 = arith.constant 4.032000e+03 : f32
    %60 = vector.broadcast %cst_25 : f32 to vector<1x1xf32>
    %61 = arith.divf %59, %60 : vector<1x1xf32>
    %62 = arith.mulf %53, %53 : vector<1x1xf32>
    %63 = arith.subf %61, %62 : vector<1x1xf32>
    %64 = vector.broadcast %53 : vector<1x1xf32> to vector<32x126xf32>
    %65 = arith.subf %44, %64 : vector<32x126xf32>
    %cst_26 = arith.constant 9.99999974E-6 : f32
    %66 = vector.broadcast %cst_26 : f32 to vector<1x1xf32>
    %67 = arith.addf %63, %66 : vector<1x1xf32>
    %68 = math.rsqrt %67 : vector<1x1xf32>
    %69 = vector.broadcast %68 : vector<1x1xf32> to vector<32x126xf32>
    %70 = arith.mulf %65, %69 : vector<32x126xf32>
    %71 = vector.broadcast %45 : vector<32x1xf32> to vector<32x126xf32>
    %72 = arith.mulf %71, %70 : vector<32x126xf32>
    %73 = vector.broadcast %46 : vector<32x1xf32> to vector<32x126xf32>
    %74 = arith.addf %72, %73 : vector<32x126xf32>
    %cst_27 = arith.constant 5.000000e-01 : f32
    %75 = vector.broadcast %cst_27 : f32 to vector<32x126xf32>
    %76 = arith.mulf %75, %74 : vector<32x126xf32>
    %cst_28 = arith.constant 0.707106769 : f32
    %77 = vector.broadcast %cst_28 : f32 to vector<32x126xf32>
    %78 = arith.mulf %74, %77 : vector<32x126xf32>
    %79 = math.erf %78 : vector<32x126xf32>
    %cst_29 = arith.constant 1.000000e+00 : f32
    %80 = vector.broadcast %cst_29 : f32 to vector<32x126xf32>
    %81 = arith.addf %80, %79 : vector<32x126xf32>
    %82 = arith.mulf %76, %81 : vector<32x126xf32>
    %cst_30 = arith.constant 0.000000e+00 : f32
    %83 = vector.broadcast %cst_30 : f32 to vector<32x122xf32>
    %c0_31 = arith.constant 0 : index
    %c0_32 = arith.constant 0 : index
    %c0_33 = arith.constant 0 : index
    %84 = vector.load %arg8[%c0_31, %c0_32, %c0_33] : memref<3x32x32xf32, #tpu.memory_space<vmem>>, vector<1x32x32xf32>
    %85 = vector.shape_cast %84 : vector<1x32x32xf32> to vector<32x32xf32>
    %86 = vector.extract_strided_slice %82 {offsets = [0, 0], sizes = [32, 122], strides = [1, 1]} : vector<32x126xf32> to vector<32x122xf32>
    %cst_34 = arith.constant dense<0.000000e+00> : vector<32x122xf32>
    %87 = tpu.matmul %85, %86, %cst_34 {dimension_numbers = #tpu.dot_dimension_numbers<[1], [0], [0], [1], [0, 0, 1, 1], [], []>} : vector<32x32xf32>, vector<32x122xf32>, vector<32x122xf32> -> vector<32x122xf32>
    %88 = arith.addf %83, %87 : vector<32x122xf32>
    %c1 = arith.constant 1 : index
    %c0_35 = arith.constant 0 : index
    %c0_36 = arith.constant 0 : index
    %89 = vector.load %arg8[%c1, %c0_35, %c0_36] : memref<3x32x32xf32, #tpu.memory_space<vmem>>, vector<1x32x32xf32>
    %90 = vector.shape_cast %89 : vector<1x32x32xf32> to vector<32x32xf32>
    %91 = vector.extract_strided_slice %82 {offsets = [0, 2], sizes = [32, 122], strides = [1, 1]} : vector<32x126xf32> to vector<32x122xf32>
    %cst_37 = arith.constant dense<0.000000e+00> : vector<32x122xf32>
    %92 = tpu.matmul %90, %91, %cst_37 {dimension_numbers = #tpu.dot_dimension_numbers<[1], [0], [0], [1], [0, 0, 1, 1], [], []>} : vector<32x32xf32>, vector<32x122xf32>, vector<32x122xf32> -> vector<32x122xf32>
    %93 = arith.addf %88, %92 : vector<32x122xf32>
    %c2 = arith.constant 2 : index
    %c0_38 = arith.constant 0 : index
    %c0_39 = arith.constant 0 : index
    %94 = vector.load %arg8[%c2, %c0_38, %c0_39] : memref<3x32x32xf32, #tpu.memory_space<vmem>>, vector<1x32x32xf32>
    %95 = vector.shape_cast %94 : vector<1x32x32xf32> to vector<32x32xf32>
    %96 = vector.extract_strided_slice %82 {offsets = [0, 4], sizes = [32, 122], strides = [1, 1]} : vector<32x126xf32> to vector<32x122xf32>
    %cst_40 = arith.constant dense<0.000000e+00> : vector<32x122xf32>
    %97 = tpu.matmul %95, %96, %cst_40 {dimension_numbers = #tpu.dot_dimension_numbers<[1], [0], [0], [1], [0, 0, 1, 1], [], []>} : vector<32x32xf32>, vector<32x122xf32>, vector<32x122xf32> -> vector<32x122xf32>
    %98 = arith.addf %93, %97 : vector<32x122xf32>
    %c0_41 = arith.constant 0 : index
    %c0_42 = arith.constant 0 : index
    %99 = vector.load %arg9[%c0_41, %c0_42] : memref<32x1xf32, #tpu.memory_space<vmem>>, vector<32x1xf32>
    %100 = vector.broadcast %99 : vector<32x1xf32> to vector<32x122xf32>
    %101 = arith.addf %98, %100 : vector<32x122xf32>
    %c0_43 = arith.constant 0 : index
    %c0_44 = arith.constant 0 : index
    %102 = vector.load %arg10[%c0_43, %c0_44] : memref<32x1xf32, #tpu.memory_space<vmem>>, vector<32x1xf32>
    %c0_45 = arith.constant 0 : index
    %c0_46 = arith.constant 0 : index
    %103 = vector.load %arg11[%c0_45, %c0_46] : memref<32x1xf32, #tpu.memory_space<vmem>>, vector<32x1xf32>
    %104 = vector.shape_cast %101 : vector<32x122xf32> to vector<1x32x122xf32>
    %cst_47 = arith.constant dense<0.000000e+00> : vector<1xf32>
    %105 = vector.multi_reduction <add>, %104, %cst_47 [1, 2] : vector<1x32x122xf32> to vector<1xf32>
    %106 = vector.shape_cast %105 : vector<1xf32> to vector<1x1x1xf32>
    %107 = vector.extract %106[0, 0, 0] : f32 from vector<1x1x1xf32>
    %108 = vector.broadcast %107 : f32 to vector<1x1xf32>
    %cst_48 = arith.constant 3.904000e+03 : f32
    %109 = vector.broadcast %cst_48 : f32 to vector<1x1xf32>
    %110 = arith.divf %108, %109 : vector<1x1xf32>
    %111 = arith.mulf %101, %101 : vector<32x122xf32>
    %112 = vector.shape_cast %111 : vector<32x122xf32> to vector<1x32x122xf32>
    %cst_49 = arith.constant dense<0.000000e+00> : vector<1xf32>
    %113 = vector.multi_reduction <add>, %112, %cst_49 [1, 2] : vector<1x32x122xf32> to vector<1xf32>
    %114 = vector.shape_cast %113 : vector<1xf32> to vector<1x1x1xf32>
    %115 = vector.extract %114[0, 0, 0] : f32 from vector<1x1x1xf32>
    %116 = vector.broadcast %115 : f32 to vector<1x1xf32>
    %cst_50 = arith.constant 3.904000e+03 : f32
    %117 = vector.broadcast %cst_50 : f32 to vector<1x1xf32>
    %118 = arith.divf %116, %117 : vector<1x1xf32>
    %119 = arith.mulf %110, %110 : vector<1x1xf32>
    %120 = arith.subf %118, %119 : vector<1x1xf32>
    %121 = vector.broadcast %110 : vector<1x1xf32> to vector<32x122xf32>
    %122 = arith.subf %101, %121 : vector<32x122xf32>
    %cst_51 = arith.constant 9.99999974E-6 : f32
    %123 = vector.broadcast %cst_51 : f32 to vector<1x1xf32>
    %124 = arith.addf %120, %123 : vector<1x1xf32>
    %125 = math.rsqrt %124 : vector<1x1xf32>
    %126 = vector.broadcast %125 : vector<1x1xf32> to vector<32x122xf32>
    %127 = arith.mulf %122, %126 : vector<32x122xf32>
    %128 = vector.broadcast %102 : vector<32x1xf32> to vector<32x122xf32>
    %129 = arith.mulf %128, %127 : vector<32x122xf32>
    %130 = vector.broadcast %103 : vector<32x1xf32> to vector<32x122xf32>
    %131 = arith.addf %129, %130 : vector<32x122xf32>
    %cst_52 = arith.constant 5.000000e-01 : f32
    %132 = vector.broadcast %cst_52 : f32 to vector<32x122xf32>
    %133 = arith.mulf %132, %131 : vector<32x122xf32>
    %cst_53 = arith.constant 0.707106769 : f32
    %134 = vector.broadcast %cst_53 : f32 to vector<32x122xf32>
    %135 = arith.mulf %131, %134 : vector<32x122xf32>
    %136 = math.erf %135 : vector<32x122xf32>
    %cst_54 = arith.constant 1.000000e+00 : f32
    %137 = vector.broadcast %cst_54 : f32 to vector<32x122xf32>
    %138 = arith.addf %137, %136 : vector<32x122xf32>
    %139 = arith.mulf %133, %138 : vector<32x122xf32>
    %c0_55 = arith.constant 0 : index
    %c0_56 = arith.constant 0 : index
    %140 = vector.load %arg12[%c0_55, %c0_56] : memref<16x32xf32, #tpu.memory_space<vmem>>, vector<16x32xf32>
    %cst_57 = arith.constant dense<0.000000e+00> : vector<16x122xf32>
    %141 = tpu.matmul %140, %139, %cst_57 {dimension_numbers = #tpu.dot_dimension_numbers<[1], [0], [0], [1], [0, 0, 1, 1], [], []>} : vector<16x32xf32>, vector<32x122xf32>, vector<16x122xf32> -> vector<16x122xf32>
    %c0_58 = arith.constant 0 : index
    %c0_59 = arith.constant 0 : index
    %142 = vector.load %arg13[%c0_58, %c0_59] : memref<16x1xf32, #tpu.memory_space<vmem>>, vector<16x1xf32>
    %143 = vector.broadcast %142 : vector<16x1xf32> to vector<16x122xf32>
    %144 = arith.addf %141, %143 : vector<16x122xf32>
    %145 = vector.extract_strided_slice %1 {offsets = [0, 2], sizes = [16, 122], strides = [1, 1]} : vector<16x126xf32> to vector<16x122xf32>
    %146 = arith.addf %144, %145 : vector<16x122xf32>
    %c0_60 = arith.constant 0 : index
    %c0_61 = arith.constant 0 : index
    %c0_62 = arith.constant 0 : index
    %147 = vector.load %arg14[%c0_60, %c0_61, %c0_62] : memref<1x16x122xf32, #tpu.memory_space<vmem>>, vector<1x16x122xf32>
    %148 = vector.shape_cast %147 : vector<1x16x122xf32> to vector<16x122xf32>
    %149 = vector.shape_cast %146 : vector<16x122xf32> to vector<1x16x122xf32>
    tpu.vector_store %arg14[%c0_60, %c0_61, %c0_62], %149 {strides = array<i32>} : memref<1x16x122xf32, #tpu.memory_space<vmem>>, vector<1x16x122xf32>,
    return
  }
  func.func @transform_0(%arg0: i32) -> (i32, i32, i32) {
    %c0_i32 = arith.constant 0 : i32
    %c0_i32_0 = arith.constant 0 : i32
    %c0_i32_1 = arith.constant 0 : i32
    return %arg0, %c0_i32, %c0_i32_0 : i32, i32, i32
  }
  func.func @transform_1(%arg0: i32) -> (i32, i32) {
    %c0_i32 = arith.constant 0 : i32
    %c0_i32_0 = arith.constant 0 : i32
    %c0_i32_1 = arith.constant 0 : i32
    return %c0_i32, %c0_i32_0 : i32, i32
  }
  func.func @transform_2(%arg0: i32) -> (i32, i32) {
    %c0_i32 = arith.constant 0 : i32
    %c0_i32_0 = arith.constant 0 : i32
    %c0_i32_1 = arith.constant 0 : i32
    return %c0_i32, %c0_i32_0 : i32, i32
  }
  func.func @transform_3(%arg0: i32) -> (i32, i32) {
    %c0_i32 = arith.constant 0 : i32
    %c0_i32_0 = arith.constant 0 : i32
    %c0_i32_1 = arith.constant 0 : i32
    return %c0_i32, %c0_i32_0 : i32, i32
  }
  func.func @transform_4(%arg0: i32) -> (i32, i32) {
    %c0_i32 = arith.constant 0 : i32
    %c0_i32_0 = arith.constant 0 : i32
    %c0_i32_1 = arith.constant 0 : i32
    return %c0_i32, %c0_i32_0 : i32, i32
  }
  func.func @transform_5(%arg0: i32) -> (i32, i32) {
    %c0_i32 = arith.constant 0 : i32
    %c0_i32_0 = arith.constant 0 : i32
    %c0_i32_1 = arith.constant 0 : i32
    return %c0_i32, %c0_i32_0 : i32, i32
  }
  func.func @transform_6(%arg0: i32) -> (i32, i32) {
    %c0_i32 = arith.constant 0 : i32
    %c0_i32_0 = arith.constant 0 : i32
    %c0_i32_1 = arith.constant 0 : i32
    return %c0_i32, %c0_i32_0 : i32, i32
  }
  func.func @transform_7(%arg0: i32) -> (i32, i32, i32) {
    %c0_i32 = arith.constant 0 : i32
    %c0_i32_0 = arith.constant 0 : i32
    %c0_i32_1 = arith.constant 0 : i32
    %c0_i32_2 = arith.constant 0 : i32
    return %c0_i32, %c0_i32_0, %c0_i32_1 : i32, i32, i32
  }
  func.func @transform_8(%arg0: i32) -> (i32, i32) {
    %c0_i32 = arith.constant 0 : i32
    %c0_i32_0 = arith.constant 0 : i32
    %c0_i32_1 = arith.constant 0 : i32
    return %c0_i32, %c0_i32_0 : i32, i32
  }
  func.func @transform_9(%arg0: i32) -> (i32, i32) {
    %c0_i32 = arith.constant 0 : i32
    %c0_i32_0 = arith.constant 0 : i32
    %c0_i32_1 = arith.constant 0 : i32
    return %c0_i32, %c0_i32_0 : i32, i32
  }
  func.func @transform_10(%arg0: i32) -> (i32, i32) {
    %c0_i32 = arith.constant 0 : i32
    %c0_i32_0 = arith.constant 0 : i32
    %c0_i32_1 = arith.constant 0 : i32
    return %c0_i32, %c0_i32_0 : i32, i32
  }
  func.func @transform_11(%arg0: i32) -> (i32, i32) {
    %c0_i32 = arith.constant 0 : i32
    %c0_i32_0 = arith.constant 0 : i32
    %c0_i32_1 = arith.constant 0 : i32
    return %c0_i32, %c0_i32_0 : i32, i32
  }
  func.func @transform_12(%arg0: i32) -> (i32, i32) {
    %c0_i32 = arith.constant 0 : i32
    %c0_i32_0 = arith.constant 0 : i32
    %c0_i32_1 = arith.constant 0 : i32
    return %c0_i32, %c0_i32_0 : i32, i32
  }
  func.func @transform_13(%arg0: i32) -> (i32, i32, i32) {
    %c0_i32 = arith.constant 0 : i32
    %c0_i32_0 = arith.constant 0 : i32
    %c0_i32_1 = arith.constant 0 : i32
    return %arg0, %c0_i32, %c0_i32_0 : i32, i32, i32
  }
}

module attributes {stable_mosaic.version = 11 : i64} {
  func.func @_gn_gelu_conv1x1_kernel(%arg0: i32, %arg1: memref<1x16x122xf32, #tpu.memory_space<vmem>>, %arg2: memref<16x1xf32, #tpu.memory_space<vmem>>, %arg3: memref<16x1xf32, #tpu.memory_space<vmem>>, %arg4: memref<4x16xf32, #tpu.memory_space<vmem>>, %arg5: memref<4x1xf32, #tpu.memory_space<vmem>>, %arg6: memref<1x4x122xf32, #tpu.memory_space<vmem>>) attributes {dimension_semantics = [#tpu.dimension_semantics<parallel>], iteration_bounds = array<i64: 2>, scalar_prefetch = 0 : i64, scratch_operands = 0 : i64, tpu.core_type = #tpu.core_type<tc>, window_params = [{transform_indices = @transform_0, window_bounds = array<i64: 1, 16, 122>}, {pipeline_mode = #tpu.pipeline_mode<synchronous>, transform_indices = @transform_1, window_bounds = array<i64: 16, 1>}, {pipeline_mode = #tpu.pipeline_mode<synchronous>, transform_indices = @transform_2, window_bounds = array<i64: 16, 1>}, {pipeline_mode = #tpu.pipeline_mode<synchronous>, transform_indices = @transform_3, window_bounds = array<i64: 4, 16>}, {pipeline_mode = #tpu.pipeline_mode<synchronous>, transform_indices = @transform_4, window_bounds = array<i64: 4, 1>}, {transform_indices = @transform_5, window_bounds = array<i64: 1, 4, 122>}]} {
    %c0 = arith.constant 0 : index
    %c0_0 = arith.constant 0 : index
    %c0_1 = arith.constant 0 : index
    %0 = vector.load %arg1[%c0, %c0_0, %c0_1] : memref<1x16x122xf32, #tpu.memory_space<vmem>>, vector<1x16x122xf32>
    %1 = vector.shape_cast %0 : vector<1x16x122xf32> to vector<16x122xf32>
    %c0_2 = arith.constant 0 : index
    %c0_3 = arith.constant 0 : index
    %2 = vector.load %arg2[%c0_2, %c0_3] : memref<16x1xf32, #tpu.memory_space<vmem>>, vector<16x1xf32>
    %c0_4 = arith.constant 0 : index
    %c0_5 = arith.constant 0 : index
    %3 = vector.load %arg3[%c0_4, %c0_5] : memref<16x1xf32, #tpu.memory_space<vmem>>, vector<16x1xf32>
    %4 = vector.shape_cast %1 : vector<16x122xf32> to vector<1x16x122xf32>
    %cst = arith.constant dense<0.000000e+00> : vector<1xf32>
    %5 = vector.multi_reduction <add>, %4, %cst [1, 2] : vector<1x16x122xf32> to vector<1xf32>
    %6 = vector.shape_cast %5 : vector<1xf32> to vector<1x1x1xf32>
    %7 = vector.extract %6[0, 0, 0] : f32 from vector<1x1x1xf32>
    %8 = vector.broadcast %7 : f32 to vector<1x1xf32>
    %cst_6 = arith.constant 1.952000e+03 : f32
    %9 = vector.broadcast %cst_6 : f32 to vector<1x1xf32>
    %10 = arith.divf %8, %9 : vector<1x1xf32>
    %11 = arith.mulf %1, %1 : vector<16x122xf32>
    %12 = vector.shape_cast %11 : vector<16x122xf32> to vector<1x16x122xf32>
    %cst_7 = arith.constant dense<0.000000e+00> : vector<1xf32>
    %13 = vector.multi_reduction <add>, %12, %cst_7 [1, 2] : vector<1x16x122xf32> to vector<1xf32>
    %14 = vector.shape_cast %13 : vector<1xf32> to vector<1x1x1xf32>
    %15 = vector.extract %14[0, 0, 0] : f32 from vector<1x1x1xf32>
    %16 = vector.broadcast %15 : f32 to vector<1x1xf32>
    %cst_8 = arith.constant 1.952000e+03 : f32
    %17 = vector.broadcast %cst_8 : f32 to vector<1x1xf32>
    %18 = arith.divf %16, %17 : vector<1x1xf32>
    %19 = arith.mulf %10, %10 : vector<1x1xf32>
    %20 = arith.subf %18, %19 : vector<1x1xf32>
    %21 = vector.broadcast %10 : vector<1x1xf32> to vector<16x122xf32>
    %22 = arith.subf %1, %21 : vector<16x122xf32>
    %cst_9 = arith.constant 9.99999974E-6 : f32
    %23 = vector.broadcast %cst_9 : f32 to vector<1x1xf32>
    %24 = arith.addf %20, %23 : vector<1x1xf32>
    %25 = math.rsqrt %24 : vector<1x1xf32>
    %26 = vector.broadcast %25 : vector<1x1xf32> to vector<16x122xf32>
    %27 = arith.mulf %22, %26 : vector<16x122xf32>
    %28 = vector.broadcast %2 : vector<16x1xf32> to vector<16x122xf32>
    %29 = arith.mulf %28, %27 : vector<16x122xf32>
    %30 = vector.broadcast %3 : vector<16x1xf32> to vector<16x122xf32>
    %31 = arith.addf %29, %30 : vector<16x122xf32>
    %cst_10 = arith.constant 5.000000e-01 : f32
    %32 = vector.broadcast %cst_10 : f32 to vector<16x122xf32>
    %33 = arith.mulf %32, %31 : vector<16x122xf32>
    %cst_11 = arith.constant 0.707106769 : f32
    %34 = vector.broadcast %cst_11 : f32 to vector<16x122xf32>
    %35 = arith.mulf %31, %34 : vector<16x122xf32>
    %36 = math.erf %35 : vector<16x122xf32>
    %cst_12 = arith.constant 1.000000e+00 : f32
    %37 = vector.broadcast %cst_12 : f32 to vector<16x122xf32>
    %38 = arith.addf %37, %36 : vector<16x122xf32>
    %39 = arith.mulf %33, %38 : vector<16x122xf32>
    %c0_13 = arith.constant 0 : index
    %c0_14 = arith.constant 0 : index
    %40 = vector.load %arg4[%c0_13, %c0_14] : memref<4x16xf32, #tpu.memory_space<vmem>>, vector<4x16xf32>
    %cst_15 = arith.constant dense<0.000000e+00> : vector<4x122xf32>
    %41 = tpu.matmul %40, %39, %cst_15 {dimension_numbers = #tpu.dot_dimension_numbers<[1], [0], [0], [1], [0, 0, 1, 1], [], []>} : vector<4x16xf32>, vector<16x122xf32>, vector<4x122xf32> -> vector<4x122xf32>
    %c0_16 = arith.constant 0 : index
    %c0_17 = arith.constant 0 : index
    %42 = vector.load %arg5[%c0_16, %c0_17] : memref<4x1xf32, #tpu.memory_space<vmem>>, vector<4x1xf32>
    %43 = vector.broadcast %42 : vector<4x1xf32> to vector<4x122xf32>
    %44 = arith.addf %41, %43 : vector<4x122xf32>
    %c0_18 = arith.constant 0 : index
    %c0_19 = arith.constant 0 : index
    %c0_20 = arith.constant 0 : index
    %45 = vector.load %arg6[%c0_18, %c0_19, %c0_20] : memref<1x4x122xf32, #tpu.memory_space<vmem>>, vector<1x4x122xf32>
    %46 = vector.shape_cast %45 : vector<1x4x122xf32> to vector<4x122xf32>
    %47 = vector.shape_cast %44 : vector<4x122xf32> to vector<1x4x122xf32>
    tpu.vector_store %arg6[%c0_18, %c0_19, %c0_20], %47 {strides = array<i32>} : memref<1x4x122xf32, #tpu.memory_space<vmem>>, vector<1x4x122xf32>,
    return
  }
  func.func @transform_0(%arg0: i32) -> (i32, i32, i32) {
    %c0_i32 = arith.constant 0 : i32
    %c0_i32_0 = arith.constant 0 : i32
    %c0_i32_1 = arith.constant 0 : i32
    return %arg0, %c0_i32, %c0_i32_0 : i32, i32, i32
  }
  func.func @transform_1(%arg0: i32) -> (i32, i32) {
    %c0_i32 = arith.constant 0 : i32
    %c0_i32_0 = arith.constant 0 : i32
    %c0_i32_1 = arith.constant 0 : i32
    return %c0_i32, %c0_i32_0 : i32, i32
  }
  func.func @transform_2(%arg0: i32) -> (i32, i32) {
    %c0_i32 = arith.constant 0 : i32
    %c0_i32_0 = arith.constant 0 : i32
    %c0_i32_1 = arith.constant 0 : i32
    return %c0_i32, %c0_i32_0 : i32, i32
  }
  func.func @transform_3(%arg0: i32) -> (i32, i32) {
    %c0_i32 = arith.constant 0 : i32
    %c0_i32_0 = arith.constant 0 : i32
    %c0_i32_1 = arith.constant 0 : i32
    return %c0_i32, %c0_i32_0 : i32, i32
  }
  func.func @transform_4(%arg0: i32) -> (i32, i32) {
    %c0_i32 = arith.constant 0 : i32
    %c0_i32_0 = arith.constant 0 : i32
    %c0_i32_1 = arith.constant 0 : i32
    return %c0_i32, %c0_i32_0 : i32, i32
  }
  func.func @transform_5(%arg0: i32) -> (i32, i32, i32) {
    %c0_i32 = arith.constant 0 : i32
    %c0_i32_0 = arith.constant 0 : i32
    %c0_i32_1 = arith.constant 0 : i32
    return %arg0, %c0_i32, %c0_i32_0 : i32, i32, i32
  }
}

</mosaic_0001>

<llo_original>
// kernel: rce_bytenet_forward.4
$region0: #{rce_bytenet_forward.4}
  #allocation0 [shape = 'u32[]', space=smem, size = 0x4, offset = 0x4, fixed_abs, tag = 'smem constant byte address 0x4 - core index']
  #allocation1 [shape = 'u32[144,128]{1,0:T(1,128)}', space=vmem, size = 0x12000, scoped, tag = 'internal scratch']
  %s0 = inlined_call_operand.vmem [shape: s32[2,1,128], index: 0, kind: input, shape index: {}]
  %s1 = inlined_call_operand.vmem [shape: f32[16,4], index: 1, kind: input, shape index: {}]
  %s2 = inlined_call_operand.vmem [shape: f32[2,16,128], index: 2, kind: output, shape index: {}]
  %s3 = sld [smem:[#allocation0]]
  $region41: #{rce_bytenet_forward.4} parent=0
    _
  %s5 = ssub.s32 1, %s3
  %s6 = scalar_select 0, %s5, %s3
  loop: start=0, step=1, limit=4
  $region2: #{rce_bytenet_forward.4} parent=0 // loop_pre_header
    _
  $region3: #{rce_bytenet_forward.4} parent=0 // loop_header
    %s8 = sphi 0, %s12
    %p9 = scmp.ge.s32.totalorder %s8, 4
    %s18 = sphi 0, %s20
    %s21 = sphi 0, %s18
    %s22 = sphi 0, %s21
    %s38 = sphi 0, %s22
    %s42 = sphi 0, %s42
    %s44 = sphi 0, %s42
    %s45 = sphi 0, %s44
    %s59 = sphi 0, %s45
    %s65 = sphi 0, %s67
    %s68 = sphi 0, %s65
    %s69 = sphi 0, %s68
    %s85 = sphi 0, %s69
  $region4: #{rce_bytenet_forward.4} parent=0 // loop_header_branch
    %11 = sbr.rel (%p9) target = $region8
  $region5: #{rce_bytenet_forward.4} parent=0 // loop_body
    %s13 = ssub.s32 %s8, 1
    %s14 = ssub.s32 %s8, 2
    %s15 = sadd.s32 %s8, 1
    %s16 = ssub.s32 %s8, %s15
    %p17 = scmp.eq.s32.totalorder %s16, 0
    %s19 = sadd.s32 %s18, 1
    %s20 = scalar_select %p17, %s18, %s19
    %p23 = pneg %p17
    %p24 = scmp.eq.s32.totalorder %s8, 1
    %p25 = por %p23, %p24
    %p26 = scmp.ne.s32.totalorder %s18, %s21
    %p27 = scmp.eq.s32.totalorder %s8, 0
    %p28 = por %p26, %p27
    %p29 = scmp.ne.s32.totalorder %s18, %s21
    %p30 = scmp.eq.s32.totalorder %s13, 1
    %p31 = por %p29, %p30
    %p32 = scmp.ne.s32.totalorder %s21, %s22
    %p33 = scmp.eq.s32.totalorder %s13, 0
    %p34 = por %p32, %p33
    %p35 = scmp.ne.s32.totalorder %s21, %s22
    %p36 = scmp.eq.s32.totalorder %s14, 1
    %p37 = por %p35, %p36
    %p39 = scmp.ne.s32.totalorder %s22, %s38
    %p40 = scmp.eq.s32.totalorder %s14, 0
    %p41 = por %p39, %p40
    %s43 = sadd.s32 %s42, 1
    %p46 = scmp.eq.s32.totalorder %s8, 1
    %p47 = scmp.ne.s32.totalorder %s42, %s44
    %p48 = scmp.eq.s32.totalorder %s8, 0
    %p49 = por %p47, %p48
    %p50 = scmp.ne.s32.totalorder %s42, %s44
    %p51 = scmp.eq.s32.totalorder %s13, 1
    %p52 = por %p50, %p51
    %p53 = scmp.ne.s32.totalorder %s44, %s45
    %p54 = scmp.eq.s32.totalorder %s13, 0
    %p55 = por %p53, %p54
    %p56 = scmp.ne.s32.totalorder %s44, %s45
    %p57 = scmp.eq.s32.totalorder %s14, 1
    %p58 = por %p56, %p57
    %p60 = scmp.ne.s32.totalorder %s45, %s59
    %p61 = scmp.eq.s32.totalorder %s14, 0
    %p62 = por %p60, %p61
    %s63 = ssub.s32 %s8, %s15
    %p64 = scmp.eq.s32.totalorder %s63, 0
    %s66 = sadd.s32 %s65, 1
    %s67 = scalar_select %p64, %s65, %s66
    %p70 = pneg %p64
    %p71 = scmp.eq.s32.totalorder %s8, 1
    %p72 = por %p70, %p71
    %p73 = scmp.ne.s32.totalorder %s65, %s68
    %p74 = scmp.eq.s32.totalorder %s8, 0
    %p75 = por %p73, %p74
    %p76 = scmp.ne.s32.totalorder %s65, %s68
    %p77 = scmp.eq.s32.totalorder %s13, 1
    %p78 = por %p76, %p77
    %p79 = scmp.ne.s32.totalorder %s68, %s69
    %p80 = scmp.eq.s32.totalorder %s13, 0
    %p81 = por %p79, %p80
    %p82 = scmp.ne.s32.totalorder %s68, %s69
    %p83 = scmp.eq.s32.totalorder %s14, 1
    %p84 = por %p82, %p83
    %p86 = scmp.ne.s32.totalorder %s69, %s85
    %p87 = scmp.eq.s32.totalorder %s14, 0
    %p88 = por %p86, %p87
    %p89 = scmp.le.s32.totalorder 1, %s8
    %p90 = scmp.lt.s32.totalorder %s8, 3
    %p91 = pnand %p89, %p90
    %p92 = pneg %p91
    // Predicated region
    $region9: #{rce_bytenet_forward.4} parent=5 // pred_check
      _
    $region10: #{rce_bytenet_forward.4} parent=5 // pred_check_branch
      %94 = sbr.rel (%p91) target = $region12
    $region11: #{rce_bytenet_forward.4} parent=5 // pred_region
      %s95 = ssub.s32 %s8, 1
      // Predicated region
      $region13: #{rce_bytenet_forward.4} parent=11 // pred_check
        %p96 = pneg %p55
      $region14: #{rce_bytenet_forward.4} parent=11 // pred_check_branch
        %98 = sbr.rel (%p96) target = $region16
      $region15: #{rce_bytenet_forward.4} parent=11 // pred_region
        _
      $region16: #{rce_bytenet_forward.4} parent=11 // pred_fallthru
        _
    $region12: #{rce_bytenet_forward.4} parent=5 // pred_fallthru
      _
    %p99 = scmp.lt.s32.totalorder %s8, 2
    // Predicated region
    $region17: #{rce_bytenet_forward.4} parent=5 // pred_check
      %p100 = pneg %p99
    $region18: #{rce_bytenet_forward.4} parent=5 // pred_check_branch
      %102 = sbr.rel (%p100) target = $region20
    $region19: #{rce_bytenet_forward.4} parent=5 // pred_region
      // Predicated region
      $region21: #{rce_bytenet_forward.4} parent=19 // pred_check
        %p103 = pneg %p28
      $region22: #{rce_bytenet_forward.4} parent=19 // pred_check_branch
        %105 = sbr.rel (%p103) target = $region24
      $region23: #{rce_bytenet_forward.4} parent=19 // pred_region
        %p106 = scmp.lt.s32.totalorder %s8, 1
        %s107 = scalar_select %p106, %s8, 1
        %s108 = scalar_lea.vmem %s0, %s107
      $region24: #{rce_bytenet_forward.4} parent=19 // pred_fallthru
        _
    $region20: #{rce_bytenet_forward.4} parent=5 // pred_fallthru
      _
    %p109 = scmp.le.s32.totalorder 1, %s8
    %p110 = scmp.lt.s32.totalorder %s8, 3
    %p111 = pnand %p109, %p110
    %p112 = pneg %p111
    // Predicated region
    $region25: #{rce_bytenet_forward.4} parent=5 // pred_check
      _
    $region26: #{rce_bytenet_forward.4} parent=5 // pred_check_branch
      %114 = sbr.rel (%p111) target = $region28
    $region27: #{rce_bytenet_forward.4} parent=5 // pred_region
      %s115 = ssub.s32 %s8, 1
      %p116 = scmp.lt.s32.totalorder %s13, 1
      %s117 = scalar_select %p116, %s13, 1
      %s118 = scalar_lea.vmem %s0, %s117
      %p119 = pneg %p34
      %p120 = pneg %p31
      %p121 = pneg %p55
      %p122 = pneg %p52
      %p123 = pneg %p81
      %p124 = pneg %p78
      %p125 = scmp.lt.s32.totalorder %s13, 1
      %s126 = scalar_select %p125, %s13, 1
      %s127 = smul.addr %s126, 2
      %s128 = smul.addr %s127, 8
      %s129 = scalar_lea.vmem %s2, %s128
      %p130 = scmp.lt.s32.totalorder %s13, 1
      %s131 = scalar_select %p130, %s13, 1
      %s132 = scalar_lea.vmem %s0, %s131
      %p133 = scmp.lt.s32.totalorder %s13, 1
      %s134 = scalar_select %p133, %s13, 1
      %s135 = smul.addr %s134, 2
      %s136 = smul.addr %s135, 8
      %s137 = scalar_lea.vmem %s2, %s136
      %v138 = vld [vmem:[%s132] sm:$0x1]
      %v139 = vld [vmem:[%s1] sm:$0xff]
      %v140 = vld [vmem:[%s1 + $0x8] sm:$0xff]
      %vm141 = vcmp.eq.s32.totalorder %v138, 0
      %v142 = vsel %vm141, 1, 0
      %v143 = vlaneseq
      %v144 = vshrl.u32 %v143, 7
      %v145 = vsub.s32 0, %v144
      %v146 = vrot.slane %v142, %v145
      %vm147 = vcmp.eq.s32.totalorder %v146, 1
      %149 = vset.pattern.permute.xlu0 0
      %150 = vperm.xlu0 %149, %v139
      %v151 = vpop.permute.xlu0 %150
      %154 = vset.pattern.permute.xlu0 0
      %155 = vperm.xlu0 %154, %v140
      %v156 = vpop.permute.xlu0 %155
      %v158 = vsel %vm147, %v151, 0.0
      %v159 = vsel %vm147, %v156, 0.0
      %v160 = vadd.f32 %v158, 0.0
      %v161 = vadd.f32 %v159, 0.0
      %vm162 = vcmp.eq.s32.totalorder %v138, 1
      %v163 = vsel %vm162, 1, 0
      %v164 = vlaneseq
      %v165 = vshrl.u32 %v164, 7
      %v166 = vsub.s32 0, %v165
      %v167 = vrot.slane %v163, %v166
      %vm168 = vcmp.eq.s32.totalorder %v167, 1
      %169 = vset.pattern.permute.xlu0 1
      %170 = vperm.xlu0 %169, %v139
      %v171 = vpop.permute.xlu0 %170
      %173 = vset.pattern.permute.xlu0 1
      %174 = vperm.xlu0 %173, %v140
      %v175 = vpop.permute.xlu0 %174
      %v177 = vsel %vm168, %v171, 0.0
      %v178 = vsel %vm168, %v175, 0.0
      %v179 = vadd.f32 %v160, %v177
      %v180 = vadd.f32 %v161, %v178
      %vm181 = vcmp.eq.s32.totalorder %v138, 2
      %v182 = vsel %vm181, 1, 0
      %v183 = vlaneseq
      %v184 = vshrl.u32 %v183, 7
      %v185 = vsub.s32 0, %v184
      %v186 = vrot.slane %v182, %v185
      %vm187 = vcmp.eq.s32.totalorder %v186, 1
      %188 = vset.pattern.permute.xlu0 2
      %189 = vperm.xlu0 %188, %v139
      %v190 = vpop.permute.xlu0 %189
      %192 = vset.pattern.permute.xlu0 2
      %193 = vperm.xlu0 %192, %v140
      %v194 = vpop.permute.xlu0 %193
      %v196 = vsel %vm187, %v190, 0.0
      %v197 = vsel %vm187, %v194, 0.0
      %v198 = vadd.f32 %v179, %v196
      %v199 = vadd.f32 %v180, %v197
      %vm200 = vcmp.eq.s32.totalorder %v138, 3
      %v201 = vsel %vm200, 1, 0
      %v202 = vlaneseq
      %v203 = vshrl.u32 %v202, 7
      %v204 = vsub.s32 0, %v203
      %v205 = vrot.slane %v201, %v204
      %vm206 = vcmp.eq.s32.totalorder %v205, 1
      %207 = vset.pattern.permute.xlu0 3
      %208 = vperm.xlu0 %207, %v139
      %v209 = vpop.permute.xlu0 %208
      %211 = vset.pattern.permute.xlu0 3
      %212 = vperm.xlu0 %211, %v140
      %v213 = vpop.permute.xlu0 %212
      %v215 = vsel %vm206, %v209, 0.0
      %v216 = vsel %vm206, %v213, 0.0
      %v217 = vadd.f32 %v198, %v215
      %v218 = vadd.f32 %v199, %v216
      %219 = vst [vmem:[%s137] sm:$0xff] %v217
      %220 = vst [vmem:[%s137 + $0x8] sm:$0xff] %v218
      %p221 = scmp.lt.s32.totalorder %s13, 1
      %s222 = scalar_select %p221, %s13, 1
      %s223 = smul.addr %s222, 2
      %s224 = smul.addr %s223, 8
      %s225 = scalar_lea.vmem %s2, %s224
      // Predicated region
      $region29: #{rce_bytenet_forward.4} parent=27 // pred_check
        %p226 = pneg %p78
      $region30: #{rce_bytenet_forward.4} parent=27 // pred_check_branch
        %228 = sbr.rel (%p226) target = $region32
      $region31: #{rce_bytenet_forward.4} parent=27 // pred_region
        _
      $region32: #{rce_bytenet_forward.4} parent=27 // pred_fallthru
        _
    $region28: #{rce_bytenet_forward.4} parent=5 // pred_fallthru
      _
    %p229 = scmp.le.s32.totalorder 2, %s8
    // Predicated region
    $region33: #{rce_bytenet_forward.4} parent=5 // pred_check
      %p230 = pneg %p229
    $region34: #{rce_bytenet_forward.4} parent=5 // pred_check_branch
      %232 = sbr.rel (%p230) target = $region36
    $region35: #{rce_bytenet_forward.4} parent=5 // pred_region
      %s233 = ssub.s32 %s8, 2
      // Predicated region
      $region37: #{rce_bytenet_forward.4} parent=35 // pred_check
        %p234 = pneg %p84
      $region38: #{rce_bytenet_forward.4} parent=35 // pred_check_branch
        %236 = sbr.rel (%p234) target = $region40
      $region39: #{rce_bytenet_forward.4} parent=35 // pred_region
        %p237 = scmp.lt.s32.totalorder %s14, 1
        %s238 = scalar_select %p237, %s14, 1
        %s239 = smul.addr %s238, 2
        %s240 = smul.addr %s239, 8
        %s241 = scalar_lea.vmem %s2, %s240
      $region40: #{rce_bytenet_forward.4} parent=35 // pred_fallthru
        _
    $region36: #{rce_bytenet_forward.4} parent=5 // pred_fallthru
      _
  $region6: #{rce_bytenet_forward.4} parent=0 // loop_footer
    %s12 = sadd.s32 1, %s8
  $region7: #{rce_bytenet_forward.4} parent=0 // loop_footer_branch
    %7 = sbr.rel target = $region3
  $region8: #{rce_bytenet_forward.4} parent=0 // loop_exit
    _

// kernel: rce_bytenet_forward.6
$region0: #{rce_bytenet_forward.6}
  #allocation0 [shape = 'u32[]', space=smem, size = 0x4, offset = 0x4, fixed_abs, tag = 'smem constant byte address 0x4 - core index']
  #allocation1 [shape = 'u32[144,128]{1,0:T(1,128)}', space=vmem, size = 0x12000, scoped, tag = 'internal scratch']
  %s0 = inlined_call_operand.vmem [shape: f32[2,16,126], index: 0, kind: input, shape index: {}]
  %s1 = inlined_call_operand.vmem [shape: f32[16,1], index: 1, kind: input, shape index: {}]
  %s2 = inlined_call_operand.vmem [shape: f32[16,1], index: 2, kind: input, shape index: {}]
  %s3 = inlined_call_operand.vmem [shape: f32[32,16], index: 3, kind: input, shape index: {}]
  %s4 = inlined_call_operand.vmem [shape: f32[32,1], index: 4, kind: input, shape index: {}]
  %s5 = inlined_call_operand.vmem [shape: f32[32,1], index: 5, kind: input, shape index: {}]
  %s6 = inlined_call_operand.vmem [shape: f32[32,1], index: 6, kind: input, shape index: {}]
  %s7 = inlined_call_operand.vmem [shape: f32[3,32,32], index: 7, kind: input, shape index: {}]
  %s8 = inlined_call_operand.vmem [shape: f32[32,1], index: 8, kind: input, shape index: {}]
  %s9 = inlined_call_operand.vmem [shape: f32[32,1], index: 9, kind: input, shape index: {}]
  %s10 = inlined_call_operand.vmem [shape: f32[32,1], index: 10, kind: input, shape index: {}]
  %s11 = inlined_call_operand.vmem [shape: f32[16,32], index: 11, kind: input, shape index: {}]
  %s12 = inlined_call_operand.vmem [shape: f32[16,1], index: 12, kind: input, shape index: {}]
  %s13 = inlined_call_operand.vmem [shape: f32[2,16,122], index: 13, kind: output, shape index: {}]
  %s14 = sld [smem:[#allocation0]]
  $region85: #{rce_bytenet_forward.6} parent=0
    _
  %s16 = ssub.s32 1, %s14
  %s17 = scalar_select 0, %s16, %s14
  loop: start=0, step=1, limit=4
  $region2: #{rce_bytenet_forward.6} parent=0 // loop_pre_header
    _
  $region3: #{rce_bytenet_forward.6} parent=0 // loop_header
    %s19 = sphi 0, %s23
    %p20 = scmp.ge.s32.totalorder %s19, 4
    %s29 = sphi 0, %s31
    %s32 = sphi 0, %s29
    %s33 = sphi 0, %s32
    %s49 = sphi 0, %s33
    %s53 = sphi 0, %s53
    %s55 = sphi 0, %s53
    %s56 = sphi 0, %s55
    %s70 = sphi 0, %s56
    %s74 = sphi 0, %s74
    %s76 = sphi 0, %s74
    %s77 = sphi 0, %s76
    %s91 = sphi 0, %s77
    %s95 = sphi 0, %s95
    %s97 = sphi 0, %s95
    %s98 = sphi 0, %s97
    %s112 = sphi 0, %s98
    %s116 = sphi 0, %s116
    %s118 = sphi 0, %s116
    %s119 = sphi 0, %s118
    %s133 = sphi 0, %s119
    %s137 = sphi 0, %s137
    %s139 = sphi 0, %s137
    %s140 = sphi 0, %s139
    %s154 = sphi 0, %s140
    %s158 = sphi 0, %s158
    %s160 = sphi 0, %s158
    %s161 = sphi 0, %s160
    %s175 = sphi 0, %s161
    %s179 = sphi 0, %s179
    %s181 = sphi 0, %s179
    %s182 = sphi 0, %s181
    %s196 = sphi 0, %s182
    %s200 = sphi 0, %s200
    %s202 = sphi 0, %s200
    %s203 = sphi 0, %s202
    %s217 = sphi 0, %s203
    %s221 = sphi 0, %s221
    %s223 = sphi 0, %s221
    %s224 = sphi 0, %s223
    %s238 = sphi 0, %s224
    %s242 = sphi 0, %s242
    %s244 = sphi 0, %s242
    %s245 = sphi 0, %s244
    %s259 = sphi 0, %s245
    %s263 = sphi 0, %s263
    %s265 = sphi 0, %s263
    %s266 = sphi 0, %s265
    %s280 = sphi 0, %s266
    %s284 = sphi 0, %s284
    %s286 = sphi 0, %s284
    %s287 = sphi 0, %s286
    %s301 = sphi 0, %s287
    %s307 = sphi 0, %s309
    %s310 = sphi 0, %s307
    %s311 = sphi 0, %s310
    %s327 = sphi 0, %s311
  $region4: #{rce_bytenet_forward.6} parent=0 // loop_header_branch
    %22 = sbr.rel (%p20) target = $region8
  $region5: #{rce_bytenet_forward.6} parent=0 // loop_body
    %s24 = ssub.s32 %s19, 1
    %s25 = ssub.s32 %s19, 2
    %s26 = sadd.s32 %s19, 1
    %s27 = ssub.s32 %s19, %s26
    %p28 = scmp.eq.s32.totalorder %s27, 0
    %s30 = sadd.s32 %s29, 1
    %s31 = scalar_select %p28, %s29, %s30
    %p34 = pneg %p28
    %p35 = scmp.eq.s32.totalorder %s19, 1
    %p36 = por %p34, %p35
    %p37 = scmp.ne.s32.totalorder %s29, %s32
    %p38 = scmp.eq.s32.totalorder %s19, 0
    %p39 = por %p37, %p38
    %p40 = scmp.ne.s32.totalorder %s29, %s32
    %p41 = scmp.eq.s32.totalorder %s24, 1
    %p42 = por %p40, %p41
    %p43 = scmp.ne.s32.totalorder %s32, %s33
    %p44 = scmp.eq.s32.totalorder %s24, 0
    %p45 = por %p43, %p44
    %p46 = scmp.ne.s32.totalorder %s32, %s33
    %p47 = scmp.eq.s32.totalorder %s25, 1
    %p48 = por %p46, %p47
    %p50 = scmp.ne.s32.totalorder %s33, %s49
    %p51 = scmp.eq.s32.totalorder %s25, 0
    %p52 = por %p50, %p51
    %s54 = sadd.s32 %s53, 1
    %p57 = scmp.eq.s32.totalorder %s19, 1
    %p58 = scmp.ne.s32.totalorder %s53, %s55
    %p59 = scmp.eq.s32.totalorder %s19, 0
    %p60 = por %p58, %p59
    %p61 = scmp.ne.s32.totalorder %s53, %s55
    %p62 = scmp.eq.s32.totalorder %s24, 1
    %p63 = por %p61, %p62
    %p64 = scmp.ne.s32.totalorder %s55, %s56
    %p65 = scmp.eq.s32.totalorder %s24, 0
    %p66 = por %p64, %p65
    %p67 = scmp.ne.s32.totalorder %s55, %s56
    %p68 = scmp.eq.s32.totalorder %s25, 1
    %p69 = por %p67, %p68
    %p71 = scmp.ne.s32.totalorder %s56, %s70
    %p72 = scmp.eq.s32.totalorder %s25, 0
    %p73 = por %p71, %p72
    %s75 = sadd.s32 %s74, 1
    %p78 = scmp.eq.s32.totalorder %s19, 1
    %p79 = scmp.ne.s32.totalorder %s74, %s76
    %p80 = scmp.eq.s32.totalorder %s19, 0
    %p81 = por %p79, %p80
    %p82 = scmp.ne.s32.totalorder %s74, %s76
    %p83 = scmp.eq.s32.totalorder %s24, 1
    %p84 = por %p82, %p83
    %p85 = scmp.ne.s32.totalorder %s76, %s77
    %p86 = scmp.eq.s32.totalorder %s24, 0
    %p87 = por %p85, %p86
    %p88 = scmp.ne.s32.totalorder %s76, %s77
    %p89 = scmp.eq.s32.totalorder %s25, 1
    %p90 = por %p88, %p89
    %p92 = scmp.ne.s32.totalorder %s77, %s91
    %p93 = scmp.eq.s32.totalorder %s25, 0
    %p94 = por %p92, %p93
    %s96 = sadd.s32 %s95, 1
    %p99 = scmp.eq.s32.totalorder %s19, 1
    %p100 = scmp.ne.s32.totalorder %s95, %s97
    %p101 = scmp.eq.s32.totalorder %s19, 0
    %p102 = por %p100, %p101
    %p103 = scmp.ne.s32.totalorder %s95, %s97
    %p104 = scmp.eq.s32.totalorder %s24, 1
    %p105 = por %p103, %p104
    %p106 = scmp.ne.s32.totalorder %s97, %s98
    %p107 = scmp.eq.s32.totalorder %s24, 0
    %p108 = por %p106, %p107
    %p109 = scmp.ne.s32.totalorder %s97, %s98
    %p110 = scmp.eq.s32.totalorder %s25, 1
    %p111 = por %p109, %p110
    %p113 = scmp.ne.s32.totalorder %s98, %s112
    %p114 = scmp.eq.s32.totalorder %s25, 0
    %p115 = por %p113, %p114
    %s117 = sadd.s32 %s116, 1
    %p120 = scmp.eq.s32.totalorder %s19, 1
    %p121 = scmp.ne.s32.totalorder %s116, %s118
    %p122 = scmp.eq.s32.totalorder %s19, 0
    %p123 = por %p121, %p122
    %p124 = scmp.ne.s32.totalorder %s116, %s118
    %p125 = scmp.eq.s32.totalorder %s24, 1
    %p126 = por %p124, %p125
    %p127 = scmp.ne.s32.totalorder %s118, %s119
    %p128 = scmp.eq.s32.totalorder %s24, 0
    %p129 = por %p127, %p128
    %p130 = scmp.ne.s32.totalorder %s118, %s119
    %p131 = scmp.eq.s32.totalorder %s25, 1
    %p132 = por %p130, %p131
    %p134 = scmp.ne.s32.totalorder %s119, %s133
    %p135 = scmp.eq.s32.totalorder %s25, 0
    %p136 = por %p134, %p135
    %s138 = sadd.s32 %s137, 1
    %p141 = scmp.eq.s32.totalorder %s19, 1
    %p142 = scmp.ne.s32.totalorder %s137, %s139
    %p143 = scmp.eq.s32.totalorder %s19, 0
    %p144 = por %p142, %p143
    %p145 = scmp.ne.s32.totalorder %s137, %s139
    %p146 = scmp.eq.s32.totalorder %s24, 1
    %p147 = por %p145, %p146
    %p148 = scmp.ne.s32.totalorder %s139, %s140
    %p149 = scmp.eq.s32.totalorder %s24, 0
    %p150 = por %p148, %p149
    %p151 = scmp.ne.s32.totalorder %s139, %s140
    %p152 = scmp.eq.s32.totalorder %s25, 1
    %p153 = por %p151, %p152
    %p155 = scmp.ne.s32.totalorder %s140, %s154
    %p156 = scmp.eq.s32.totalorder %s25, 0
    %p157 = por %p155, %p156
    %s159 = sadd.s32 %s158, 1
    %p162 = scmp.eq.s32.totalorder %s19, 1
    %p163 = scmp.ne.s32.totalorder %s158, %s160
    %p164 = scmp.eq.s32.totalorder %s19, 0
    %p165 = por %p163, %p164
    %p166 = scmp.ne.s32.totalorder %s158, %s160
    %p167 = scmp.eq.s32.totalorder %s24, 1
    %p168 = por %p166, %p167
    %p169 = scmp.ne.s32.totalorder %s160, %s161
    %p170 = scmp.eq.s32.totalorder %s24, 0
    %p171 = por %p169, %p170
    %p172 = scmp.ne.s32.totalorder %s160, %s161
    %p173 = scmp.eq.s32.totalorder %s25, 1
    %p174 = por %p172, %p173
    %p176 = scmp.ne.s32.totalorder %s161, %s175
    %p177 = scmp.eq.s32.totalorder %s25, 0
    %p178 = por %p176, %p177
    %s180 = sadd.s32 %s179, 1
    %p183 = scmp.eq.s32.totalorder %s19, 1
    %p184 = scmp.ne.s32.totalorder %s179, %s181
    %p185 = scmp.eq.s32.totalorder %s19, 0
    %p186 = por %p184, %p185
    %p187 = scmp.ne.s32.totalorder %s179, %s181
    %p188 = scmp.eq.s32.totalorder %s24, 1
    %p189 = por %p187, %p188
    %p190 = scmp.ne.s32.totalorder %s181, %s182
    %p191 = scmp.eq.s32.totalorder %s24, 0
    %p192 = por %p190, %p191
    %p193 = scmp.ne.s32.totalorder %s181, %s182
    %p194 = scmp.eq.s32.totalorder %s25, 1
    %p195 = por %p193, %p194
    %p197 = scmp.ne.s32.totalorder %s182, %s196
    %p198 = scmp.eq.s32.totalorder %s25, 0
    %p199 = por %p197, %p198
    %s201 = sadd.s32 %s200, 1
    %p204 = scmp.eq.s32.totalorder %s19, 1
    %p205 = scmp.ne.s32.totalorder %s200, %s202
    %p206 = scmp.eq.s32.totalorder %s19, 0
    %p207 = por %p205, %p206
    %p208 = scmp.ne.s32.totalorder %s200, %s202
    %p209 = scmp.eq.s32.totalorder %s24, 1
    %p210 = por %p208, %p209
    %p211 = scmp.ne.s32.totalorder %s202, %s203
    %p212 = scmp.eq.s32.totalorder %s24, 0
    %p213 = por %p211, %p212
    %p214 = scmp.ne.s32.totalorder %s202, %s203
    %p215 = scmp.eq.s32.totalorder %s25, 1
    %p216 = por %p214, %p215
    %p218 = scmp.ne.s32.totalorder %s203, %s217
    %p219 = scmp.eq.s32.totalorder %s25, 0
    %p220 = por %p218, %p219
    %s222 = sadd.s32 %s221, 1
    %p225 = scmp.eq.s32.totalorder %s19, 1
    %p226 = scmp.ne.s32.totalorder %s221, %s223
    %p227 = scmp.eq.s32.totalorder %s19, 0
    %p228 = por %p226, %p227
    %p229 = scmp.ne.s32.totalorder %s221, %s223
    %p230 = scmp.eq.s32.totalorder %s24, 1
    %p231 = por %p229, %p230
    %p232 = scmp.ne.s32.totalorder %s223, %s224
    %p233 = scmp.eq.s32.totalorder %s24, 0
    %p234 = por %p232, %p233
    %p235 = scmp.ne.s32.totalorder %s223, %s224
    %p236 = scmp.eq.s32.totalorder %s25, 1
    %p237 = por %p235, %p236
    %p239 = scmp.ne.s32.totalorder %s224, %s238
    %p240 = scmp.eq.s32.totalorder %s25, 0
    %p241 = por %p239, %p240
    %s243 = sadd.s32 %s242, 1
    %p246 = scmp.eq.s32.totalorder %s19, 1
    %p247 = scmp.ne.s32.totalorder %s242, %s244
    %p248 = scmp.eq.s32.totalorder %s19, 0
    %p249 = por %p247, %p248
    %p250 = scmp.ne.s32.totalorder %s242, %s244
    %p251 = scmp.eq.s32.totalorder %s24, 1
    %p252 = por %p250, %p251
    %p253 = scmp.ne.s32.totalorder %s244, %s245
    %p254 = scmp.eq.s32.totalorder %s24, 0
    %p255 = por %p253, %p254
    %p256 = scmp.ne.s32.totalorder %s244, %s245
    %p257 = scmp.eq.s32.totalorder %s25, 1
    %p258 = por %p256, %p257
    %p260 = scmp.ne.s32.totalorder %s245, %s259
    %p261 = scmp.eq.s32.totalorder %s25, 0
    %p262 = por %p260, %p261
    %s264 = sadd.s32 %s263, 1
    %p267 = scmp.eq.s32.totalorder %s19, 1
    %p268 = scmp.ne.s32.totalorder %s263, %s265
    %p269 = scmp.eq.s32.totalorder %s19, 0
    %p270 = por %p268, %p269
    %p271 = scmp.ne.s32.totalorder %s263, %s265
    %p272 = scmp.eq.s32.totalorder %s24, 1
    %p273 = por %p271, %p272
    %p274 = scmp.ne.s32.totalorder %s265, %s266
    %p275 = scmp.eq.s32.totalorder %s24, 0
    %p276 = por %p274, %p275
    %p277 = scmp.ne.s32.totalorder %s265, %s266
    %p278 = scmp.eq.s32.totalorder %s25, 1
    %p279 = por %p277, %p278
    %p281 = scmp.ne.s32.totalorder %s266, %s280
    %p282 = scmp.eq.s32.totalorder %s25, 0
    %p283 = por %p281, %p282
    %s285 = sadd.s32 %s284, 1
    %p288 = scmp.eq.s32.totalorder %s19, 1
    %p289 = scmp.ne.s32.totalorder %s284, %s286
    %p290 = scmp.eq.s32.totalorder %s19, 0
    %p291 = por %p289, %p290
    %p292 = scmp.ne.s32.totalorder %s284, %s286
    %p293 = scmp.eq.s32.totalorder %s24, 1
    %p294 = por %p292, %p293
    %p295 = scmp.ne.s32.totalorder %s286, %s287
    %p296 = scmp.eq.s32.totalorder %s24, 0
    %p297 = por %p295, %p296
    %p298 = scmp.ne.s32.totalorder %s286, %s287
    %p299 = scmp.eq.s32.totalorder %s25, 1
    %p300 = por %p298, %p299
    %p302 = scmp.ne.s32.totalorder %s287, %s301
    %p303 = scmp.eq.s32.totalorder %s25, 0
    %p304 = por %p302, %p303
    %s305 = ssub.s32 %s19, %s26
    %p306 = scmp.eq.s32.totalorder %s305, 0
    %s308 = sadd.s32 %s307, 1
    %s309 = scalar_select %p306, %s307, %s308
    %p312 = pneg %p306
    %p313 = scmp.eq.s32.totalorder %s19, 1
    %p314 = por %p312, %p313
    %p315 = scmp.ne.s32.totalorder %s307, %s310
    %p316 = scmp.eq.s32.totalorder %s19, 0
    %p317 = por %p315, %p316
    %p318 = scmp.ne.s32.totalorder %s307, %s310
    %p319 = scmp.eq.s32.totalorder %s24, 1
    %p320 = por %p318, %p319
    %p321 = scmp.ne.s32.totalorder %s310, %s311
    %p322 = scmp.eq.s32.totalorder %s24, 0
    %p323 = por %p321, %p322
    %p324 = scmp.ne.s32.totalorder %s310, %s311
    %p325 = scmp.eq.s32.totalorder %s25, 1
    %p326 = por %p324, %p325
    %p328 = scmp.ne.s32.totalorder %s311, %s327
    %p329 = scmp.eq.s32.totalorder %s25, 0
    %p330 = por %p328, %p329
    %p331 = scmp.le.s32.totalorder 1, %s19
    %p332 = scmp.lt.s32.totalorder %s19, 3
    %p333 = pnand %p331, %p332
    %p334 = pneg %p333
    // Predicated region
    $region9: #{rce_bytenet_forward.6} parent=5 // pred_check
      _
    $region10: #{rce_bytenet_forward.6} parent=5 // pred_check_branch
      %336 = sbr.rel (%p333) target = $region12
    $region11: #{rce_bytenet_forward.6} parent=5 // pred_region
      %s337 = ssub.s32 %s19, 1
      // Predicated region
      $region13: #{rce_bytenet_forward.6} parent=11 // pred_check
        %p338 = pneg %p66
      $region14: #{rce_bytenet_forward.6} parent=11 // pred_check_branch
        %340 = sbr.rel (%p338) target = $region16
      $region15: #{rce_bytenet_forward.6} parent=11 // pred_region
        _
      $region16: #{rce_bytenet_forward.6} parent=11 // pred_fallthru
        _
      // Predicated region
      $region17: #{rce_bytenet_forward.6} parent=11 // pred_check
        %p341 = pneg %p87
      $region18: #{rce_bytenet_forward.6} parent=11 // pred_check_branch
        %343 = sbr.rel (%p341) target = $region20
      $region19: #{rce_bytenet_forward.6} parent=11 // pred_region
        _
      $region20: #{rce_bytenet_forward.6} parent=11 // pred_fallthru
        _
      // Predicated region
      $region21: #{rce_bytenet_forward.6} parent=11 // pred_check
        %p344 = pneg %p108
      $region22: #{rce_bytenet_forward.6} parent=11 // pred_check_branch
        %346 = sbr.rel (%p344) target = $region24
      $region23: #{rce_bytenet_forward.6} parent=11 // pred_region
        _
      $region24: #{rce_bytenet_forward.6} parent=11 // pred_fallthru
        _
      // Predicated region
      $region25: #{rce_bytenet_forward.6} parent=11 // pred_check
        %p347 = pneg %p129
      $region26: #{rce_bytenet_forward.6} parent=11 // pred_check_branch
        %349 = sbr.rel (%p347) target = $region28
      $region27: #{rce_bytenet_forward.6} parent=11 // pred_region
        _
      $region28: #{rce_bytenet_forward.6} parent=11 // pred_fallthru
        _
      // Predicated region
      $region29: #{rce_bytenet_forward.6} parent=11 // pred_check
        %p350 = pneg %p150
      $region30: #{rce_bytenet_forward.6} parent=11 // pred_check_branch
        %352 = sbr.rel (%p350) target = $region32
      $region31: #{rce_bytenet_forward.6} parent=11 // pred_region
        _
      $region32: #{rce_bytenet_forward.6} parent=11 // pred_fallthru
        _
      // Predicated region
      $region33: #{rce_bytenet_forward.6} parent=11 // pred_check
        %p353 = pneg %p171
      $region34: #{rce_bytenet_forward.6} parent=11 // pred_check_branch
        %355 = sbr.rel (%p353) target = $region36
      $region35: #{rce_bytenet_forward.6} parent=11 // pred_region
        _
      $region36: #{rce_bytenet_forward.6} parent=11 // pred_fallthru
        _
      // Predicated region
      $region37: #{rce_bytenet_forward.6} parent=11 // pred_check
        %p356 = pneg %p192
      $region38: #{rce_bytenet_forward.6} parent=11 // pred_check_branch
        %358 = sbr.rel (%p356) target = $region40
      $region39: #{rce_bytenet_forward.6} parent=11 // pred_region
        _
      $region40: #{rce_bytenet_forward.6} parent=11 // pred_fallthru
        _
      // Predicated region
      $region41: #{rce_bytenet_forward.6} parent=11 // pred_check
        %p359 = pneg %p213
      $region42: #{rce_bytenet_forward.6} parent=11 // pred_check_branch
        %361 = sbr.rel (%p359) target = $region44
      $region43: #{rce_bytenet_forward.6} parent=11 // pred_region
        _
      $region44: #{rce_bytenet_forward.6} parent=11 // pred_fallthru
        _
      // Predicated region
      $region45: #{rce_bytenet_forward.6} parent=11 // pred_check
        %p362 = pneg %p234
      $region46: #{rce_bytenet_forward.6} parent=11 // pred_check_branch
        %364 = sbr.rel (%p362) target = $region48
      $region47: #{rce_bytenet_forward.6} parent=11 // pred_region
        _
      $region48: #{rce_bytenet_forward.6} parent=11 // pred_fallthru
        _
      // Predicated region
      $region49: #{rce_bytenet_forward.6} parent=11 // pred_check
        %p365 = pneg %p255
      $region50: #{rce_bytenet_forward.6} parent=11 // pred_check_branch
        %367 = sbr.rel (%p365) target = $region52
      $region51: #{rce_bytenet_forward.6} parent=11 // pred_region
        _
      $region52: #{rce_bytenet_forward.6} parent=11 // pred_fallthru
        _
      // Predicated region
      $region53: #{rce_bytenet_forward.6} parent=11 // pred_check
        %p368 = pneg %p276
      $region54: #{rce_bytenet_forward.6} parent=11 // pred_check_branch
        %370 = sbr.rel (%p368) target = $region56
      $region55: #{rce_bytenet_forward.6} parent=11 // pred_region
        _
      $region56: #{rce_bytenet_forward.6} parent=11 // pred_fallthru
        _
      // Predicated region
      $region57: #{rce_bytenet_forward.6} parent=11 // pred_check
        %p371 = pneg %p297
      $region58: #{rce_bytenet_forward.6} parent=11 // pred_check_branch
        %373 = sbr.rel (%p371) target = $region60
      $region59: #{rce_bytenet_forward.6} parent=11 // pred_region
        _
      $region60: #{rce_bytenet_forward.6} parent=11 // pred_fallthru
        _
    $region12: #{rce_bytenet_forward.6} parent=5 // pred_fallthru
      _
    %p374 = scmp.lt.s32.totalorder %s19, 2
    // Predicated region
    $region61: #{rce_bytenet_forward.6} parent=5 // pred_check
      %p375 = pneg %p374
    $region62: #{rce_bytenet_forward.6} parent=5 // pred_check_branch
      %377 = sbr.rel (%p375) target = $region64
    $region63: #{rce_bytenet_forward.6} parent=5 // pred_region
      // Predicated region
      $region65: #{rce_bytenet_forward.6} parent=63 // pred_check
        %p378 = pneg %p39
      $region66: #{rce_bytenet_forward.6} parent=63 // pred_check_branch
        %380 = sbr.rel (%p378) target = $region68
      $region67: #{rce_bytenet_forward.6} parent=63 // pred_region
        %p381 = scmp.lt.s32.totalorder %s19, 1
        %s382 = scalar_select %p381, %s19, 1
        %s383 = smul.addr %s382, 2
        %s384 = smul.addr %s383, 8
        %s385 = scalar_lea.vmem %s0, %s384
      $region68: #{rce_bytenet_forward.6} parent=63 // pred_fallthru
        _
    $region64: #{rce_bytenet_forward.6} parent=5 // pred_fallthru
      _
    %p386 = scmp.le.s32.totalorder 1, %s19
    %p387 = scmp.lt.s32.totalorder %s19, 3
    %p388 = pnand %p386, %p387
    %p389 = pneg %p388
    // Predicated region
    $region69: #{rce_bytenet_forward.6} parent=5 // pred_check
      _
    $region70: #{rce_bytenet_forward.6} parent=5 // pred_check_branch
      %391 = sbr.rel (%p388) target = $region72
    $region71: #{rce_bytenet_forward.6} parent=5 // pred_region
      %s392 = ssub.s32 %s19, 1
      %p393 = scmp.lt.s32.totalorder %s24, 1
      %s394 = scalar_select %p393, %s24, 1
      %s395 = smul.addr %s394, 2
      %s396 = smul.addr %s395, 8
      %s397 = scalar_lea.vmem %s0, %s396
      %p398 = pneg %p45
      %p399 = pneg %p42
      %p400 = pneg %p66
      %p401 = pneg %p63
      %p402 = pneg %p87
      %p403 = pneg %p84
      %p404 = pneg %p108
      %p405 = pneg %p105
      %p406 = pneg %p129
      %p407 = pneg %p126
      %p408 = pneg %p150
      %p409 = pneg %p147
      %p410 = pneg %p171
      %p411 = pneg %p168
      %p412 = pneg %p192
      %p413 = pneg %p189
      %p414 = pneg %p213
      %p415 = pneg %p210
      %p416 = pneg %p234
      %p417 = pneg %p231
      %p418 = pneg %p255
      %p419 = pneg %p252
      %p420 = pneg %p276
      %p421 = pneg %p273
      %p422 = pneg %p297
      %p423 = pneg %p294
      %p424 = pneg %p323
      %p425 = pneg %p320
      %p426 = scmp.lt.s32.totalorder %s24, 1
      %s427 = scalar_select %p426, %s24, 1
      %s428 = smul.addr %s427, 2
      %s429 = smul.addr %s428, 8
      %s430 = scalar_lea.vmem %s13, %s429
      %p431 = scmp.lt.s32.totalorder %s24, 1
      %s432 = scalar_select %p431, %s24, 1
      %s433 = smul.addr %s432, 2
      %s434 = smul.addr %s433, 8
      %s435 = scalar_lea.vmem %s0, %s434
      %p436 = scmp.lt.s32.totalorder %s24, 1
      %s437 = scalar_select %p436, %s24, 1
      %s438 = smul.addr %s437, 2
      %s439 = smul.addr %s438, 8
      %s440 = scalar_lea.vmem %s13, %s439
      %v441 = vld [vmem:[%s435] sm:$0xff]
      %v442 = vld [vmem:[%s435 + $0x8] sm:$0xff]
      %v443 = vld [vmem:[%s1] sm:$0xff]
      %v444 = vld [vmem:[%s1 + $0x8] sm:$0xff]
      %v445 = vld [vmem:[%s2] sm:$0xff]
      %v446 = vld [vmem:[%s2 + $0x8] sm:$0xff]
      %vm447 = vcmask 1031168
      %v448 = vsel %vm447, %v441, 0.0
      %v449 = vsel %vm447, %v442, 0.0
      %v450 = vadd.f32 %v448, %v449
      %451 = vadd.xlane.f32.xlu0 %v450
      %v452 = vpop.xlane.xlu0 %451
      %v453 = vrot.slane %v452, 4
      %v454 = vadd.f32 %v452, %v453
      %v455 = vrot.slane %v454, 2
      %v456 = vadd.f32 %v454, %v455
      %v457 = vrot.slane %v456, 1
      %v458 = vadd.f32 %v456, %v457
      %s459 = vtos %v458
      %v460 = vstv %s459
      %v461 = vrcp.pop 2016.0
      %v462 = vmul.f32 %v460, %v461
      %v463 = vmul.f32 %v441, %v441
      %v464 = vmul.f32 %v442, %v442
      %v465 = vsel %vm447, %v463, 0.0
      %v466 = vsel %vm447, %v464, 0.0
      %v467 = vadd.f32 %v465, %v466
      %468 = vadd.xlane.f32.xlu0 %v467
      %v469 = vpop.xlane.xlu0 %468
      %v470 = vrot.slane %v469, 4
      %v471 = vadd.f32 %v469, %v470
      %v472 = vrot.slane %v471, 2
      %v473 = vadd.f32 %v471, %v472
      %v474 = vrot.slane %v473, 1
      %v475 = vadd.f32 %v473, %v474
      %s476 = vtos %v475
      %v477 = vstv %s476
      %v478 = vmul.f32 %v477, %v461
      %v479 = vmul.f32 %v462, %v462
      %v480 = vsub.f32 %v478, %v479
      %v481 = vsub.f32 %v441, %v462
      %v482 = vsub.f32 %v442, %v462
      %v483 = vadd.f32 %v480, 1e-05
      %v484 = vrsqrt.pop %v483
      %v485 = vmul.f32 %v481, %v484
      %v486 = vmul.f32 %v482, %v484
      %488 = vset.pattern.permute.xlu0 0
      %489 = vperm.xlu0 %488, %v443
      %v490 = vpop.permute.xlu0 %489
      %493 = vset.pattern.permute.xlu0 0
      %494 = vperm.xlu0 %493, %v444
      %v495 = vpop.permute.xlu0 %494
      %v497 = vmul.f32 %v490, %v485
      %v498 = vmul.f32 %v495, %v486
      %500 = vset.pattern.permute.xlu0 0
      %501 = vperm.xlu0 %500, %v445
      %v502 = vpop.permute.xlu0 %501
      %505 = vset.pattern.permute.xlu0 0
      %506 = vperm.xlu0 %505, %v446
      %v507 = vpop.permute.xlu0 %506
      %v509 = vadd.f32 %v497, %v502
      %v510 = vadd.f32 %v498, %v507
      %v511 = vmul.f32 %v509, 0.5
      %v512 = vmul.f32 %v510, 0.5
      %v513 = vmul.f32 %v509, 0.70710677
      %v514 = vmul.f32 %v510, 0.70710677
      %v515 = verf.f32.pop %v513
      %v516 = verf.f32.pop %v514
      %v517 = vadd.f32 %v515, 1.0
      %v518 = vadd.f32 %v516, 1.0
      %v519 = vmul.f32 %v511, %v517
      %v520 = vmul.f32 %v512, %v518
      %v521 = vld [vmem:[%s3] sm:$0xff]
      %v522 = vld [vmem:[%s3 + $0x8] sm:$0xff]
      %v523 = vld [vmem:[%s3 + $0x10] sm:$0xff]
      %v524 = vld [vmem:[%s3 + $0x18] sm:$0xff]
      %v525 = vld [vmem:[%s4] sm:$0xff]
      %v526 = vld [vmem:[%s4 + $0x8] sm:$0xff]
      %v527 = vld [vmem:[%s4 + $0x10] sm:$0xff]
      %v528 = vld [vmem:[%s4 + $0x18] sm:$0xff]
      %530 = vset.pattern.permute.xlu0 0
      %531 = vperm.xlu0 %530, %v525
      %v532 = vpop.permute.xlu0 %531
      %535 = vset.pattern.permute.xlu0 0
      %536 = vperm.xlu0 %535, %v526
      %v537 = vpop.permute.xlu0 %536
      %540 = vset.pattern.permute.xlu0 0
      %541 = vperm.xlu0 %540, %v527
      %v542 = vpop.permute.xlu0 %541
      %545 = vset.pattern.permute.xlu0 0
      %546 = vperm.xlu0 %545, %v528
      %v547 = vpop.permute.xlu0 %546
      %vm549 = vcmask 130048
      %v551 = vsel %vm549, %v521, 0
      %v554 = vsel %vm549, %v522, 0
      %v557 = vsel %vm549, %v523, 0
      %v560 = vsel %vm549, %v524, 0
      %562 = vmatprep.subr.mxu0 0.0
      %563 = vmatpush1.msra.mxu0 0.0
      %564 = vmatprep.subr.mxu0 0.0
      %565 = vmatpush1.msra.mxu0 0.0
      %566 = vmatprep.subr.mxu0 0.0
      %567 = vmatpush1.msra.mxu0 0.0
      %568 = vmatprep.subr.mxu0 0.0
      %569 = vmatpush1.msra.mxu0 0.0
      %570 = vmatprep.subr.mxu0 0.0
      %571 = vmatpush1.msra.mxu0 0.0
      %572 = vmatprep.subr.mxu0 0.0
      %573 = vmatpush1.msra.mxu0 0.0
      %574 = vmatprep.subr.mxu0 0.0
      %575 = vmatpush1.msra.mxu0 0.0
      %576 = vmatprep.subr.mxu0 0.0
      %577 = vmatpush1.msra.mxu0 0.0
      %578 = vmatprep.subr.mxu0 0.0
      %579 = vmatpush1.msra.mxu0 0.0
      %580 = vmatprep.subr.mxu0 0.0
      %581 = vmatpush1.msra.mxu0 0.0
      %582 = vmatprep.subr.mxu0 0.0
      %583 = vmatpush1.msra.mxu0 0.0
      %584 = vmatprep.subr.mxu0 0.0
      %585 = vmatpush1.msra.mxu0 0.0
      %586 = vmatprep.subr.mxu0 0.0
      %587 = vmatpush1.msra.mxu0 0.0
      %588 = vmatprep.subr.mxu0 0.0
      %589 = vmatpush1.msra.mxu0 0.0
      %590 = vmatprep.subr.mxu0 0.0
      %591 = vmatpush1.msra.mxu0 %v520
      %592 = vmatprep.subr.mxu0 0.0
      %593 = vmatpush1.msra.mxu0 %v519
      %594 = vmatprep.subr.mxu0 0.0
      %595 = vmatpush2.msra.mxu0 0.0
      %596 = vmatprep.subr.mxu0 0.0
      %597 = vmatpush2.msra.mxu0 0.0
      %598 = vmatprep.subr.mxu0 0.0
      %599 = vmatpush2.msra.mxu0 0.0
      %600 = vmatprep.subr.mxu0 0.0
      %601 = vmatpush2.msra.mxu0 0.0
      %602 = vmatprep.subr.mxu0 0.0
      %603 = vmatpush2.msra.mxu0 0.0
      %604 = vmatprep.subr.mxu0 0.0
      %605 = vmatpush2.msra.mxu0 0.0
      %606 = vmatprep.subr.mxu0 0.0
      %607 = vmatpush2.msra.mxu0 0.0
      %608 = vmatprep.subr.mxu0 0.0
      %609 = vmatpush2.msra.mxu0 0.0
      %610 = vmatprep.subr.mxu0 0.0
      %611 = vmatpush2.msra.mxu0 0.0
      %612 = vmatprep.subr.mxu0 0.0
      %613 = vmatpush2.msra.mxu0 0.0
      %614 = vmatprep.subr.mxu0 0.0
      %615 = vmatpush2.msra.mxu0 0.0
      %616 = vmatprep.subr.mxu0 0.0
      %617 = vmatpush2.msra.mxu0 0.0
      %618 = vmatprep.subr.mxu0 0.0
      %619 = vmatpush2.msra.mxu0 0.0
      %620 = vmatprep.subr.mxu0 0.0
      %621 = vmatpush2.msra.mxu0 0.0
      %622 = vmatprep.subr.mxu0 0.0
      %623 = vmatpush2.msra.mxu0 0.0
      %624 = vmatprep.subr.mxu0 0.0
      %625 = vmatpush2.msra.mxu0 0.0
      %626 = vmatprep.mubr.f32.mxu0 0.0
      %627 = vmatmul.mubr.f32.gmra.mxu0 %v551
      %v628 = vpop.f32.mrf.mxu0
      %v629 = vadd.f32 %v532, %v628
      %v630 = vpop.f32.mrf.mxu0
      %631 = vmatprep.mubr.f32.mxu0 0.0
      %632 = vmatmul.mubr.f32.gmra.mxu0 %v554
      %v633 = vpop.f32.mrf.mxu0
      %v634 = vadd.f32 %v537, %v633
      %v635 = vpop.f32.mrf.mxu0
      %636 = vmatprep.mubr.f32.mxu0 0.0
      %637 = vmatmul.mubr.f32.gmra.mxu0 %v557
      %v638 = vpop.f32.mrf.mxu0
      %v639 = vadd.f32 %v542, %v638
      %v640 = vpop.f32.mrf.mxu0
      %641 = vmatprep.mubr.f32.mxu0 0.0
      %642 = vmatmul.mubr.f32.gmra.mxu0 %v560
      %v643 = vpop.f32.mrf.mxu0
      %v644 = vadd.f32 %v547, %v643
      %v645 = vpop.f32.mrf.mxu0
      %646 = vdwg.mxu0
      %v647 = vld [vmem:[%s5] sm:$0xff]
      %v648 = vld [vmem:[%s5 + $0x8] sm:$0xff]
      %v649 = vld [vmem:[%s5 + $0x10] sm:$0xff]
      %v650 = vld [vmem:[%s5 + $0x18] sm:$0xff]
      %v651 = vld [vmem:[%s6] sm:$0xff]
      %v652 = vld [vmem:[%s6 + $0x8] sm:$0xff]
      %v653 = vld [vmem:[%s6 + $0x10] sm:$0xff]
      %v654 = vld [vmem:[%s6 + $0x18] sm:$0xff]
      %v655 = vsel %vm447, %v629, 0.0
      %v656 = vsel %vm447, %v634, 0.0
      %v657 = vadd.f32 %v655, %v656
      %v658 = vsel %vm447, %v639, 0.0
      %v659 = vadd.f32 %v657, %v658
      %v660 = vsel %vm447, %v644, 0.0
      %v661 = vadd.f32 %v659, %v660
      %662 = vadd.xlane.f32.xlu0 %v661
      %v663 = vpop.xlane.xlu0 %662
      %v664 = vrot.slane %v663, 4
      %v665 = vadd.f32 %v663, %v664
      %v666 = vrot.slane %v665, 2
      %v667 = vadd.f32 %v665, %v666
      %v668 = vrot.slane %v667, 1
      %v669 = vadd.f32 %v667, %v668
      %s670 = vtos %v669
      %v671 = vstv %s670
      %v672 = vrcp.pop 4032.0
      %v673 = vmul.f32 %v671, %v672
      %v674 = vmul.f32 %v629, %v629
      %v675 = vmul.f32 %v634, %v634
      %v676 = vmul.f32 %v639, %v639
      %v677 = vmul.f32 %v644, %v644
      %v678 = vsel %vm447, %v674, 0.0
      %v679 = vsel %vm447, %v675, 0.0
      %v680 = vadd.f32 %v678, %v679
      %v681 = vsel %vm447, %v676, 0.0
      %v682 = vadd.f32 %v680, %v681
      %v683 = vsel %vm447, %v677, 0.0
      %v684 = vadd.f32 %v682, %v683
      %685 = vadd.xlane.f32.xlu0 %v684
      %v686 = vpop.xlane.xlu0 %685
      %v687 = vrot.slane %v686, 4
      %v688 = vadd.f32 %v686, %v687
      %v689 = vrot.slane %v688, 2
      %v690 = vadd.f32 %v688, %v689
      %v691 = vrot.slane %v690, 1
      %v692 = vadd.f32 %v690, %v691
      %s693 = vtos %v692
      %v694 = vstv %s693
      %v695 = vmul.f32 %v694, %v672
      %v696 = vmul.f32 %v673, %v673
      %v697 = vsub.f32 %v695, %v696
      %v698 = vsub.f32 %v629, %v673
      %v699 = vsub.f32 %v634, %v673
      %v700 = vsub.f32 %v639, %v673
      %v701 = vsub.f32 %v644, %v673
      %v702 = vadd.f32 %v697, 1e-05
      %v703 = vrsqrt.pop %v702
      %v704 = vmul.f32 %v698, %v703
      %v705 = vmul.f32 %v699, %v703
      %v706 = vmul.f32 %v700, %v703
      %v707 = vmul.f32 %v701, %v703
      %709 = vset.pattern.permute.xlu0 0
      %710 = vperm.xlu0 %709, %v647
      %v711 = vpop.permute.xlu0 %710
      %714 = vset.pattern.permute.xlu0 0
      %715 = vperm.xlu0 %714, %v648
      %v716 = vpop.permute.xlu0 %715
      %719 = vset.pattern.permute.xlu0 0
      %720 = vperm.xlu0 %719, %v649
      %v721 = vpop.permute.xlu0 %720
      %724 = vset.pattern.permute.xlu0 0
      %725 = vperm.xlu0 %724, %v650
      %v726 = vpop.permute.xlu0 %725
      %v728 = vmul.f32 %v711, %v704
      %v729 = vmul.f32 %v716, %v705
      %v730 = vmul.f32 %v721, %v706
      %v731 = vmul.f32 %v726, %v707
      %733 = vset.pattern.permute.xlu0 0
      %734 = vperm.xlu0 %733, %v651
      %v735 = vpop.permute.xlu0 %734
      %738 = vset.pattern.permute.xlu0 0
      %739 = vperm.xlu0 %738, %v652
      %v740 = vpop.permute.xlu0 %739
      %743 = vset.pattern.permute.xlu0 0
      %744 = vperm.xlu0 %743, %v653
      %v745 = vpop.permute.xlu0 %744
      %748 = vset.pattern.permute.xlu0 0
      %749 = vperm.xlu0 %748, %v654
      %v750 = vpop.permute.xlu0 %749
      %v752 = vadd.f32 %v728, %v735
      %v753 = vadd.f32 %v729, %v740
      %v754 = vadd.f32 %v730, %v745
      %v755 = vadd.f32 %v731, %v750
      %v756 = vmul.f32 %v752, 0.5
      %v757 = vmul.f32 %v753, 0.5
      %v758 = vmul.f32 %v754, 0.5
      %v759 = vmul.f32 %v755, 0.5
      %v760 = vmul.f32 %v752, 0.70710677
      %v761 = vmul.f32 %v753, 0.70710677
      %v762 = vmul.f32 %v754, 0.70710677
      %v763 = vmul.f32 %v755, 0.70710677
      %v764 = verf.f32.pop %v760
      %v765 = verf.f32.pop %v761
      %v766 = verf.f32.pop %v762
      %v767 = verf.f32.pop %v763
      %v768 = vadd.f32 %v764, 1.0
      %v769 = vadd.f32 %v765, 1.0
      %v770 = vadd.f32 %v766, 1.0
      %v771 = vadd.f32 %v767, 1.0
      %v772 = vmul.f32 %v756, %v768
      %v773 = vmul.f32 %v757, %v769
      %v774 = vmul.f32 %v758, %v770
      %v775 = vmul.f32 %v759, %v771
      %v776 = vld [vmem:[%s7] sm:$0xff]
      %v777 = vld [vmem:[%s7 + $0x8] sm:$0xff]
      %v778 = vld [vmem:[%s7 + $0x10] sm:$0xff]
      %v779 = vld [vmem:[%s7 + $0x18] sm:$0xff]
      %s780 = scalar_lea.vmem %s7, 32
      %v781 = vld [vmem:[%s780] sm:$0xff]
      %v782 = vld [vmem:[%s780 + $0x8] sm:$0xff]
      %v783 = vld [vmem:[%s780 + $0x10] sm:$0xff]
      %v784 = vld [vmem:[%s780 + $0x18] sm:$0xff]
      %789 = vrot.lane.b32.xlu0 %v772, 126
      %v790 = vpop.permute.xlu0 %789
      %791 = vrot.lane.b32.xlu0 %v773, 126
      %v792 = vpop.permute.xlu0 %791
      %793 = vrot.lane.b32.xlu0 %v774, 126
      %v794 = vpop.permute.xlu0 %793
      %795 = vrot.lane.b32.xlu0 %v775, 126
      %v796 = vpop.permute.xlu0 %795
      %vm801 = vcmask 261120
      %v803 = vsel %vm801, %v781, 0
      %v806 = vsel %vm801, %v782, 0
      %v809 = vsel %vm801, %v783, 0
      %v812 = vsel %vm801, %v784, 0
      %814 = vmatprep.subr.mxu0 0.0
      %815 = vmatpush1.msra.mxu0 0.0
      %816 = vmatprep.subr.mxu0 0.0
      %817 = vmatpush1.msra.mxu0 0.0
      %818 = vmatprep.subr.mxu0 0.0
      %819 = vmatpush1.msra.mxu0 0.0
      %820 = vmatprep.subr.mxu0 0.0
      %821 = vmatpush1.msra.mxu0 0.0
      %822 = vmatprep.subr.mxu0 0.0
      %823 = vmatpush1.msra.mxu0 0.0
      %824 = vmatprep.subr.mxu0 0.0
      %825 = vmatpush1.msra.mxu0 0.0
      %826 = vmatprep.subr.mxu0 0.0
      %827 = vmatpush1.msra.mxu0 0.0
      %828 = vmatprep.subr.mxu0 0.0
      %829 = vmatpush1.msra.mxu0 0.0
      %830 = vmatprep.subr.mxu0 0.0
      %831 = vmatpush1.msra.mxu0 0.0
      %832 = vmatprep.subr.mxu0 0.0
      %833 = vmatpush1.msra.mxu0 0.0
      %834 = vmatprep.subr.mxu0 0.0
      %835 = vmatpush1.msra.mxu0 0.0
      %836 = vmatprep.subr.mxu0 0.0
      %837 = vmatpush1.msra.mxu0 0.0
      %838 = vmatprep.subr.mxu0 0.0
      %839 = vmatpush1.msra.mxu0 %v796
      %840 = vmatprep.subr.mxu0 0.0
      %841 = vmatpush1.msra.mxu0 %v794
      %842 = vmatprep.subr.mxu0 0.0
      %843 = vmatpush1.msra.mxu0 %v792
      %844 = vmatprep.subr.mxu0 0.0
      %845 = vmatpush1.msra.mxu0 %v790
      %846 = vmatprep.subr.mxu0 0.0
      %847 = vmatpush2.msra.mxu0 0.0
      %848 = vmatprep.subr.mxu0 0.0
      %849 = vmatpush2.msra.mxu0 0.0
      %850 = vmatprep.subr.mxu0 0.0
      %851 = vmatpush2.msra.mxu0 0.0
      %852 = vmatprep.subr.mxu0 0.0
      %853 = vmatpush2.msra.mxu0 0.0
      %854 = vmatprep.subr.mxu0 0.0
      %855 = vmatpush2.msra.mxu0 0.0
      %856 = vmatprep.subr.mxu0 0.0
      %857 = vmatpush2.msra.mxu0 0.0
      %858 = vmatprep.subr.mxu0 0.0
      %859 = vmatpush2.msra.mxu0 0.0
      %860 = vmatprep.subr.mxu0 0.0
      %861 = vmatpush2.msra.mxu0 0.0
      %862 = vmatprep.subr.mxu0 0.0
      %863 = vmatpush2.msra.mxu0 0.0
      %864 = vmatprep.subr.mxu0 0.0
      %865 = vmatpush2.msra.mxu0 0.0
      %866 = vmatprep.subr.mxu0 0.0
      %867 = vmatpush2.msra.mxu0 0.0
      %868 = vmatprep.subr.mxu0 0.0
      %869 = vmatpush2.msra.mxu0 0.0
      %870 = vmatprep.subr.mxu0 0.0
      %871 = vmatpush2.msra.mxu0 0.0
      %872 = vmatprep.subr.mxu0 0.0
      %873 = vmatpush2.msra.mxu0 0.0
      %874 = vmatprep.subr.mxu0 0.0
      %875 = vmatpush2.msra.mxu0 0.0
      %876 = vmatprep.subr.mxu0 0.0
      %877 = vmatpush2.msra.mxu0 0.0
      %878 = vmatprep.mubr.f32.mxu0 0.0
      %879 = vmatmul.mubr.f32.gmra.mxu0 %v803
      %v880 = vpop.f32.mrf.mxu0
      %v881 = vadd.f32 0.0, %v880
      %v882 = vpop.f32.mrf.mxu0
      %883 = vmatprep.mubr.f32.mxu0 0.0
      %884 = vmatmul.mubr.f32.gmra.mxu0 %v806
      %v885 = vpop.f32.mrf.mxu0
      %v886 = vadd.f32 0.0, %v885
      %v887 = vpop.f32.mrf.mxu0
      %888 = vmatprep.mubr.f32.mxu0 0.0
      %889 = vmatmul.mubr.f32.gmra.mxu0 %v809
      %v890 = vpop.f32.mrf.mxu0
      %v891 = vadd.f32 0.0, %v890
      %v892 = vpop.f32.mrf.mxu0
      %893 = vmatprep.mubr.f32.mxu0 0.0
      %894 = vmatmul.mubr.f32.gmra.mxu0 %v812
      %v895 = vpop.f32.mrf.mxu0
      %v896 = vadd.f32 0.0, %v895
      %v897 = vpop.f32.mrf.mxu0
      %898 = vdwg.mxu0
      %v900 = vsel %vm801, %v776, 0
      %v903 = vsel %vm801, %v777, 0
      %v906 = vsel %vm801, %v778, 0
      %v909 = vsel %vm801, %v779, 0
      %911 = vmatprep.subr.mxu0 0.0
      %912 = vmatpush1.msra.mxu0 0.0
      %913 = vmatprep.subr.mxu0 0.0
      %914 = vmatpush1.msra.mxu0 0.0
      %915 = vmatprep.subr.mxu0 0.0
      %916 = vmatpush1.msra.mxu0 0.0
      %917 = vmatprep.subr.mxu0 0.0
      %918 = vmatpush1.msra.mxu0 0.0
      %919 = vmatprep.subr.mxu0 0.0
      %920 = vmatpush1.msra.mxu0 0.0
      %921 = vmatprep.subr.mxu0 0.0
      %922 = vmatpush1.msra.mxu0 0.0
      %923 = vmatprep.subr.mxu0 0.0
      %924 = vmatpush1.msra.mxu0 0.0
      %925 = vmatprep.subr.mxu0 0.0
      %926 = vmatpush1.msra.mxu0 0.0
      %927 = vmatprep.subr.mxu0 0.0
      %928 = vmatpush1.msra.mxu0 0.0
      %929 = vmatprep.subr.mxu0 0.0
      %930 = vmatpush1.msra.mxu0 0.0
      %931 = vmatprep.subr.mxu0 0.0
      %932 = vmatpush1.msra.mxu0 0.0
      %933 = vmatprep.subr.mxu0 0.0
      %934 = vmatpush1.msra.mxu0 0.0
      %935 = vmatprep.subr.mxu0 0.0
      %936 = vmatpush1.msra.mxu0 %v775
      %937 = vmatprep.subr.mxu0 0.0
      %938 = vmatpush1.msra.mxu0 %v774
      %939 = vmatprep.subr.mxu0 0.0
      %940 = vmatpush1.msra.mxu0 %v773
      %941 = vmatprep.subr.mxu0 0.0
      %942 = vmatpush1.msra.mxu0 %v772
      %943 = vmatprep.subr.mxu0 0.0
      %944 = vmatpush2.msra.mxu0 0.0
      %945 = vmatprep.subr.mxu0 0.0
      %946 = vmatpush2.msra.mxu0 0.0
      %947 = vmatprep.subr.mxu0 0.0
      %948 = vmatpush2.msra.mxu0 0.0
      %949 = vmatprep.subr.mxu0 0.0
      %950 = vmatpush2.msra.mxu0 0.0
      %951 = vmatprep.subr.mxu0 0.0
      %952 = vmatpush2.msra.mxu0 0.0
      %953 = vmatprep.subr.mxu0 0.0
      %954 = vmatpush2.msra.mxu0 0.0
      %955 = vmatprep.subr.mxu0 0.0
      %956 = vmatpush2.msra.mxu0 0.0
      %957 = vmatprep.subr.mxu0 0.0
      %958 = vmatpush2.msra.mxu0 0.0
      %959 = vmatprep.subr.mxu0 0.0
      %960 = vmatpush2.msra.mxu0 0.0
      %961 = vmatprep.subr.mxu0 0.0
      %962 = vmatpush2.msra.mxu0 0.0
      %963 = vmatprep.subr.mxu0 0.0
      %964 = vmatpush2.msra.mxu0 0.0
      %965 = vmatprep.subr.mxu0 0.0
      %966 = vmatpush2.msra.mxu0 0.0
      %967 = vmatprep.subr.mxu0 0.0
      %968 = vmatpush2.msra.mxu0 0.0
      %969 = vmatprep.subr.mxu0 0.0
      %970 = vmatpush2.msra.mxu0 0.0
      %971 = vmatprep.subr.mxu0 0.0
      %972 = vmatpush2.msra.mxu0 0.0
      %973 = vmatprep.subr.mxu0 0.0
      %974 = vmatpush2.msra.mxu0 0.0
      %975 = vmatprep.mubr.f32.mxu0 0.0
      %976 = vmatmul.mubr.f32.gmra.mxu0 %v900
      %v977 = vpop.f32.mrf.mxu0
      %v978 = vadd.f32 %v881, %v977
      %v979 = vpop.f32.mrf.mxu0
      %980 = vmatprep.mubr.f32.mxu0 0.0
      %981 = vmatmul.mubr.f32.gmra.mxu0 %v903
      %v982 = vpop.f32.mrf.mxu0
      %v983 = vadd.f32 %v886, %v982
      %v984 = vpop.f32.mrf.mxu0
      %985 = vmatprep.mubr.f32.mxu0 0.0
      %986 = vmatmul.mubr.f32.gmra.mxu0 %v906
      %v987 = vpop.f32.mrf.mxu0
      %v988 = vadd.f32 %v891, %v987
      %v989 = vpop.f32.mrf.mxu0
      %990 = vmatprep.mubr.f32.mxu0 0.0
      %991 = vmatmul.mubr.f32.gmra.mxu0 %v909
      %v992 = vpop.f32.mrf.mxu0
      %v993 = vadd.f32 %v896, %v992
      %v994 = vpop.f32.mrf.mxu0
      %995 = vdwg.mxu0
      %s996 = scalar_lea.vmem %s7, 64
      %v997 = vld [vmem:[%s996] sm:$0xff]
      %v998 = vld [vmem:[%s996 + $0x8] sm:$0xff]
      %v999 = vld [vmem:[%s996 + $0x10] sm:$0xff]
      %v1000 = vld [vmem:[%s996 + $0x18] sm:$0xff]
      %1001 = vrot.lane.b32.xlu0 %v772, 124
      %v1002 = vpop.permute.xlu0 %1001
      %1003 = vrot.lane.b32.xlu0 %v773, 124
      %v1004 = vpop.permute.xlu0 %1003
      %1005 = vrot.lane.b32.xlu0 %v774, 124
      %v1006 = vpop.permute.xlu0 %1005
      %1007 = vrot.lane.b32.xlu0 %v775, 124
      %v1008 = vpop.permute.xlu0 %1007
      %v1014 = vsel %vm801, %v997, 0
      %v1017 = vsel %vm801, %v998, 0
      %v1020 = vsel %vm801, %v999, 0
      %v1023 = vsel %vm801, %v1000, 0
      %1025 = vmatprep.subr.mxu0 0.0
      %1026 = vmatpush1.msra.mxu0 0.0
      %1027 = vmatprep.subr.mxu0 0.0
      %1028 = vmatpush1.msra.mxu0 0.0
      %1029 = vmatprep.subr.mxu0 0.0
      %1030 = vmatpush1.msra.mxu0 0.0
      %1031 = vmatprep.subr.mxu0 0.0
      %1032 = vmatpush1.msra.mxu0 0.0
      %1033 = vmatprep.subr.mxu0 0.0
      %1034 = vmatpush1.msra.mxu0 0.0
      %1035 = vmatprep.subr.mxu0 0.0
      %1036 = vmatpush1.msra.mxu0 0.0
      %1037 = vmatprep.subr.mxu0 0.0
      %1038 = vmatpush1.msra.mxu0 0.0
      %1039 = vmatprep.subr.mxu0 0.0
      %1040 = vmatpush1.msra.mxu0 0.0
      %1041 = vmatprep.subr.mxu0 0.0
      %1042 = vmatpush1.msra.mxu0 0.0
      %1043 = vmatprep.subr.mxu0 0.0
      %1044 = vmatpush1.msra.mxu0 0.0
      %1045 = vmatprep.subr.mxu0 0.0
      %1046 = vmatpush1.msra.mxu0 0.0
      %1047 = vmatprep.subr.mxu0 0.0
      %1048 = vmatpush1.msra.mxu0 0.0
      %1049 = vmatprep.subr.mxu0 0.0
      %1050 = vmatpush1.msra.mxu0 %v1008
      %1051 = vmatprep.subr.mxu0 0.0
      %1052 = vmatpush1.msra.mxu0 %v1006
      %1053 = vmatprep.subr.mxu0 0.0
      %1054 = vmatpush1.msra.mxu0 %v1004
      %1055 = vmatprep.subr.mxu0 0.0
      %1056 = vmatpush1.msra.mxu0 %v1002
      %1057 = vmatprep.subr.mxu0 0.0
      %1058 = vmatpush2.msra.mxu0 0.0
      %1059 = vmatprep.subr.mxu0 0.0
      %1060 = vmatpush2.msra.mxu0 0.0
      %1061 = vmatprep.subr.mxu0 0.0
      %1062 = vmatpush2.msra.mxu0 0.0
      %1063 = vmatprep.subr.mxu0 0.0
      %1064 = vmatpush2.msra.mxu0 0.0
      %1065 = vmatprep.subr.mxu0 0.0
      %1066 = vmatpush2.msra.mxu0 0.0
      %1067 = vmatprep.subr.mxu0 0.0
      %1068 = vmatpush2.msra.mxu0 0.0
      %1069 = vmatprep.subr.mxu0 0.0
      %1070 = vmatpush2.msra.mxu0 0.0
      %1071 = vmatprep.subr.mxu0 0.0
      %1072 = vmatpush2.msra.mxu0 0.0
      %1073 = vmatprep.subr.mxu0 0.0
      %1074 = vmatpush2.msra.mxu0 0.0
      %1075 = vmatprep.subr.mxu0 0.0
      %1076 = vmatpush2.msra.mxu0 0.0
      %1077 = vmatprep.subr.mxu0 0.0
      %1078 = vmatpush2.msra.mxu0 0.0
      %1079 = vmatprep.subr.mxu0 0.0
      %1080 = vmatpush2.msra.mxu0 0.0
      %1081 = vmatprep.subr.mxu0 0.0
      %1082 = vmatpush2.msra.mxu0 0.0
      %1083 = vmatprep.subr.mxu0 0.0
      %1084 = vmatpush2.msra.mxu0 0.0
      %1085 = vmatprep.subr.mxu0 0.0
      %1086 = vmatpush2.msra.mxu0 0.0
      %1087 = vmatprep.subr.mxu0 0.0
      %1088 = vmatpush2.msra.mxu0 0.0
      %1089 = vmatprep.mubr.f32.mxu0 0.0
      %1090 = vmatmul.mubr.f32.gmra.mxu0 %v1014
      %v1091 = vpop.f32.mrf.mxu0
      %v1092 = vadd.f32 0.0, %v1091
      %v1093 = vpop.f32.mrf.mxu0
      %1094 = vmatprep.mubr.f32.mxu0 0.0
      %1095 = vmatmul.mubr.f32.gmra.mxu0 %v1017
      %v1096 = vpop.f32.mrf.mxu0
      %v1097 = vadd.f32 0.0, %v1096
      %v1098 = vpop.f32.mrf.mxu0
      %1099 = vmatprep.mubr.f32.mxu0 0.0
      %1100 = vmatmul.mubr.f32.gmra.mxu0 %v1020
      %v1101 = vpop.f32.mrf.mxu0
      %v1102 = vadd.f32 0.0, %v1101
      %v1103 = vpop.f32.mrf.mxu0
      %1104 = vmatprep.mubr.f32.mxu0 0.0
      %1105 = vmatmul.mubr.f32.gmra.mxu0 %v1023
      %v1106 = vpop.f32.mrf.mxu0
      %v1107 = vadd.f32 0.0, %v1106
      %v1108 = vpop.f32.mrf.mxu0
      %1109 = vdwg.mxu0
      %v1110 = vadd.f32 %v978, %v1092
      %v1111 = vadd.f32 %v983, %v1097
      %v1112 = vadd.f32 %v988, %v1102
      %v1113 = vadd.f32 %v993, %v1107
      %v1114 = vld [vmem:[%s8] sm:$0xff]
      %v1115 = vld [vmem:[%s8 + $0x8] sm:$0xff]
      %v1116 = vld [vmem:[%s8 + $0x10] sm:$0xff]
      %v1117 = vld [vmem:[%s8 + $0x18] sm:$0xff]
      %1119 = vset.pattern.permute.xlu0 0
      %1120 = vperm.xlu0 %1119, %v1114
      %v1121 = vpop.permute.xlu0 %1120
      %1124 = vset.pattern.permute.xlu0 0
      %1125 = vperm.xlu0 %1124, %v1115
      %v1126 = vpop.permute.xlu0 %1125
      %1129 = vset.pattern.permute.xlu0 0
      %1130 = vperm.xlu0 %1129, %v1116
      %v1131 = vpop.permute.xlu0 %1130
      %1134 = vset.pattern.permute.xlu0 0
      %1135 = vperm.xlu0 %1134, %v1117
      %v1136 = vpop.permute.xlu0 %1135
      %v1138 = vadd.f32 %v1110, %v1121
      %v1139 = vadd.f32 %v1111, %v1126
      %v1140 = vadd.f32 %v1112, %v1131
      %v1141 = vadd.f32 %v1113, %v1136
      %v1142 = vld [vmem:[%s9] sm:$0xff]
      %v1143 = vld [vmem:[%s9 + $0x8] sm:$0xff]
      %v1144 = vld [vmem:[%s9 + $0x10] sm:$0xff]
      %v1145 = vld [vmem:[%s9 + $0x18] sm:$0xff]
      %v1146 = vld [vmem:[%s10] sm:$0xff]
      %v1147 = vld [vmem:[%s10 + $0x8] sm:$0xff]
      %v1148 = vld [vmem:[%s10 + $0x10] sm:$0xff]
      %v1149 = vld [vmem:[%s10 + $0x18] sm:$0xff]
      %vm1150 = vcmask 998400
      %v1151 = vsel %vm1150, %v1138, 0.0
      %v1152 = vsel %vm1150, %v1139, 0.0
      %v1153 = vadd.f32 %v1151, %v1152
      %v1154 = vsel %vm1150, %v1140, 0.0
      %v1155 = vadd.f32 %v1153, %v1154
      %v1156 = vsel %vm1150, %v1141, 0.0
      %v1157 = vadd.f32 %v1155, %v1156
      %1158 = vadd.xlane.f32.xlu0 %v1157
      %v1159 = vpop.xlane.xlu0 %1158
      %v1160 = vrot.slane %v1159, 4
      %v1161 = vadd.f32 %v1159, %v1160
      %v1162 = vrot.slane %v1161, 2
      %v1163 = vadd.f32 %v1161, %v1162
      %v1164 = vrot.slane %v1163, 1
      %v1165 = vadd.f32 %v1163, %v1164
      %s1166 = vtos %v1165
      %v1167 = vstv %s1166
      %v1168 = vrcp.pop 3904.0
      %v1169 = vmul.f32 %v1167, %v1168
      %v1170 = vmul.f32 %v1138, %v1138
      %v1171 = vmul.f32 %v1139, %v1139
      %v1172 = vmul.f32 %v1140, %v1140
      %v1173 = vmul.f32 %v1141, %v1141
      %v1174 = vsel %vm1150, %v1170, 0.0
      %v1175 = vsel %vm1150, %v1171, 0.0
      %v1176 = vadd.f32 %v1174, %v1175
      %v1177 = vsel %vm1150, %v1172, 0.0
      %v1178 = vadd.f32 %v1176, %v1177
      %v1179 = vsel %vm1150, %v1173, 0.0
      %v1180 = vadd.f32 %v1178, %v1179
      %1181 = vadd.xlane.f32.xlu0 %v1180
      %v1182 = vpop.xlane.xlu0 %1181
      %v1183 = vrot.slane %v1182, 4
      %v1184 = vadd.f32 %v1182, %v1183
      %v1185 = vrot.slane %v1184, 2
      %v1186 = vadd.f32 %v1184, %v1185
      %v1187 = vrot.slane %v1186, 1
      %v1188 = vadd.f32 %v1186, %v1187
      %s1189 = vtos %v1188
      %v1190 = vstv %s1189
      %v1191 = vmul.f32 %v1190, %v1168
      %v1192 = vmul.f32 %v1169, %v1169
      %v1193 = vsub.f32 %v1191, %v1192
      %v1194 = vsub.f32 %v1138, %v1169
      %v1195 = vsub.f32 %v1139, %v1169
      %v1196 = vsub.f32 %v1140, %v1169
      %v1197 = vsub.f32 %v1141, %v1169
      %v1198 = vadd.f32 %v1193, 1e-05
      %v1199 = vrsqrt.pop %v1198
      %v1200 = vmul.f32 %v1194, %v1199
      %v1201 = vmul.f32 %v1195, %v1199
      %v1202 = vmul.f32 %v1196, %v1199
      %v1203 = vmul.f32 %v1197, %v1199
      %1205 = vset.pattern.permute.xlu0 0
      %1206 = vperm.xlu0 %1205, %v1142
      %v1207 = vpop.permute.xlu0 %1206
      %1210 = vset.pattern.permute.xlu0 0
      %1211 = vperm.xlu0 %1210, %v1143
      %v1212 = vpop.permute.xlu0 %1211
      %1215 = vset.pattern.permute.xlu0 0
      %1216 = vperm.xlu0 %1215, %v1144
      %v1217 = vpop.permute.xlu0 %1216
      %1220 = vset.pattern.permute.xlu0 0
      %1221 = vperm.xlu0 %1220, %v1145
      %v1222 = vpop.permute.xlu0 %1221
      %v1224 = vmul.f32 %v1207, %v1200
      %v1225 = vmul.f32 %v1212, %v1201
      %v1226 = vmul.f32 %v1217, %v1202
      %v1227 = vmul.f32 %v1222, %v1203
      %1229 = vset.pattern.permute.xlu0 0
      %1230 = vperm.xlu0 %1229, %v1146
      %v1231 = vpop.permute.xlu0 %1230
      %1234 = vset.pattern.permute.xlu0 0
      %1235 = vperm.xlu0 %1234, %v1147
      %v1236 = vpop.permute.xlu0 %1235
      %1239 = vset.pattern.permute.xlu0 0
      %1240 = vperm.xlu0 %1239, %v1148
      %v1241 = vpop.permute.xlu0 %1240
      %1244 = vset.pattern.permute.xlu0 0
      %1245 = vperm.xlu0 %1244, %v1149
      %v1246 = vpop.permute.xlu0 %1245
      %v1248 = vadd.f32 %v1224, %v1231
      %v1249 = vadd.f32 %v1225, %v1236
      %v1250 = vadd.f32 %v1226, %v1241
      %v1251 = vadd.f32 %v1227, %v1246
      %v1252 = vmul.f32 %v1248, 0.5
      %v1253 = vmul.f32 %v1249, 0.5
      %v1254 = vmul.f32 %v1250, 0.5
      %v1255 = vmul.f32 %v1251, 0.5
      %v1256 = vmul.f32 %v1248, 0.70710677
      %v1257 = vmul.f32 %v1249, 0.70710677
      %v1258 = vmul.f32 %v1250, 0.70710677
      %v1259 = vmul.f32 %v1251, 0.70710677
      %v1260 = verf.f32.pop %v1256
      %v1261 = verf.f32.pop %v1257
      %v1262 = verf.f32.pop %v1258
      %v1263 = verf.f32.pop %v1259
      %v1264 = vadd.f32 %v1260, 1.0
      %v1265 = vadd.f32 %v1261, 1.0
      %v1266 = vadd.f32 %v1262, 1.0
      %v1267 = vadd.f32 %v1263, 1.0
      %v1268 = vmul.f32 %v1252, %v1264
      %v1269 = vmul.f32 %v1253, %v1265
      %v1270 = vmul.f32 %v1254, %v1266
      %v1271 = vmul.f32 %v1255, %v1267
      %v1272 = vld [vmem:[%s11] sm:$0xff]
      %v1273 = vld [vmem:[%s11 + $0x8] sm:$0xff]
      %v1274 = vld [vmem:[%s12] sm:$0xff]
      %v1275 = vld [vmem:[%s12 + $0x8] sm:$0xff]
      %1277 = vset.pattern.permute.xlu0 0
      %1278 = vperm.xlu0 %1277, %v1274
      %v1279 = vpop.permute.xlu0 %1278
      %1282 = vset.pattern.permute.xlu0 0
      %1283 = vperm.xlu0 %1282, %v1275
      %v1284 = vpop.permute.xlu0 %1283
      %v1287 = vsel %vm801, %v1272, 0
      %v1290 = vsel %vm801, %v1273, 0
      %1292 = vmatprep.subr.mxu0 0.0
      %1293 = vmatpush1.msra.mxu0 0.0
      %1294 = vmatprep.subr.mxu0 0.0
      %1295 = vmatpush1.msra.mxu0 0.0
      %1296 = vmatprep.subr.mxu0 0.0
      %1297 = vmatpush1.msra.mxu0 0.0
      %1298 = vmatprep.subr.mxu0 0.0
      %1299 = vmatpush1.msra.mxu0 0.0
      %1300 = vmatprep.subr.mxu0 0.0
      %1301 = vmatpush1.msra.mxu0 0.0
      %1302 = vmatprep.subr.mxu0 0.0
      %1303 = vmatpush1.msra.mxu0 0.0
      %1304 = vmatprep.subr.mxu0 0.0
      %1305 = vmatpush1.msra.mxu0 0.0
      %1306 = vmatprep.subr.mxu0 0.0
      %1307 = vmatpush1.msra.mxu0 0.0
      %1308 = vmatprep.subr.mxu0 0.0
      %1309 = vmatpush1.msra.mxu0 0.0
      %1310 = vmatprep.subr.mxu0 0.0
      %1311 = vmatpush1.msra.mxu0 0.0
      %1312 = vmatprep.subr.mxu0 0.0
      %1313 = vmatpush1.msra.mxu0 0.0
      %1314 = vmatprep.subr.mxu0 0.0
      %1315 = vmatpush1.msra.mxu0 0.0
      %1316 = vmatprep.subr.mxu0 0.0
      %1317 = vmatpush1.msra.mxu0 %v1271
      %1318 = vmatprep.subr.mxu0 0.0
      %1319 = vmatpush1.msra.mxu0 %v1270
      %1320 = vmatprep.subr.mxu0 0.0
      %1321 = vmatpush1.msra.mxu0 %v1269
      %1322 = vmatprep.subr.mxu0 0.0
      %1323 = vmatpush1.msra.mxu0 %v1268
      %1324 = vmatprep.subr.mxu0 0.0
      %1325 = vmatpush2.msra.mxu0 0.0
      %1326 = vmatprep.subr.mxu0 0.0
      %1327 = vmatpush2.msra.mxu0 0.0
      %1328 = vmatprep.subr.mxu0 0.0
      %1329 = vmatpush2.msra.mxu0 0.0
      %1330 = vmatprep.subr.mxu0 0.0
      %1331 = vmatpush2.msra.mxu0 0.0
      %1332 = vmatprep.subr.mxu0 0.0
      %1333 = vmatpush2.msra.mxu0 0.0
      %1334 = vmatprep.subr.mxu0 0.0
      %1335 = vmatpush2.msra.mxu0 0.0
      %1336 = vmatprep.subr.mxu0 0.0
      %1337 = vmatpush2.msra.mxu0 0.0
      %1338 = vmatprep.subr.mxu0 0.0
      %1339 = vmatpush2.msra.mxu0 0.0
      %1340 = vmatprep.subr.mxu0 0.0
      %1341 = vmatpush2.msra.mxu0 0.0
      %1342 = vmatprep.subr.mxu0 0.0
      %1343 = vmatpush2.msra.mxu0 0.0
      %1344 = vmatprep.subr.mxu0 0.0
      %1345 = vmatpush2.msra.mxu0 0.0
      %1346 = vmatprep.subr.mxu0 0.0
      %1347 = vmatpush2.msra.mxu0 0.0
      %1348 = vmatprep.subr.mxu0 0.0
      %1349 = vmatpush2.msra.mxu0 0.0
      %1350 = vmatprep.subr.mxu0 0.0
      %1351 = vmatpush2.msra.mxu0 0.0
      %1352 = vmatprep.subr.mxu0 0.0
      %1353 = vmatpush2.msra.mxu0 0.0
      %1354 = vmatprep.subr.mxu0 0.0
      %1355 = vmatpush2.msra.mxu0 0.0
      %1356 = vmatprep.mubr.f32.mxu0 0.0
      %1357 = vmatmul.mubr.f32.gmra.mxu0 %v1287
      %v1358 = vpop.f32.mrf.mxu0
      %v1359 = vadd.f32 %v1279, %v1358
      %v1360 = vpop.f32.mrf.mxu0
      %1361 = vmatprep.mubr.f32.mxu0 0.0
      %1362 = vmatmul.mubr.f32.gmra.mxu0 %v1290
      %v1363 = vpop.f32.mrf.mxu0
      %v1364 = vadd.f32 %v1284, %v1363
      %v1365 = vpop.f32.mrf.mxu0
      %1366 = vdwg.mxu0
      %1369 = vrot.lane.b32.xlu0 %v441, 126
      %v1370 = vpop.permute.xlu0 %1369
      %1371 = vrot.lane.b32.xlu0 %v442, 126
      %v1372 = vpop.permute.xlu0 %1371
      %v1375 = vadd.f32 %v1359, %v1370
      %v1376 = vadd.f32 %v1364, %v1372
      %1377 = vst.msk [vmem:[%s440] sm:$0xff] %vm1150, %v1375
      %1378 = vst.msk [vmem:[%s440 + $0x8] sm:$0xff] %vm1150, %v1376
      %p1379 = scmp.lt.s32.totalorder %s24, 1
      %s1380 = scalar_select %p1379, %s24, 1
      %s1381 = smul.addr %s1380, 2
      %s1382 = smul.addr %s1381, 8
      %s1383 = scalar_lea.vmem %s13, %s1382
      // Predicated region
      $region73: #{rce_bytenet_forward.6} parent=71 // pred_check
        %p1384 = pneg %p320
      $region74: #{rce_bytenet_forward.6} parent=71 // pred_check_branch
        %1386 = sbr.rel (%p1384) target = $region76
      $region75: #{rce_bytenet_forward.6} parent=71 // pred_region
        _
      $region76: #{rce_bytenet_forward.6} parent=71 // pred_fallthru
        _
    $region72: #{rce_bytenet_forward.6} parent=5 // pred_fallthru
      _
    %p1387 = scmp.le.s32.totalorder 2, %s19
    // Predicated region
    $region77: #{rce_bytenet_forward.6} parent=5 // pred_check
      %p1388 = pneg %p1387
    $region78: #{rce_bytenet_forward.6} parent=5 // pred_check_branch
      %1390 = sbr.rel (%p1388) target = $region80
    $region79: #{rce_bytenet_forward.6} parent=5 // pred_region
      %s1391 = ssub.s32 %s19, 2
      // Predicated region
      $region81: #{rce_bytenet_forward.6} parent=79 // pred_check
        %p1392 = pneg %p326
      $region82: #{rce_bytenet_forward.6} parent=79 // pred_check_branch
        %1394 = sbr.rel (%p1392) target = $region84
      $region83: #{rce_bytenet_forward.6} parent=79 // pred_region
        %p1395 = scmp.lt.s32.totalorder %s25, 1
        %s1396 = scalar_select %p1395, %s25, 1
        %s1397 = smul.addr %s1396, 2
        %s1398 = smul.addr %s1397, 8
        %s1399 = scalar_lea.vmem %s13, %s1398
      $region84: #{rce_bytenet_forward.6} parent=79 // pred_fallthru
        _
    $region80: #{rce_bytenet_forward.6} parent=5 // pred_fallthru
      _
  $region6: #{rce_bytenet_forward.6} parent=0 // loop_footer
    %s23 = sadd.s32 1, %s19
  $region7: #{rce_bytenet_forward.6} parent=0 // loop_footer_branch
    %18 = sbr.rel target = $region3
  $region8: #{rce_bytenet_forward.6} parent=0 // loop_exit
    _

// kernel: rce_bytenet_forward.5
$region0: #{rce_bytenet_forward.5}
  #allocation0 [shape = 'u32[]', space=smem, size = 0x4, offset = 0x4, fixed_abs, tag = 'smem constant byte address 0x4 - core index']
  #allocation1 [shape = 'u32[144,128]{1,0:T(1,128)}', space=vmem, size = 0x12000, scoped, tag = 'internal scratch']
  %s0 = inlined_call_operand.vmem [shape: f32[2,16,128], index: 0, kind: input, shape index: {}]
  %s1 = inlined_call_operand.vmem [shape: f32[16,1], index: 1, kind: input, shape index: {}]
  %s2 = inlined_call_operand.vmem [shape: f32[16,1], index: 2, kind: input, shape index: {}]
  %s3 = inlined_call_operand.vmem [shape: f32[32,16], index: 3, kind: input, shape index: {}]
  %s4 = inlined_call_operand.vmem [shape: f32[32,1], index: 4, kind: input, shape index: {}]
  %s5 = inlined_call_operand.vmem [shape: f32[32,1], index: 5, kind: input, shape index: {}]
  %s6 = inlined_call_operand.vmem [shape: f32[32,1], index: 6, kind: input, shape index: {}]
  %s7 = inlined_call_operand.vmem [shape: f32[3,32,32], index: 7, kind: input, shape index: {}]
  %s8 = inlined_call_operand.vmem [shape: f32[32,1], index: 8, kind: input, shape index: {}]
  %s9 = inlined_call_operand.vmem [shape: f32[32,1], index: 9, kind: input, shape index: {}]
  %s10 = inlined_call_operand.vmem [shape: f32[32,1], index: 10, kind: input, shape index: {}]
  %s11 = inlined_call_operand.vmem [shape: f32[16,32], index: 11, kind: input, shape index: {}]
  %s12 = inlined_call_operand.vmem [shape: f32[16,1], index: 12, kind: input, shape index: {}]
  %s13 = inlined_call_operand.vmem [shape: f32[2,16,126], index: 13, kind: output, shape index: {}]
  %s14 = sld [smem:[#allocation0]]
  $region85: #{rce_bytenet_forward.5} parent=0
    _
  %s16 = ssub.s32 1, %s14
  %s17 = scalar_select 0, %s16, %s14
  loop: start=0, step=1, limit=4
  $region2: #{rce_bytenet_forward.5} parent=0 // loop_pre_header
    _
  $region3: #{rce_bytenet_forward.5} parent=0 // loop_header
    %s19 = sphi 0, %s23
    %p20 = scmp.ge.s32.totalorder %s19, 4
    %s29 = sphi 0, %s31
    %s32 = sphi 0, %s29
    %s33 = sphi 0, %s32
    %s49 = sphi 0, %s33
    %s53 = sphi 0, %s53
    %s55 = sphi 0, %s53
    %s56 = sphi 0, %s55
    %s70 = sphi 0, %s56
    %s74 = sphi 0, %s74
    %s76 = sphi 0, %s74
    %s77 = sphi 0, %s76
    %s91 = sphi 0, %s77
    %s95 = sphi 0, %s95
    %s97 = sphi 0, %s95
    %s98 = sphi 0, %s97
    %s112 = sphi 0, %s98
    %s116 = sphi 0, %s116
    %s118 = sphi 0, %s116
    %s119 = sphi 0, %s118
    %s133 = sphi 0, %s119
    %s137 = sphi 0, %s137
    %s139 = sphi 0, %s137
    %s140 = sphi 0, %s139
    %s154 = sphi 0, %s140
    %s158 = sphi 0, %s158
    %s160 = sphi 0, %s158
    %s161 = sphi 0, %s160
    %s175 = sphi 0, %s161
    %s179 = sphi 0, %s179
    %s181 = sphi 0, %s179
    %s182 = sphi 0, %s181
    %s196 = sphi 0, %s182
    %s200 = sphi 0, %s200
    %s202 = sphi 0, %s200
    %s203 = sphi 0, %s202
    %s217 = sphi 0, %s203
    %s221 = sphi 0, %s221
    %s223 = sphi 0, %s221
    %s224 = sphi 0, %s223
    %s238 = sphi 0, %s224
    %s242 = sphi 0, %s242
    %s244 = sphi 0, %s242
    %s245 = sphi 0, %s244
    %s259 = sphi 0, %s245
    %s263 = sphi 0, %s263
    %s265 = sphi 0, %s263
    %s266 = sphi 0, %s265
    %s280 = sphi 0, %s266
    %s284 = sphi 0, %s284
    %s286 = sphi 0, %s284
    %s287 = sphi 0, %s286
    %s301 = sphi 0, %s287
    %s307 = sphi 0, %s309
    %s310 = sphi 0, %s307
    %s311 = sphi 0, %s310
    %s327 = sphi 0, %s311
  $region4: #{rce_bytenet_forward.5} parent=0 // loop_header_branch
    %22 = sbr.rel (%p20) target = $region8
  $region5: #{rce_bytenet_forward.5} parent=0 // loop_body
    %s24 = ssub.s32 %s19, 1
    %s25 = ssub.s32 %s19, 2
    %s26 = sadd.s32 %s19, 1
    %s27 = ssub.s32 %s19, %s26
    %p28 = scmp.eq.s32.totalorder %s27, 0
    %s30 = sadd.s32 %s29, 1
    %s31 = scalar_select %p28, %s29, %s30
    %p34 = pneg %p28
    %p35 = scmp.eq.s32.totalorder %s19, 1
    %p36 = por %p34, %p35
    %p37 = scmp.ne.s32.totalorder %s29, %s32
    %p38 = scmp.eq.s32.totalorder %s19, 0
    %p39 = por %p37, %p38
    %p40 = scmp.ne.s32.totalorder %s29, %s32
    %p41 = scmp.eq.s32.totalorder %s24, 1
    %p42 = por %p40, %p41
    %p43 = scmp.ne.s32.totalorder %s32, %s33
    %p44 = scmp.eq.s32.totalorder %s24, 0
    %p45 = por %p43, %p44
    %p46 = scmp.ne.s32.totalorder %s32, %s33
    %p47 = scmp.eq.s32.totalorder %s25, 1
    %p48 = por %p46, %p47
    %p50 = scmp.ne.s32.totalorder %s33, %s49
    %p51 = scmp.eq.s32.totalorder %s25, 0
    %p52 = por %p50, %p51
    %s54 = sadd.s32 %s53, 1
    %p57 = scmp.eq.s32.totalorder %s19, 1
    %p58 = scmp.ne.s32.totalorder %s53, %s55
    %p59 = scmp.eq.s32.totalorder %s19, 0
    %p60 = por %p58, %p59
    %p61 = scmp.ne.s32.totalorder %s53, %s55
    %p62 = scmp.eq.s32.totalorder %s24, 1
    %p63 = por %p61, %p62
    %p64 = scmp.ne.s32.totalorder %s55, %s56
    %p65 = scmp.eq.s32.totalorder %s24, 0
    %p66 = por %p64, %p65
    %p67 = scmp.ne.s32.totalorder %s55, %s56
    %p68 = scmp.eq.s32.totalorder %s25, 1
    %p69 = por %p67, %p68
    %p71 = scmp.ne.s32.totalorder %s56, %s70
    %p72 = scmp.eq.s32.totalorder %s25, 0
    %p73 = por %p71, %p72
    %s75 = sadd.s32 %s74, 1
    %p78 = scmp.eq.s32.totalorder %s19, 1
    %p79 = scmp.ne.s32.totalorder %s74, %s76
    %p80 = scmp.eq.s32.totalorder %s19, 0
    %p81 = por %p79, %p80
    %p82 = scmp.ne.s32.totalorder %s74, %s76
    %p83 = scmp.eq.s32.totalorder %s24, 1
    %p84 = por %p82, %p83
    %p85 = scmp.ne.s32.totalorder %s76, %s77
    %p86 = scmp.eq.s32.totalorder %s24, 0
    %p87 = por %p85, %p86
    %p88 = scmp.ne.s32.totalorder %s76, %s77
    %p89 = scmp.eq.s32.totalorder %s25, 1
    %p90 = por %p88, %p89
    %p92 = scmp.ne.s32.totalorder %s77, %s91
    %p93 = scmp.eq.s32.totalorder %s25, 0
    %p94 = por %p92, %p93
    %s96 = sadd.s32 %s95, 1
    %p99 = scmp.eq.s32.totalorder %s19, 1
    %p100 = scmp.ne.s32.totalorder %s95, %s97
    %p101 = scmp.eq.s32.totalorder %s19, 0
    %p102 = por %p100, %p101
    %p103 = scmp.ne.s32.totalorder %s95, %s97
    %p104 = scmp.eq.s32.totalorder %s24, 1
    %p105 = por %p103, %p104
    %p106 = scmp.ne.s32.totalorder %s97, %s98
    %p107 = scmp.eq.s32.totalorder %s24, 0
    %p108 = por %p106, %p107
    %p109 = scmp.ne.s32.totalorder %s97, %s98
    %p110 = scmp.eq.s32.totalorder %s25, 1
    %p111 = por %p109, %p110
    %p113 = scmp.ne.s32.totalorder %s98, %s112
    %p114 = scmp.eq.s32.totalorder %s25, 0
    %p115 = por %p113, %p114
    %s117 = sadd.s32 %s116, 1
    %p120 = scmp.eq.s32.totalorder %s19, 1
    %p121 = scmp.ne.s32.totalorder %s116, %s118
    %p122 = scmp.eq.s32.totalorder %s19, 0
    %p123 = por %p121, %p122
    %p124 = scmp.ne.s32.totalorder %s116, %s118
    %p125 = scmp.eq.s32.totalorder %s24, 1
    %p126 = por %p124, %p125
    %p127 = scmp.ne.s32.totalorder %s118, %s119
    %p128 = scmp.eq.s32.totalorder %s24, 0
    %p129 = por %p127, %p128
    %p130 = scmp.ne.s32.totalorder %s118, %s119
    %p131 = scmp.eq.s32.totalorder %s25, 1
    %p132 = por %p130, %p131
    %p134 = scmp.ne.s32.totalorder %s119, %s133
    %p135 = scmp.eq.s32.totalorder %s25, 0
    %p136 = por %p134, %p135
    %s138 = sadd.s32 %s137, 1
    %p141 = scmp.eq.s32.totalorder %s19, 1
    %p142 = scmp.ne.s32.totalorder %s137, %s139
    %p143 = scmp.eq.s32.totalorder %s19, 0
    %p144 = por %p142, %p143
    %p145 = scmp.ne.s32.totalorder %s137, %s139
    %p146 = scmp.eq.s32.totalorder %s24, 1
    %p147 = por %p145, %p146
    %p148 = scmp.ne.s32.totalorder %s139, %s140
    %p149 = scmp.eq.s32.totalorder %s24, 0
    %p150 = por %p148, %p149
    %p151 = scmp.ne.s32.totalorder %s139, %s140
    %p152 = scmp.eq.s32.totalorder %s25, 1
    %p153 = por %p151, %p152
    %p155 = scmp.ne.s32.totalorder %s140, %s154
    %p156 = scmp.eq.s32.totalorder %s25, 0
    %p157 = por %p155, %p156
    %s159 = sadd.s32 %s158, 1
    %p162 = scmp.eq.s32.totalorder %s19, 1
    %p163 = scmp.ne.s32.totalorder %s158, %s160
    %p164 = scmp.eq.s32.totalorder %s19, 0
    %p165 = por %p163, %p164
    %p166 = scmp.ne.s32.totalorder %s158, %s160
    %p167 = scmp.eq.s32.totalorder %s24, 1
    %p168 = por %p166, %p167
    %p169 = scmp.ne.s32.totalorder %s160, %s161
    %p170 = scmp.eq.s32.totalorder %s24, 0
    %p171 = por %p169, %p170
    %p172 = scmp.ne.s32.totalorder %s160, %s161
    %p173 = scmp.eq.s32.totalorder %s25, 1
    %p174 = por %p172, %p173
    %p176 = scmp.ne.s32.totalorder %s161, %s175
    %p177 = scmp.eq.s32.totalorder %s25, 0
    %p178 = por %p176, %p177
    %s180 = sadd.s32 %s179, 1
    %p183 = scmp.eq.s32.totalorder %s19, 1
    %p184 = scmp.ne.s32.totalorder %s179, %s181
    %p185 = scmp.eq.s32.totalorder %s19, 0
    %p186 = por %p184, %p185
    %p187 = scmp.ne.s32.totalorder %s179, %s181
    %p188 = scmp.eq.s32.totalorder %s24, 1
    %p189 = por %p187, %p188
    %p190 = scmp.ne.s32.totalorder %s181, %s182
    %p191 = scmp.eq.s32.totalorder %s24, 0
    %p192 = por %p190, %p191
    %p193 = scmp.ne.s32.totalorder %s181, %s182
    %p194 = scmp.eq.s32.totalorder %s25, 1
    %p195 = por %p193, %p194
    %p197 = scmp.ne.s32.totalorder %s182, %s196
    %p198 = scmp.eq.s32.totalorder %s25, 0
    %p199 = por %p197, %p198
    %s201 = sadd.s32 %s200, 1
    %p204 = scmp.eq.s32.totalorder %s19, 1
    %p205 = scmp.ne.s32.totalorder %s200, %s202
    %p206 = scmp.eq.s32.totalorder %s19, 0
    %p207 = por %p205, %p206
    %p208 = scmp.ne.s32.totalorder %s200, %s202
    %p209 = scmp.eq.s32.totalorder %s24, 1
    %p210 = por %p208, %p209
    %p211 = scmp.ne.s32.totalorder %s202, %s203
    %p212 = scmp.eq.s32.totalorder %s24, 0
    %p213 = por %p211, %p212
    %p214 = scmp.ne.s32.totalorder %s202, %s203
    %p215 = scmp.eq.s32.totalorder %s25, 1
    %p216 = por %p214, %p215
    %p218 = scmp.ne.s32.totalorder %s203, %s217
    %p219 = scmp.eq.s32.totalorder %s25, 0
    %p220 = por %p218, %p219
    %s222 = sadd.s32 %s221, 1
    %p225 = scmp.eq.s32.totalorder %s19, 1
    %p226 = scmp.ne.s32.totalorder %s221, %s223
    %p227 = scmp.eq.s32.totalorder %s19, 0
    %p228 = por %p226, %p227
    %p229 = scmp.ne.s32.totalorder %s221, %s223
    %p230 = scmp.eq.s32.totalorder %s24, 1
    %p231 = por %p229, %p230
    %p232 = scmp.ne.s32.totalorder %s223, %s224
    %p233 = scmp.eq.s32.totalorder %s24, 0
    %p234 = por %p232, %p233
    %p235 = scmp.ne.s32.totalorder %s223, %s224
    %p236 = scmp.eq.s32.totalorder %s25, 1
    %p237 = por %p235, %p236
    %p239 = scmp.ne.s32.totalorder %s224, %s238
    %p240 = scmp.eq.s32.totalorder %s25, 0
    %p241 = por %p239, %p240
    %s243 = sadd.s32 %s242, 1
    %p246 = scmp.eq.s32.totalorder %s19, 1
    %p247 = scmp.ne.s32.totalorder %s242, %s244
    %p248 = scmp.eq.s32.totalorder %s19, 0
    %p249 = por %p247, %p248
    %p250 = scmp.ne.s32.totalorder %s242, %s244
    %p251 = scmp.eq.s32.totalorder %s24, 1
    %p252 = por %p250, %p251
    %p253 = scmp.ne.s32.totalorder %s244, %s245
    %p254 = scmp.eq.s32.totalorder %s24, 0
    %p255 = por %p253, %p254
    %p256 = scmp.ne.s32.totalorder %s244, %s245
    %p257 = scmp.eq.s32.totalorder %s25, 1
    %p258 = por %p256, %p257
    %p260 = scmp.ne.s32.totalorder %s245, %s259
    %p261 = scmp.eq.s32.totalorder %s25, 0
    %p262 = por %p260, %p261
    %s264 = sadd.s32 %s263, 1
    %p267 = scmp.eq.s32.totalorder %s19, 1
    %p268 = scmp.ne.s32.totalorder %s263, %s265
    %p269 = scmp.eq.s32.totalorder %s19, 0
    %p270 = por %p268, %p269
    %p271 = scmp.ne.s32.totalorder %s263, %s265
    %p272 = scmp.eq.s32.totalorder %s24, 1
    %p273 = por %p271, %p272
    %p274 = scmp.ne.s32.totalorder %s265, %s266
    %p275 = scmp.eq.s32.totalorder %s24, 0
    %p276 = por %p274, %p275
    %p277 = scmp.ne.s32.totalorder %s265, %s266
    %p278 = scmp.eq.s32.totalorder %s25, 1
    %p279 = por %p277, %p278
    %p281 = scmp.ne.s32.totalorder %s266, %s280
    %p282 = scmp.eq.s32.totalorder %s25, 0
    %p283 = por %p281, %p282
    %s285 = sadd.s32 %s284, 1
    %p288 = scmp.eq.s32.totalorder %s19, 1
    %p289 = scmp.ne.s32.totalorder %s284, %s286
    %p290 = scmp.eq.s32.totalorder %s19, 0
    %p291 = por %p289, %p290
    %p292 = scmp.ne.s32.totalorder %s284, %s286
    %p293 = scmp.eq.s32.totalorder %s24, 1
    %p294 = por %p292, %p293
    %p295 = scmp.ne.s32.totalorder %s286, %s287
    %p296 = scmp.eq.s32.totalorder %s24, 0
    %p297 = por %p295, %p296
    %p298 = scmp.ne.s32.totalorder %s286, %s287
    %p299 = scmp.eq.s32.totalorder %s25, 1
    %p300 = por %p298, %p299
    %p302 = scmp.ne.s32.totalorder %s287, %s301
    %p303 = scmp.eq.s32.totalorder %s25, 0
    %p304 = por %p302, %p303
    %s305 = ssub.s32 %s19, %s26
    %p306 = scmp.eq.s32.totalorder %s305, 0
    %s308 = sadd.s32 %s307, 1
    %s309 = scalar_select %p306, %s307, %s308
    %p312 = pneg %p306
    %p313 = scmp.eq.s32.totalorder %s19, 1
    %p314 = por %p312, %p313
    %p315 = scmp.ne.s32.totalorder %s307, %s310
    %p316 = scmp.eq.s32.totalorder %s19, 0
    %p317 = por %p315, %p316
    %p318 = scmp.ne.s32.totalorder %s307, %s310
    %p319 = scmp.eq.s32.totalorder %s24, 1
    %p320 = por %p318, %p319
    %p321 = scmp.ne.s32.totalorder %s310, %s311
    %p322 = scmp.eq.s32.totalorder %s24, 0
    %p323 = por %p321, %p322
    %p324 = scmp.ne.s32.totalorder %s310, %s311
    %p325 = scmp.eq.s32.totalorder %s25, 1
    %p326 = por %p324, %p325
    %p328 = scmp.ne.s32.totalorder %s311, %s327
    %p329 = scmp.eq.s32.totalorder %s25, 0
    %p330 = por %p328, %p329
    %p331 = scmp.le.s32.totalorder 1, %s19
    %p332 = scmp.lt.s32.totalorder %s19, 3
    %p333 = pnand %p331, %p332
    %p334 = pneg %p333
    // Predicated region
    $region9: #{rce_bytenet_forward.5} parent=5 // pred_check
      _
    $region10: #{rce_bytenet_forward.5} parent=5 // pred_check_branch
      %336 = sbr.rel (%p333) target = $region12
    $region11: #{rce_bytenet_forward.5} parent=5 // pred_region
      %s337 = ssub.s32 %s19, 1
      // Predicated region
      $region13: #{rce_bytenet_forward.5} parent=11 // pred_check
        %p338 = pneg %p66
      $region14: #{rce_bytenet_forward.5} parent=11 // pred_check_branch
        %340 = sbr.rel (%p338) target = $region16
      $region15: #{rce_bytenet_forward.5} parent=11 // pred_region
        _
      $region16: #{rce_bytenet_forward.5} parent=11 // pred_fallthru
        _
      // Predicated region
      $region17: #{rce_bytenet_forward.5} parent=11 // pred_check
        %p341 = pneg %p87
      $region18: #{rce_bytenet_forward.5} parent=11 // pred_check_branch
        %343 = sbr.rel (%p341) target = $region20
      $region19: #{rce_bytenet_forward.5} parent=11 // pred_region
        _
      $region20: #{rce_bytenet_forward.5} parent=11 // pred_fallthru
        _
      // Predicated region
      $region21: #{rce_bytenet_forward.5} parent=11 // pred_check
        %p344 = pneg %p108
      $region22: #{rce_bytenet_forward.5} parent=11 // pred_check_branch
        %346 = sbr.rel (%p344) target = $region24
      $region23: #{rce_bytenet_forward.5} parent=11 // pred_region
        _
      $region24: #{rce_bytenet_forward.5} parent=11 // pred_fallthru
        _
      // Predicated region
      $region25: #{rce_bytenet_forward.5} parent=11 // pred_check
        %p347 = pneg %p129
      $region26: #{rce_bytenet_forward.5} parent=11 // pred_check_branch
        %349 = sbr.rel (%p347) target = $region28
      $region27: #{rce_bytenet_forward.5} parent=11 // pred_region
        _
      $region28: #{rce_bytenet_forward.5} parent=11 // pred_fallthru
        _
      // Predicated region
      $region29: #{rce_bytenet_forward.5} parent=11 // pred_check
        %p350 = pneg %p150
      $region30: #{rce_bytenet_forward.5} parent=11 // pred_check_branch
        %352 = sbr.rel (%p350) target = $region32
      $region31: #{rce_bytenet_forward.5} parent=11 // pred_region
        _
      $region32: #{rce_bytenet_forward.5} parent=11 // pred_fallthru
        _
      // Predicated region
      $region33: #{rce_bytenet_forward.5} parent=11 // pred_check
        %p353 = pneg %p171
      $region34: #{rce_bytenet_forward.5} parent=11 // pred_check_branch
        %355 = sbr.rel (%p353) target = $region36
      $region35: #{rce_bytenet_forward.5} parent=11 // pred_region
        _
      $region36: #{rce_bytenet_forward.5} parent=11 // pred_fallthru
        _
      // Predicated region
      $region37: #{rce_bytenet_forward.5} parent=11 // pred_check
        %p356 = pneg %p192
      $region38: #{rce_bytenet_forward.5} parent=11 // pred_check_branch
        %358 = sbr.rel (%p356) target = $region40
      $region39: #{rce_bytenet_forward.5} parent=11 // pred_region
        _
      $region40: #{rce_bytenet_forward.5} parent=11 // pred_fallthru
        _
      // Predicated region
      $region41: #{rce_bytenet_forward.5} parent=11 // pred_check
        %p359 = pneg %p213
      $region42: #{rce_bytenet_forward.5} parent=11 // pred_check_branch
        %361 = sbr.rel (%p359) target = $region44
      $region43: #{rce_bytenet_forward.5} parent=11 // pred_region
        _
      $region44: #{rce_bytenet_forward.5} parent=11 // pred_fallthru
        _
      // Predicated region
      $region45: #{rce_bytenet_forward.5} parent=11 // pred_check
        %p362 = pneg %p234
      $region46: #{rce_bytenet_forward.5} parent=11 // pred_check_branch
        %364 = sbr.rel (%p362) target = $region48
      $region47: #{rce_bytenet_forward.5} parent=11 // pred_region
        _
      $region48: #{rce_bytenet_forward.5} parent=11 // pred_fallthru
        _
      // Predicated region
      $region49: #{rce_bytenet_forward.5} parent=11 // pred_check
        %p365 = pneg %p255
      $region50: #{rce_bytenet_forward.5} parent=11 // pred_check_branch
        %367 = sbr.rel (%p365) target = $region52
      $region51: #{rce_bytenet_forward.5} parent=11 // pred_region
        _
      $region52: #{rce_bytenet_forward.5} parent=11 // pred_fallthru
        _
      // Predicated region
      $region53: #{rce_bytenet_forward.5} parent=11 // pred_check
        %p368 = pneg %p276
      $region54: #{rce_bytenet_forward.5} parent=11 // pred_check_branch
        %370 = sbr.rel (%p368) target = $region56
      $region55: #{rce_bytenet_forward.5} parent=11 // pred_region
        _
      $region56: #{rce_bytenet_forward.5} parent=11 // pred_fallthru
        _
      // Predicated region
      $region57: #{rce_bytenet_forward.5} parent=11 // pred_check
        %p371 = pneg %p297
      $region58: #{rce_bytenet_forward.5} parent=11 // pred_check_branch
        %373 = sbr.rel (%p371) target = $region60
      $region59: #{rce_bytenet_forward.5} parent=11 // pred_region
        _
      $region60: #{rce_bytenet_forward.5} parent=11 // pred_fallthru
        _
    $region12: #{rce_bytenet_forward.5} parent=5 // pred_fallthru
      _
    %p374 = scmp.lt.s32.totalorder %s19, 2
    // Predicated region
    $region61: #{rce_bytenet_forward.5} parent=5 // pred_check
      %p375 = pneg %p374
    $region62: #{rce_bytenet_forward.5} parent=5 // pred_check_branch
      %377 = sbr.rel (%p375) target = $region64
    $region63: #{rce_bytenet_forward.5} parent=5 // pred_region
      // Predicated region
      $region65: #{rce_bytenet_forward.5} parent=63 // pred_check
        %p378 = pneg %p39
      $region66: #{rce_bytenet_forward.5} parent=63 // pred_check_branch
        %380 = sbr.rel (%p378) target = $region68
      $region67: #{rce_bytenet_forward.5} parent=63 // pred_region
        %p381 = scmp.lt.s32.totalorder %s19, 1
        %s382 = scalar_select %p381, %s19, 1
        %s383 = smul.addr %s382, 2
        %s384 = smul.addr %s383, 8
        %s385 = scalar_lea.vmem %s0, %s384
      $region68: #{rce_bytenet_forward.5} parent=63 // pred_fallthru
        _
    $region64: #{rce_bytenet_forward.5} parent=5 // pred_fallthru
      _
    %p386 = scmp.le.s32.totalorder 1, %s19
    %p387 = scmp.lt.s32.totalorder %s19, 3
    %p388 = pnand %p386, %p387
    %p389 = pneg %p388
    // Predicated region
    $region69: #{rce_bytenet_forward.5} parent=5 // pred_check
      _
    $region70: #{rce_bytenet_forward.5} parent=5 // pred_check_branch
      %391 = sbr.rel (%p388) target = $region72
    $region71: #{rce_bytenet_forward.5} parent=5 // pred_region
      %s392 = ssub.s32 %s19, 1
      %p393 = scmp.lt.s32.totalorder %s24, 1
      %s394 = scalar_select %p393, %s24, 1
      %s395 = smul.addr %s394, 2
      %s396 = smul.addr %s395, 8
      %s397 = scalar_lea.vmem %s0, %s396
      %p398 = pneg %p45
      %p399 = pneg %p42
      %p400 = pneg %p66
      %p401 = pneg %p63
      %p402 = pneg %p87
      %p403 = pneg %p84
      %p404 = pneg %p108
      %p405 = pneg %p105
      %p406 = pneg %p129
      %p407 = pneg %p126
      %p408 = pneg %p150
      %p409 = pneg %p147
      %p410 = pneg %p171
      %p411 = pneg %p168
      %p412 = pneg %p192
      %p413 = pneg %p189
      %p414 = pneg %p213
      %p415 = pneg %p210
      %p416 = pneg %p234
      %p417 = pneg %p231
      %p418 = pneg %p255
      %p419 = pneg %p252
      %p420 = pneg %p276
      %p421 = pneg %p273
      %p422 = pneg %p297
      %p423 = pneg %p294
      %p424 = pneg %p323
      %p425 = pneg %p320
      %p426 = scmp.lt.s32.totalorder %s24, 1
      %s427 = scalar_select %p426, %s24, 1
      %s428 = smul.addr %s427, 2
      %s429 = smul.addr %s428, 8
      %s430 = scalar_lea.vmem %s13, %s429
      %p431 = scmp.lt.s32.totalorder %s24, 1
      %s432 = scalar_select %p431, %s24, 1
      %s433 = smul.addr %s432, 2
      %s434 = smul.addr %s433, 8
      %s435 = scalar_lea.vmem %s0, %s434
      %p436 = scmp.lt.s32.totalorder %s24, 1
      %s437 = scalar_select %p436, %s24, 1
      %s438 = smul.addr %s437, 2
      %s439 = smul.addr %s438, 8
      %s440 = scalar_lea.vmem %s13, %s439
      %v441 = vld [vmem:[%s435] sm:$0xff]
      %v442 = vld [vmem:[%s435 + $0x8] sm:$0xff]
      %v443 = vld [vmem:[%s1] sm:$0xff]
      %v444 = vld [vmem:[%s1 + $0x8] sm:$0xff]
      %v445 = vld [vmem:[%s2] sm:$0xff]
      %v446 = vld [vmem:[%s2 + $0x8] sm:$0xff]
      %v447 = vadd.f32 %v441, %v442
      %448 = vadd.xlane.f32.xlu0 %v447
      %v449 = vpop.xlane.xlu0 %448
      %v450 = vrot.slane %v449, 4
      %v451 = vadd.f32 %v449, %v450
      %v452 = vrot.slane %v451, 2
      %v453 = vadd.f32 %v451, %v452
      %v454 = vrot.slane %v453, 1
      %v455 = vadd.f32 %v453, %v454
      %s456 = vtos %v455
      %v457 = vstv %s456
      %v458 = vrcp.pop 2048.0
      %v459 = vmul.f32 %v457, %v458
      %v460 = vmul.f32 %v441, %v441
      %v461 = vmul.f32 %v442, %v442
      %v462 = vadd.f32 %v460, %v461
      %463 = vadd.xlane.f32.xlu0 %v462
      %v464 = vpop.xlane.xlu0 %463
      %v465 = vrot.slane %v464, 4
      %v466 = vadd.f32 %v464, %v465
      %v467 = vrot.slane %v466, 2
      %v468 = vadd.f32 %v466, %v467
      %v469 = vrot.slane %v468, 1
      %v470 = vadd.f32 %v468, %v469
      %s471 = vtos %v470
      %v472 = vstv %s471
      %v473 = vmul.f32 %v472, %v458
      %v474 = vmul.f32 %v459, %v459
      %v475 = vsub.f32 %v473, %v474
      %v476 = vsub.f32 %v441, %v459
      %v477 = vsub.f32 %v442, %v459
      %v478 = vadd.f32 %v475, 1e-05
      %v479 = vrsqrt.pop %v478
      %v480 = vmul.f32 %v476, %v479
      %v481 = vmul.f32 %v477, %v479
      %483 = vset.pattern.permute.xlu0 0
      %484 = vperm.xlu0 %483, %v443
      %v485 = vpop.permute.xlu0 %484
      %488 = vset.pattern.permute.xlu0 0
      %489 = vperm.xlu0 %488, %v444
      %v490 = vpop.permute.xlu0 %489
      %v492 = vmul.f32 %v485, %v480
      %v493 = vmul.f32 %v490, %v481
      %495 = vset.pattern.permute.xlu0 0
      %496 = vperm.xlu0 %495, %v445
      %v497 = vpop.permute.xlu0 %496
      %500 = vset.pattern.permute.xlu0 0
      %501 = vperm.xlu0 %500, %v446
      %v502 = vpop.permute.xlu0 %501
      %v504 = vadd.f32 %v492, %v497
      %v505 = vadd.f32 %v493, %v502
      %v506 = vmul.f32 %v504, 0.5
      %v507 = vmul.f32 %v505, 0.5
      %v508 = vmul.f32 %v504, 0.70710677
      %v509 = vmul.f32 %v505, 0.70710677
      %v510 = verf.f32.pop %v508
      %v511 = verf.f32.pop %v509
      %v512 = vadd.f32 %v510, 1.0
      %v513 = vadd.f32 %v511, 1.0
      %v514 = vmul.f32 %v506, %v512
      %v515 = vmul.f32 %v507, %v513
      %v516 = vld [vmem:[%s3] sm:$0xff]
      %v517 = vld [vmem:[%s3 + $0x8] sm:$0xff]
      %v518 = vld [vmem:[%s3 + $0x10] sm:$0xff]
      %v519 = vld [vmem:[%s3 + $0x18] sm:$0xff]
      %v520 = vld [vmem:[%s4] sm:$0xff]
      %v521 = vld [vmem:[%s4 + $0x8] sm:$0xff]
      %v522 = vld [vmem:[%s4 + $0x10] sm:$0xff]
      %v523 = vld [vmem:[%s4 + $0x18] sm:$0xff]
      %525 = vset.pattern.permute.xlu0 0
      %526 = vperm.xlu0 %525, %v520
      %v527 = vpop.permute.xlu0 %526
      %530 = vset.pattern.permute.xlu0 0
      %531 = vperm.xlu0 %530, %v521
      %v532 = vpop.permute.xlu0 %531
      %535 = vset.pattern.permute.xlu0 0
      %536 = vperm.xlu0 %535, %v522
      %v537 = vpop.permute.xlu0 %536
      %540 = vset.pattern.permute.xlu0 0
      %541 = vperm.xlu0 %540, %v523
      %v542 = vpop.permute.xlu0 %541
      %vm544 = vcmask 130048
      %v546 = vsel %vm544, %v516, 0
      %v549 = vsel %vm544, %v517, 0
      %v552 = vsel %vm544, %v518, 0
      %v555 = vsel %vm544, %v519, 0
      %557 = vmatprep.subr.mxu0 0.0
      %558 = vmatpush1.msra.mxu0 0.0
      %559 = vmatprep.subr.mxu0 0.0
      %560 = vmatpush1.msra.mxu0 0.0
      %561 = vmatprep.subr.mxu0 0.0
      %562 = vmatpush1.msra.mxu0 0.0
      %563 = vmatprep.subr.mxu0 0.0
      %564 = vmatpush1.msra.mxu0 0.0
      %565 = vmatprep.subr.mxu0 0.0
      %566 = vmatpush1.msra.mxu0 0.0
      %567 = vmatprep.subr.mxu0 0.0
      %568 = vmatpush1.msra.mxu0 0.0
      %569 = vmatprep.subr.mxu0 0.0
      %570 = vmatpush1.msra.mxu0 0.0
      %571 = vmatprep.subr.mxu0 0.0
      %572 = vmatpush1.msra.mxu0 0.0
      %573 = vmatprep.subr.mxu0 0.0
      %574 = vmatpush1.msra.mxu0 0.0
      %575 = vmatprep.subr.mxu0 0.0
      %576 = vmatpush1.msra.mxu0 0.0
      %577 = vmatprep.subr.mxu0 0.0
      %578 = vmatpush1.msra.mxu0 0.0
      %579 = vmatprep.subr.mxu0 0.0
      %580 = vmatpush1.msra.mxu0 0.0
      %581 = vmatprep.subr.mxu0 0.0
      %582 = vmatpush1.msra.mxu0 0.0
      %583 = vmatprep.subr.mxu0 0.0
      %584 = vmatpush1.msra.mxu0 0.0
      %585 = vmatprep.subr.mxu0 0.0
      %586 = vmatpush1.msra.mxu0 %v515
      %587 = vmatprep.subr.mxu0 0.0
      %588 = vmatpush1.msra.mxu0 %v514
      %589 = vmatprep.subr.mxu0 0.0
      %590 = vmatpush2.msra.mxu0 0.0
      %591 = vmatprep.subr.mxu0 0.0
      %592 = vmatpush2.msra.mxu0 0.0
      %593 = vmatprep.subr.mxu0 0.0
      %594 = vmatpush2.msra.mxu0 0.0
      %595 = vmatprep.subr.mxu0 0.0
      %596 = vmatpush2.msra.mxu0 0.0
      %597 = vmatprep.subr.mxu0 0.0
      %598 = vmatpush2.msra.mxu0 0.0
      %599 = vmatprep.subr.mxu0 0.0
      %600 = vmatpush2.msra.mxu0 0.0
      %601 = vmatprep.subr.mxu0 0.0
      %602 = vmatpush2.msra.mxu0 0.0
      %603 = vmatprep.subr.mxu0 0.0
      %604 = vmatpush2.msra.mxu0 0.0
      %605 = vmatprep.subr.mxu0 0.0
      %606 = vmatpush2.msra.mxu0 0.0
      %607 = vmatprep.subr.mxu0 0.0
      %608 = vmatpush2.msra.mxu0 0.0
      %609 = vmatprep.subr.mxu0 0.0
      %610 = vmatpush2.msra.mxu0 0.0
      %611 = vmatprep.subr.mxu0 0.0
      %612 = vmatpush2.msra.mxu0 0.0
      %613 = vmatprep.subr.mxu0 0.0
      %614 = vmatpush2.msra.mxu0 0.0
      %615 = vmatprep.subr.mxu0 0.0
      %616 = vmatpush2.msra.mxu0 0.0
      %617 = vmatprep.subr.mxu0 0.0
      %618 = vmatpush2.msra.mxu0 0.0
      %619 = vmatprep.subr.mxu0 0.0
      %620 = vmatpush2.msra.mxu0 0.0
      %621 = vmatprep.mubr.f32.mxu0 0.0
      %622 = vmatmul.mubr.f32.gmra.mxu0 %v546
      %v623 = vpop.f32.mrf.mxu0
      %v624 = vadd.f32 %v527, %v623
      %v625 = vpop.f32.mrf.mxu0
      %626 = vmatprep.mubr.f32.mxu0 0.0
      %627 = vmatmul.mubr.f32.gmra.mxu0 %v549
      %v628 = vpop.f32.mrf.mxu0
      %v629 = vadd.f32 %v532, %v628
      %v630 = vpop.f32.mrf.mxu0
      %631 = vmatprep.mubr.f32.mxu0 0.0
      %632 = vmatmul.mubr.f32.gmra.mxu0 %v552
      %v633 = vpop.f32.mrf.mxu0
      %v634 = vadd.f32 %v537, %v633
      %v635 = vpop.f32.mrf.mxu0
      %636 = vmatprep.mubr.f32.mxu0 0.0
      %637 = vmatmul.mubr.f32.gmra.mxu0 %v555
      %v638 = vpop.f32.mrf.mxu0
      %v639 = vadd.f32 %v542, %v638
      %v640 = vpop.f32.mrf.mxu0
      %641 = vdwg.mxu0
      %v642 = vld [vmem:[%s5] sm:$0xff]
      %v643 = vld [vmem:[%s5 + $0x8] sm:$0xff]
      %v644 = vld [vmem:[%s5 + $0x10] sm:$0xff]
      %v645 = vld [vmem:[%s5 + $0x18] sm:$0xff]
      %v646 = vld [vmem:[%s6] sm:$0xff]
      %v647 = vld [vmem:[%s6 + $0x8] sm:$0xff]
      %v648 = vld [vmem:[%s6 + $0x10] sm:$0xff]
      %v649 = vld [vmem:[%s6 + $0x18] sm:$0xff]
      %v650 = vadd.f32 %v624, %v629
      %v651 = vadd.f32 %v650, %v634
      %v652 = vadd.f32 %v651, %v639
      %653 = vadd.xlane.f32.xlu0 %v652
      %v654 = vpop.xlane.xlu0 %653
      %v655 = vrot.slane %v654, 4
      %v656 = vadd.f32 %v654, %v655
      %v657 = vrot.slane %v656, 2
      %v658 = vadd.f32 %v656, %v657
      %v659 = vrot.slane %v658, 1
      %v660 = vadd.f32 %v658, %v659
      %s661 = vtos %v660
      %v662 = vstv %s661
      %v663 = vrcp.pop 4096.0
      %v664 = vmul.f32 %v662, %v663
      %v665 = vmul.f32 %v624, %v624
      %v666 = vmul.f32 %v629, %v629
      %v667 = vmul.f32 %v634, %v634
      %v668 = vmul.f32 %v639, %v639
      %v669 = vadd.f32 %v665, %v666
      %v670 = vadd.f32 %v669, %v667
      %v671 = vadd.f32 %v670, %v668
      %672 = vadd.xlane.f32.xlu0 %v671
      %v673 = vpop.xlane.xlu0 %672
      %v674 = vrot.slane %v673, 4
      %v675 = vadd.f32 %v673, %v674
      %v676 = vrot.slane %v675, 2
      %v677 = vadd.f32 %v675, %v676
      %v678 = vrot.slane %v677, 1
      %v679 = vadd.f32 %v677, %v678
      %s680 = vtos %v679
      %v681 = vstv %s680
      %v682 = vmul.f32 %v681, %v663
      %v683 = vmul.f32 %v664, %v664
      %v684 = vsub.f32 %v682, %v683
      %v685 = vsub.f32 %v624, %v664
      %v686 = vsub.f32 %v629, %v664
      %v687 = vsub.f32 %v634, %v664
      %v688 = vsub.f32 %v639, %v664
      %v689 = vadd.f32 %v684, 1e-05
      %v690 = vrsqrt.pop %v689
      %v691 = vmul.f32 %v685, %v690
      %v692 = vmul.f32 %v686, %v690
      %v693 = vmul.f32 %v687, %v690
      %v694 = vmul.f32 %v688, %v690
      %696 = vset.pattern.permute.xlu0 0
      %697 = vperm.xlu0 %696, %v642
      %v698 = vpop.permute.xlu0 %697
      %701 = vset.pattern.permute.xlu0 0
      %702 = vperm.xlu0 %701, %v643
      %v703 = vpop.permute.xlu0 %702
      %706 = vset.pattern.permute.xlu0 0
      %707 = vperm.xlu0 %706, %v644
      %v708 = vpop.permute.xlu0 %707
      %711 = vset.pattern.permute.xlu0 0
      %712 = vperm.xlu0 %711, %v645
      %v713 = vpop.permute.xlu0 %712
      %v715 = vmul.f32 %v698, %v691
      %v716 = vmul.f32 %v703, %v692
      %v717 = vmul.f32 %v708, %v693
      %v718 = vmul.f32 %v713, %v694
      %720 = vset.pattern.permute.xlu0 0
      %721 = vperm.xlu0 %720, %v646
      %v722 = vpop.permute.xlu0 %721
      %725 = vset.pattern.permute.xlu0 0
      %726 = vperm.xlu0 %725, %v647
      %v727 = vpop.permute.xlu0 %726
      %730 = vset.pattern.permute.xlu0 0
      %731 = vperm.xlu0 %730, %v648
      %v732 = vpop.permute.xlu0 %731
      %735 = vset.pattern.permute.xlu0 0
      %736 = vperm.xlu0 %735, %v649
      %v737 = vpop.permute.xlu0 %736
      %v739 = vadd.f32 %v715, %v722
      %v740 = vadd.f32 %v716, %v727
      %v741 = vadd.f32 %v717, %v732
      %v742 = vadd.f32 %v718, %v737
      %v743 = vmul.f32 %v739, 0.5
      %v744 = vmul.f32 %v740, 0.5
      %v745 = vmul.f32 %v741, 0.5
      %v746 = vmul.f32 %v742, 0.5
      %v747 = vmul.f32 %v739, 0.70710677
      %v748 = vmul.f32 %v740, 0.70710677
      %v749 = vmul.f32 %v741, 0.70710677
      %v750 = vmul.f32 %v742, 0.70710677
      %v751 = verf.f32.pop %v747
      %v752 = verf.f32.pop %v748
      %v753 = verf.f32.pop %v749
      %v754 = verf.f32.pop %v750
      %v755 = vadd.f32 %v751, 1.0
      %v756 = vadd.f32 %v752, 1.0
      %v757 = vadd.f32 %v753, 1.0
      %v758 = vadd.f32 %v754, 1.0
      %v759 = vmul.f32 %v743, %v755
      %v760 = vmul.f32 %v744, %v756
      %v761 = vmul.f32 %v745, %v757
      %v762 = vmul.f32 %v746, %v758
      %v763 = vld [vmem:[%s7] sm:$0xff]
      %v764 = vld [vmem:[%s7 + $0x8] sm:$0xff]
      %v765 = vld [vmem:[%s7 + $0x10] sm:$0xff]
      %v766 = vld [vmem:[%s7 + $0x18] sm:$0xff]
      %s767 = scalar_lea.vmem %s7, 32
      %v768 = vld [vmem:[%s767] sm:$0xff]
      %v769 = vld [vmem:[%s767 + $0x8] sm:$0xff]
      %v770 = vld [vmem:[%s767 + $0x10] sm:$0xff]
      %v771 = vld [vmem:[%s767 + $0x18] sm:$0xff]
      %776 = vrot.lane.b32.xlu0 %v759, 127
      %v777 = vpop.permute.xlu0 %776
      %778 = vrot.lane.b32.xlu0 %v760, 127
      %v779 = vpop.permute.xlu0 %778
      %780 = vrot.lane.b32.xlu0 %v761, 127
      %v781 = vpop.permute.xlu0 %780
      %782 = vrot.lane.b32.xlu0 %v762, 127
      %v783 = vpop.permute.xlu0 %782
      %vm788 = vcmask 261120
      %v790 = vsel %vm788, %v768, 0
      %v793 = vsel %vm788, %v769, 0
      %v796 = vsel %vm788, %v770, 0
      %v799 = vsel %vm788, %v771, 0
      %801 = vmatprep.subr.mxu0 0.0
      %802 = vmatpush1.msra.mxu0 0.0
      %803 = vmatprep.subr.mxu0 0.0
      %804 = vmatpush1.msra.mxu0 0.0
      %805 = vmatprep.subr.mxu0 0.0
      %806 = vmatpush1.msra.mxu0 0.0
      %807 = vmatprep.subr.mxu0 0.0
      %808 = vmatpush1.msra.mxu0 0.0
      %809 = vmatprep.subr.mxu0 0.0
      %810 = vmatpush1.msra.mxu0 0.0
      %811 = vmatprep.subr.mxu0 0.0
      %812 = vmatpush1.msra.mxu0 0.0
      %813 = vmatprep.subr.mxu0 0.0
      %814 = vmatpush1.msra.mxu0 0.0
      %815 = vmatprep.subr.mxu0 0.0
      %816 = vmatpush1.msra.mxu0 0.0
      %817 = vmatprep.subr.mxu0 0.0
      %818 = vmatpush1.msra.mxu0 0.0
      %819 = vmatprep.subr.mxu0 0.0
      %820 = vmatpush1.msra.mxu0 0.0
      %821 = vmatprep.subr.mxu0 0.0
      %822 = vmatpush1.msra.mxu0 0.0
      %823 = vmatprep.subr.mxu0 0.0
      %824 = vmatpush1.msra.mxu0 0.0
      %825 = vmatprep.subr.mxu0 0.0
      %826 = vmatpush1.msra.mxu0 %v783
      %827 = vmatprep.subr.mxu0 0.0
      %828 = vmatpush1.msra.mxu0 %v781
      %829 = vmatprep.subr.mxu0 0.0
      %830 = vmatpush1.msra.mxu0 %v779
      %831 = vmatprep.subr.mxu0 0.0
      %832 = vmatpush1.msra.mxu0 %v777
      %833 = vmatprep.subr.mxu0 0.0
      %834 = vmatpush2.msra.mxu0 0.0
      %835 = vmatprep.subr.mxu0 0.0
      %836 = vmatpush2.msra.mxu0 0.0
      %837 = vmatprep.subr.mxu0 0.0
      %838 = vmatpush2.msra.mxu0 0.0
      %839 = vmatprep.subr.mxu0 0.0
      %840 = vmatpush2.msra.mxu0 0.0
      %841 = vmatprep.subr.mxu0 0.0
      %842 = vmatpush2.msra.mxu0 0.0
      %843 = vmatprep.subr.mxu0 0.0
      %844 = vmatpush2.msra.mxu0 0.0
      %845 = vmatprep.subr.mxu0 0.0
      %846 = vmatpush2.msra.mxu0 0.0
      %847 = vmatprep.subr.mxu0 0.0
      %848 = vmatpush2.msra.mxu0 0.0
      %849 = vmatprep.subr.mxu0 0.0
      %850 = vmatpush2.msra.mxu0 0.0
      %851 = vmatprep.subr.mxu0 0.0
      %852 = vmatpush2.msra.mxu0 0.0
      %853 = vmatprep.subr.mxu0 0.0
      %854 = vmatpush2.msra.mxu0 0.0
      %855 = vmatprep.subr.mxu0 0.0
      %856 = vmatpush2.msra.mxu0 0.0
      %857 = vmatprep.subr.mxu0 0.0
      %858 = vmatpush2.msra.mxu0 0.0
      %859 = vmatprep.subr.mxu0 0.0
      %860 = vmatpush2.msra.mxu0 0.0
      %861 = vmatprep.subr.mxu0 0.0
      %862 = vmatpush2.msra.mxu0 0.0
      %863 = vmatprep.subr.mxu0 0.0
      %864 = vmatpush2.msra.mxu0 0.0
      %865 = vmatprep.mubr.f32.mxu0 0.0
      %866 = vmatmul.mubr.f32.gmra.mxu0 %v790
      %v867 = vpop.f32.mrf.mxu0
      %v868 = vadd.f32 0.0, %v867
      %v869 = vpop.f32.mrf.mxu0
      %870 = vmatprep.mubr.f32.mxu0 0.0
      %871 = vmatmul.mubr.f32.gmra.mxu0 %v793
      %v872 = vpop.f32.mrf.mxu0
      %v873 = vadd.f32 0.0, %v872
      %v874 = vpop.f32.mrf.mxu0
      %875 = vmatprep.mubr.f32.mxu0 0.0
      %876 = vmatmul.mubr.f32.gmra.mxu0 %v796
      %v877 = vpop.f32.mrf.mxu0
      %v878 = vadd.f32 0.0, %v877
      %v879 = vpop.f32.mrf.mxu0
      %880 = vmatprep.mubr.f32.mxu0 0.0
      %881 = vmatmul.mubr.f32.gmra.mxu0 %v799
      %v882 = vpop.f32.mrf.mxu0
      %v883 = vadd.f32 0.0, %v882
      %v884 = vpop.f32.mrf.mxu0
      %885 = vdwg.mxu0
      %v887 = vsel %vm788, %v763, 0
      %v890 = vsel %vm788, %v764, 0
      %v893 = vsel %vm788, %v765, 0
      %v896 = vsel %vm788, %v766, 0
      %898 = vmatprep.subr.mxu0 0.0
      %899 = vmatpush1.msra.mxu0 0.0
      %900 = vmatprep.subr.mxu0 0.0
      %901 = vmatpush1.msra.mxu0 0.0
      %902 = vmatprep.subr.mxu0 0.0
      %903 = vmatpush1.msra.mxu0 0.0
      %904 = vmatprep.subr.mxu0 0.0
      %905 = vmatpush1.msra.mxu0 0.0
      %906 = vmatprep.subr.mxu0 0.0
      %907 = vmatpush1.msra.mxu0 0.0
      %908 = vmatprep.subr.mxu0 0.0
      %909 = vmatpush1.msra.mxu0 0.0
      %910 = vmatprep.subr.mxu0 0.0
      %911 = vmatpush1.msra.mxu0 0.0
      %912 = vmatprep.subr.mxu0 0.0
      %913 = vmatpush1.msra.mxu0 0.0
      %914 = vmatprep.subr.mxu0 0.0
      %915 = vmatpush1.msra.mxu0 0.0
      %916 = vmatprep.subr.mxu0 0.0
      %917 = vmatpush1.msra.mxu0 0.0
      %918 = vmatprep.subr.mxu0 0.0
      %919 = vmatpush1.msra.mxu0 0.0
      %920 = vmatprep.subr.mxu0 0.0
      %921 = vmatpush1.msra.mxu0 0.0
      %922 = vmatprep.subr.mxu0 0.0
      %923 = vmatpush1.msra.mxu0 %v762
      %924 = vmatprep.subr.mxu0 0.0
      %925 = vmatpush1.msra.mxu0 %v761
      %926 = vmatprep.subr.mxu0 0.0
      %927 = vmatpush1.msra.mxu0 %v760
      %928 = vmatprep.subr.mxu0 0.0
      %929 = vmatpush1.msra.mxu0 %v759
      %930 = vmatprep.subr.mxu0 0.0
      %931 = vmatpush2.msra.mxu0 0.0
      %932 = vmatprep.subr.mxu0 0.0
      %933 = vmatpush2.msra.mxu0 0.0
      %934 = vmatprep.subr.mxu0 0.0
      %935 = vmatpush2.msra.mxu0 0.0
      %936 = vmatprep.subr.mxu0 0.0
      %937 = vmatpush2.msra.mxu0 0.0
      %938 = vmatprep.subr.mxu0 0.0
      %939 = vmatpush2.msra.mxu0 0.0
      %940 = vmatprep.subr.mxu0 0.0
      %941 = vmatpush2.msra.mxu0 0.0
      %942 = vmatprep.subr.mxu0 0.0
      %943 = vmatpush2.msra.mxu0 0.0
      %944 = vmatprep.subr.mxu0 0.0
      %945 = vmatpush2.msra.mxu0 0.0
      %946 = vmatprep.subr.mxu0 0.0
      %947 = vmatpush2.msra.mxu0 0.0
      %948 = vmatprep.subr.mxu0 0.0
      %949 = vmatpush2.msra.mxu0 0.0
      %950 = vmatprep.subr.mxu0 0.0
      %951 = vmatpush2.msra.mxu0 0.0
      %952 = vmatprep.subr.mxu0 0.0
      %953 = vmatpush2.msra.mxu0 0.0
      %954 = vmatprep.subr.mxu0 0.0
      %955 = vmatpush2.msra.mxu0 0.0
      %956 = vmatprep.subr.mxu0 0.0
      %957 = vmatpush2.msra.mxu0 0.0
      %958 = vmatprep.subr.mxu0 0.0
      %959 = vmatpush2.msra.mxu0 0.0
      %960 = vmatprep.subr.mxu0 0.0
      %961 = vmatpush2.msra.mxu0 0.0
      %962 = vmatprep.mubr.f32.mxu0 0.0
      %963 = vmatmul.mubr.f32.gmra.mxu0 %v887
      %v964 = vpop.f32.mrf.mxu0
      %v965 = vadd.f32 %v868, %v964
      %v966 = vpop.f32.mrf.mxu0
      %967 = vmatprep.mubr.f32.mxu0 0.0
      %968 = vmatmul.mubr.f32.gmra.mxu0 %v890
      %v969 = vpop.f32.mrf.mxu0
      %v970 = vadd.f32 %v873, %v969
      %v971 = vpop.f32.mrf.mxu0
      %972 = vmatprep.mubr.f32.mxu0 0.0
      %973 = vmatmul.mubr.f32.gmra.mxu0 %v893
      %v974 = vpop.f32.mrf.mxu0
      %v975 = vadd.f32 %v878, %v974
      %v976 = vpop.f32.mrf.mxu0
      %977 = vmatprep.mubr.f32.mxu0 0.0
      %978 = vmatmul.mubr.f32.gmra.mxu0 %v896
      %v979 = vpop.f32.mrf.mxu0
      %v980 = vadd.f32 %v883, %v979
      %v981 = vpop.f32.mrf.mxu0
      %982 = vdwg.mxu0
      %s983 = scalar_lea.vmem %s7, 64
      %v984 = vld [vmem:[%s983] sm:$0xff]
      %v985 = vld [vmem:[%s983 + $0x8] sm:$0xff]
      %v986 = vld [vmem:[%s983 + $0x10] sm:$0xff]
      %v987 = vld [vmem:[%s983 + $0x18] sm:$0xff]
      %988 = vrot.lane.b32.xlu0 %v759, 126
      %v989 = vpop.permute.xlu0 %988
      %990 = vrot.lane.b32.xlu0 %v760, 126
      %v991 = vpop.permute.xlu0 %990
      %992 = vrot.lane.b32.xlu0 %v761, 126
      %v993 = vpop.permute.xlu0 %992
      %994 = vrot.lane.b32.xlu0 %v762, 126
      %v995 = vpop.permute.xlu0 %994
      %v1001 = vsel %vm788, %v984, 0
      %v1004 = vsel %vm788, %v985, 0
      %v1007 = vsel %vm788, %v986, 0
      %v1010 = vsel %vm788, %v987, 0
      %1012 = vmatprep.subr.mxu0 0.0
      %1013 = vmatpush1.msra.mxu0 0.0
      %1014 = vmatprep.subr.mxu0 0.0
      %1015 = vmatpush1.msra.mxu0 0.0
      %1016 = vmatprep.subr.mxu0 0.0
      %1017 = vmatpush1.msra.mxu0 0.0
      %1018 = vmatprep.subr.mxu0 0.0
      %1019 = vmatpush1.msra.mxu0 0.0
      %1020 = vmatprep.subr.mxu0 0.0
      %1021 = vmatpush1.msra.mxu0 0.0
      %1022 = vmatprep.subr.mxu0 0.0
      %1023 = vmatpush1.msra.mxu0 0.0
      %1024 = vmatprep.subr.mxu0 0.0
      %1025 = vmatpush1.msra.mxu0 0.0
      %1026 = vmatprep.subr.mxu0 0.0
      %1027 = vmatpush1.msra.mxu0 0.0
      %1028 = vmatprep.subr.mxu0 0.0
      %1029 = vmatpush1.msra.mxu0 0.0
      %1030 = vmatprep.subr.mxu0 0.0
      %1031 = vmatpush1.msra.mxu0 0.0
      %1032 = vmatprep.subr.mxu0 0.0
      %1033 = vmatpush1.msra.mxu0 0.0
      %1034 = vmatprep.subr.mxu0 0.0
      %1035 = vmatpush1.msra.mxu0 0.0
      %1036 = vmatprep.subr.mxu0 0.0
      %1037 = vmatpush1.msra.mxu0 %v995
      %1038 = vmatprep.subr.mxu0 0.0
      %1039 = vmatpush1.msra.mxu0 %v993
      %1040 = vmatprep.subr.mxu0 0.0
      %1041 = vmatpush1.msra.mxu0 %v991
      %1042 = vmatprep.subr.mxu0 0.0
      %1043 = vmatpush1.msra.mxu0 %v989
      %1044 = vmatprep.subr.mxu0 0.0
      %1045 = vmatpush2.msra.mxu0 0.0
      %1046 = vmatprep.subr.mxu0 0.0
      %1047 = vmatpush2.msra.mxu0 0.0
      %1048 = vmatprep.subr.mxu0 0.0
      %1049 = vmatpush2.msra.mxu0 0.0
      %1050 = vmatprep.subr.mxu0 0.0
      %1051 = vmatpush2.msra.mxu0 0.0
      %1052 = vmatprep.subr.mxu0 0.0
      %1053 = vmatpush2.msra.mxu0 0.0
      %1054 = vmatprep.subr.mxu0 0.0
      %1055 = vmatpush2.msra.mxu0 0.0
      %1056 = vmatprep.subr.mxu0 0.0
      %1057 = vmatpush2.msra.mxu0 0.0
      %1058 = vmatprep.subr.mxu0 0.0
      %1059 = vmatpush2.msra.mxu0 0.0
      %1060 = vmatprep.subr.mxu0 0.0
      %1061 = vmatpush2.msra.mxu0 0.0
      %1062 = vmatprep.subr.mxu0 0.0
      %1063 = vmatpush2.msra.mxu0 0.0
      %1064 = vmatprep.subr.mxu0 0.0
      %1065 = vmatpush2.msra.mxu0 0.0
      %1066 = vmatprep.subr.mxu0 0.0
      %1067 = vmatpush2.msra.mxu0 0.0
      %1068 = vmatprep.subr.mxu0 0.0
      %1069 = vmatpush2.msra.mxu0 0.0
      %1070 = vmatprep.subr.mxu0 0.0
      %1071 = vmatpush2.msra.mxu0 0.0
      %1072 = vmatprep.subr.mxu0 0.0
      %1073 = vmatpush2.msra.mxu0 0.0
      %1074 = vmatprep.subr.mxu0 0.0
      %1075 = vmatpush2.msra.mxu0 0.0
      %1076 = vmatprep.mubr.f32.mxu0 0.0
      %1077 = vmatmul.mubr.f32.gmra.mxu0 %v1001
      %v1078 = vpop.f32.mrf.mxu0
      %v1079 = vadd.f32 0.0, %v1078
      %v1080 = vpop.f32.mrf.mxu0
      %1081 = vmatprep.mubr.f32.mxu0 0.0
      %1082 = vmatmul.mubr.f32.gmra.mxu0 %v1004
      %v1083 = vpop.f32.mrf.mxu0
      %v1084 = vadd.f32 0.0, %v1083
      %v1085 = vpop.f32.mrf.mxu0
      %1086 = vmatprep.mubr.f32.mxu0 0.0
      %1087 = vmatmul.mubr.f32.gmra.mxu0 %v1007
      %v1088 = vpop.f32.mrf.mxu0
      %v1089 = vadd.f32 0.0, %v1088
      %v1090 = vpop.f32.mrf.mxu0
      %1091 = vmatprep.mubr.f32.mxu0 0.0
      %1092 = vmatmul.mubr.f32.gmra.mxu0 %v1010
      %v1093 = vpop.f32.mrf.mxu0
      %v1094 = vadd.f32 0.0, %v1093
      %v1095 = vpop.f32.mrf.mxu0
      %1096 = vdwg.mxu0
      %v1097 = vadd.f32 %v965, %v1079
      %v1098 = vadd.f32 %v970, %v1084
      %v1099 = vadd.f32 %v975, %v1089
      %v1100 = vadd.f32 %v980, %v1094
      %v1101 = vld [vmem:[%s8] sm:$0xff]
      %v1102 = vld [vmem:[%s8 + $0x8] sm:$0xff]
      %v1103 = vld [vmem:[%s8 + $0x10] sm:$0xff]
      %v1104 = vld [vmem:[%s8 + $0x18] sm:$0xff]
      %1106 = vset.pattern.permute.xlu0 0
      %1107 = vperm.xlu0 %1106, %v1101
      %v1108 = vpop.permute.xlu0 %1107
      %1111 = vset.pattern.permute.xlu0 0
      %1112 = vperm.xlu0 %1111, %v1102
      %v1113 = vpop.permute.xlu0 %1112
      %1116 = vset.pattern.permute.xlu0 0
      %1117 = vperm.xlu0 %1116, %v1103
      %v1118 = vpop.permute.xlu0 %1117
      %1121 = vset.pattern.permute.xlu0 0
      %1122 = vperm.xlu0 %1121, %v1104
      %v1123 = vpop.permute.xlu0 %1122
      %v1125 = vadd.f32 %v1097, %v1108
      %v1126 = vadd.f32 %v1098, %v1113
      %v1127 = vadd.f32 %v1099, %v1118
      %v1128 = vadd.f32 %v1100, %v1123
      %v1129 = vld [vmem:[%s9] sm:$0xff]
      %v1130 = vld [vmem:[%s9 + $0x8] sm:$0xff]
      %v1131 = vld [vmem:[%s9 + $0x10] sm:$0xff]
      %v1132 = vld [vmem:[%s9 + $0x18] sm:$0xff]
      %v1133 = vld [vmem:[%s10] sm:$0xff]
      %v1134 = vld [vmem:[%s10 + $0x8] sm:$0xff]
      %v1135 = vld [vmem:[%s10 + $0x10] sm:$0xff]
      %v1136 = vld [vmem:[%s10 + $0x18] sm:$0xff]
      %vm1137 = vcmask 1031168
      %v1138 = vsel %vm1137, %v1125, 0.0
      %v1139 = vsel %vm1137, %v1126, 0.0
      %v1140 = vadd.f32 %v1138, %v1139
      %v1141 = vsel %vm1137, %v1127, 0.0
      %v1142 = vadd.f32 %v1140, %v1141
      %v1143 = vsel %vm1137, %v1128, 0.0
      %v1144 = vadd.f32 %v1142, %v1143
      %1145 = vadd.xlane.f32.xlu0 %v1144
      %v1146 = vpop.xlane.xlu0 %1145
      %v1147 = vrot.slane %v1146, 4
      %v1148 = vadd.f32 %v1146, %v1147
      %v1149 = vrot.slane %v1148, 2
      %v1150 = vadd.f32 %v1148, %v1149
      %v1151 = vrot.slane %v1150, 1
      %v1152 = vadd.f32 %v1150, %v1151
      %s1153 = vtos %v1152
      %v1154 = vstv %s1153
      %v1155 = vrcp.pop 4032.0
      %v1156 = vmul.f32 %v1154, %v1155
      %v1157 = vmul.f32 %v1125, %v1125
      %v1158 = vmul.f32 %v1126, %v1126
      %v1159 = vmul.f32 %v1127, %v1127
      %v1160 = vmul.f32 %v1128, %v1128
      %v1161 = vsel %vm1137, %v1157, 0.0
      %v1162 = vsel %vm1137, %v1158, 0.0
      %v1163 = vadd.f32 %v1161, %v1162
      %v1164 = vsel %vm1137, %v1159, 0.0
      %v1165 = vadd.f32 %v1163, %v1164
      %v1166 = vsel %vm1137, %v1160, 0.0
      %v1167 = vadd.f32 %v1165, %v1166
      %1168 = vadd.xlane.f32.xlu0 %v1167
      %v1169 = vpop.xlane.xlu0 %1168
      %v1170 = vrot.slane %v1169, 4
      %v1171 = vadd.f32 %v1169, %v1170
      %v1172 = vrot.slane %v1171, 2
      %v1173 = vadd.f32 %v1171, %v1172
      %v1174 = vrot.slane %v1173, 1
      %v1175 = vadd.f32 %v1173, %v1174
      %s1176 = vtos %v1175
      %v1177 = vstv %s1176
      %v1178 = vmul.f32 %v1177, %v1155
      %v1179 = vmul.f32 %v1156, %v1156
      %v1180 = vsub.f32 %v1178, %v1179
      %v1181 = vsub.f32 %v1125, %v1156
      %v1182 = vsub.f32 %v1126, %v1156
      %v1183 = vsub.f32 %v1127, %v1156
      %v1184 = vsub.f32 %v1128, %v1156
      %v1185 = vadd.f32 %v1180, 1e-05
      %v1186 = vrsqrt.pop %v1185
      %v1187 = vmul.f32 %v1181, %v1186
      %v1188 = vmul.f32 %v1182, %v1186
      %v1189 = vmul.f32 %v1183, %v1186
      %v1190 = vmul.f32 %v1184, %v1186
      %1192 = vset.pattern.permute.xlu0 0
      %1193 = vperm.xlu0 %1192, %v1129
      %v1194 = vpop.permute.xlu0 %1193
      %1197 = vset.pattern.permute.xlu0 0
      %1198 = vperm.xlu0 %1197, %v1130
      %v1199 = vpop.permute.xlu0 %1198
      %1202 = vset.pattern.permute.xlu0 0
      %1203 = vperm.xlu0 %1202, %v1131
      %v1204 = vpop.permute.xlu0 %1203
      %1207 = vset.pattern.permute.xlu0 0
      %1208 = vperm.xlu0 %1207, %v1132
      %v1209 = vpop.permute.xlu0 %1208
      %v1211 = vmul.f32 %v1194, %v1187
      %v1212 = vmul.f32 %v1199, %v1188
      %v1213 = vmul.f32 %v1204, %v1189
      %v1214 = vmul.f32 %v1209, %v1190
      %1216 = vset.pattern.permute.xlu0 0
      %1217 = vperm.xlu0 %1216, %v1133
      %v1218 = vpop.permute.xlu0 %1217
      %1221 = vset.pattern.permute.xlu0 0
      %1222 = vperm.xlu0 %1221, %v1134
      %v1223 = vpop.permute.xlu0 %1222
      %1226 = vset.pattern.permute.xlu0 0
      %1227 = vperm.xlu0 %1226, %v1135
      %v1228 = vpop.permute.xlu0 %1227
      %1231 = vset.pattern.permute.xlu0 0
      %1232 = vperm.xlu0 %1231, %v1136
      %v1233 = vpop.permute.xlu0 %1232
      %v1235 = vadd.f32 %v1211, %v1218
      %v1236 = vadd.f32 %v1212, %v1223
      %v1237 = vadd.f32 %v1213, %v1228
      %v1238 = vadd.f32 %v1214, %v1233
      %v1239 = vmul.f32 %v1235, 0.5
      %v1240 = vmul.f32 %v1236, 0.5
      %v1241 = vmul.f32 %v1237, 0.5
      %v1242 = vmul.f32 %v1238, 0.5
      %v1243 = vmul.f32 %v1235, 0.70710677
      %v1244 = vmul.f32 %v1236, 0.70710677
      %v1245 = vmul.f32 %v1237, 0.70710677
      %v1246 = vmul.f32 %v1238, 0.70710677
      %v1247 = verf.f32.pop %v1243
      %v1248 = verf.f32.pop %v1244
      %v1249 = verf.f32.pop %v1245
      %v1250 = verf.f32.pop %v1246
      %v1251 = vadd.f32 %v1247, 1.0
      %v1252 = vadd.f32 %v1248, 1.0
      %v1253 = vadd.f32 %v1249, 1.0
      %v1254 = vadd.f32 %v1250, 1.0
      %v1255 = vmul.f32 %v1239, %v1251
      %v1256 = vmul.f32 %v1240, %v1252
      %v1257 = vmul.f32 %v1241, %v1253
      %v1258 = vmul.f32 %v1242, %v1254
      %v1259 = vld [vmem:[%s11] sm:$0xff]
      %v1260 = vld [vmem:[%s11 + $0x8] sm:$0xff]
      %v1261 = vld [vmem:[%s12] sm:$0xff]
      %v1262 = vld [vmem:[%s12 + $0x8] sm:$0xff]
      %1264 = vset.pattern.permute.xlu0 0
      %1265 = vperm.xlu0 %1264, %v1261
      %v1266 = vpop.permute.xlu0 %1265
      %1269 = vset.pattern.permute.xlu0 0
      %1270 = vperm.xlu0 %1269, %v1262
      %v1271 = vpop.permute.xlu0 %1270
      %v1274 = vsel %vm788, %v1259, 0
      %v1277 = vsel %vm788, %v1260, 0
      %1279 = vmatprep.subr.mxu0 0.0
      %1280 = vmatpush1.msra.mxu0 0.0
      %1281 = vmatprep.subr.mxu0 0.0
      %1282 = vmatpush1.msra.mxu0 0.0
      %1283 = vmatprep.subr.mxu0 0.0
      %1284 = vmatpush1.msra.mxu0 0.0
      %1285 = vmatprep.subr.mxu0 0.0
      %1286 = vmatpush1.msra.mxu0 0.0
      %1287 = vmatprep.subr.mxu0 0.0
      %1288 = vmatpush1.msra.mxu0 0.0
      %1289 = vmatprep.subr.mxu0 0.0
      %1290 = vmatpush1.msra.mxu0 0.0
      %1291 = vmatprep.subr.mxu0 0.0
      %1292 = vmatpush1.msra.mxu0 0.0
      %1293 = vmatprep.subr.mxu0 0.0
      %1294 = vmatpush1.msra.mxu0 0.0
      %1295 = vmatprep.subr.mxu0 0.0
      %1296 = vmatpush1.msra.mxu0 0.0
      %1297 = vmatprep.subr.mxu0 0.0
      %1298 = vmatpush1.msra.mxu0 0.0
      %1299 = vmatprep.subr.mxu0 0.0
      %1300 = vmatpush1.msra.mxu0 0.0
      %1301 = vmatprep.subr.mxu0 0.0
      %1302 = vmatpush1.msra.mxu0 0.0
      %1303 = vmatprep.subr.mxu0 0.0
      %1304 = vmatpush1.msra.mxu0 %v1258
      %1305 = vmatprep.subr.mxu0 0.0
      %1306 = vmatpush1.msra.mxu0 %v1257
      %1307 = vmatprep.subr.mxu0 0.0
      %1308 = vmatpush1.msra.mxu0 %v1256
      %1309 = vmatprep.subr.mxu0 0.0
      %1310 = vmatpush1.msra.mxu0 %v1255
      %1311 = vmatprep.subr.mxu0 0.0
      %1312 = vmatpush2.msra.mxu0 0.0
      %1313 = vmatprep.subr.mxu0 0.0
      %1314 = vmatpush2.msra.mxu0 0.0
      %1315 = vmatprep.subr.mxu0 0.0
      %1316 = vmatpush2.msra.mxu0 0.0
      %1317 = vmatprep.subr.mxu0 0.0
      %1318 = vmatpush2.msra.mxu0 0.0
      %1319 = vmatprep.subr.mxu0 0.0
      %1320 = vmatpush2.msra.mxu0 0.0
      %1321 = vmatprep.subr.mxu0 0.0
      %1322 = vmatpush2.msra.mxu0 0.0
      %1323 = vmatprep.subr.mxu0 0.0
      %1324 = vmatpush2.msra.mxu0 0.0
      %1325 = vmatprep.subr.mxu0 0.0
      %1326 = vmatpush2.msra.mxu0 0.0
      %1327 = vmatprep.subr.mxu0 0.0
      %1328 = vmatpush2.msra.mxu0 0.0
      %1329 = vmatprep.subr.mxu0 0.0
      %1330 = vmatpush2.msra.mxu0 0.0
      %1331 = vmatprep.subr.mxu0 0.0
      %1332 = vmatpush2.msra.mxu0 0.0
      %1333 = vmatprep.subr.mxu0 0.0
      %1334 = vmatpush2.msra.mxu0 0.0
      %1335 = vmatprep.subr.mxu0 0.0
      %1336 = vmatpush2.msra.mxu0 0.0
      %1337 = vmatprep.subr.mxu0 0.0
      %1338 = vmatpush2.msra.mxu0 0.0
      %1339 = vmatprep.subr.mxu0 0.0
      %1340 = vmatpush2.msra.mxu0 0.0
      %1341 = vmatprep.subr.mxu0 0.0
      %1342 = vmatpush2.msra.mxu0 0.0
      %1343 = vmatprep.mubr.f32.mxu0 0.0
      %1344 = vmatmul.mubr.f32.gmra.mxu0 %v1274
      %v1345 = vpop.f32.mrf.mxu0
      %v1346 = vadd.f32 %v1266, %v1345
      %v1347 = vpop.f32.mrf.mxu0
      %1348 = vmatprep.mubr.f32.mxu0 0.0
      %1349 = vmatmul.mubr.f32.gmra.mxu0 %v1277
      %v1350 = vpop.f32.mrf.mxu0
      %v1351 = vadd.f32 %v1271, %v1350
      %v1352 = vpop.f32.mrf.mxu0
      %1353 = vdwg.mxu0
      %1356 = vrot.lane.b32.xlu0 %v441, 127
      %v1357 = vpop.permute.xlu0 %1356
      %1358 = vrot.lane.b32.xlu0 %v442, 127
      %v1359 = vpop.permute.xlu0 %1358
      %v1362 = vadd.f32 %v1346, %v1357
      %v1363 = vadd.f32 %v1351, %v1359
      %1364 = vst.msk [vmem:[%s440] sm:$0xff] %vm1137, %v1362
      %1365 = vst.msk [vmem:[%s440 + $0x8] sm:$0xff] %vm1137, %v1363
      %p1366 = scmp.lt.s32.totalorder %s24, 1
      %s1367 = scalar_select %p1366, %s24, 1
      %s1368 = smul.addr %s1367, 2
      %s1369 = smul.addr %s1368, 8
      %s1370 = scalar_lea.vmem %s13, %s1369
      // Predicated region
      $region73: #{rce_bytenet_forward.5} parent=71 // pred_check
        %p1371 = pneg %p320
      $region74: #{rce_bytenet_forward.5} parent=71 // pred_check_branch
        %1373 = sbr.rel (%p1371) target = $region76
      $region75: #{rce_bytenet_forward.5} parent=71 // pred_region
        _
      $region76: #{rce_bytenet_forward.5} parent=71 // pred_fallthru
        _
    $region72: #{rce_bytenet_forward.5} parent=5 // pred_fallthru
      _
    %p1374 = scmp.le.s32.totalorder 2, %s19
    // Predicated region
    $region77: #{rce_bytenet_forward.5} parent=5 // pred_check
      %p1375 = pneg %p1374
    $region78: #{rce_bytenet_forward.5} parent=5 // pred_check_branch
      %1377 = sbr.rel (%p1375) target = $region80
    $region79: #{rce_bytenet_forward.5} parent=5 // pred_region
      %s1378 = ssub.s32 %s19, 2
      // Predicated region
      $region81: #{rce_bytenet_forward.5} parent=79 // pred_check
        %p1379 = pneg %p326
      $region82: #{rce_bytenet_forward.5} parent=79 // pred_check_branch
        %1381 = sbr.rel (%p1379) target = $region84
      $region83: #{rce_bytenet_forward.5} parent=79 // pred_region
        %p1382 = scmp.lt.s32.totalorder %s25, 1
        %s1383 = scalar_select %p1382, %s25, 1
        %s1384 = smul.addr %s1383, 2
        %s1385 = smul.addr %s1384, 8
        %s1386 = scalar_lea.vmem %s13, %s1385
      $region84: #{rce_bytenet_forward.5} parent=79 // pred_fallthru
        _
    $region80: #{rce_bytenet_forward.5} parent=5 // pred_fallthru
      _
  $region6: #{rce_bytenet_forward.5} parent=0 // loop_footer
    %s23 = sadd.s32 1, %s19
  $region7: #{rce_bytenet_forward.5} parent=0 // loop_footer_branch
    %18 = sbr.rel target = $region3
  $region8: #{rce_bytenet_forward.5} parent=0 // loop_exit
    _

// kernel: rce_bytenet_forward.7
$region0: #{rce_bytenet_forward.7}
  #allocation0 [shape = 'u32[]', space=smem, size = 0x4, offset = 0x4, fixed_abs, tag = 'smem constant byte address 0x4 - core index']
  #allocation1 [shape = 'u32[144,128]{1,0:T(1,128)}', space=vmem, size = 0x12000, scoped, tag = 'internal scratch']
  %s0 = inlined_call_operand.vmem [shape: f32[2,16,122], index: 0, kind: input, shape index: {}]
  %s1 = inlined_call_operand.vmem [shape: f32[16,1], index: 1, kind: input, shape index: {}]
  %s2 = inlined_call_operand.vmem [shape: f32[16,1], index: 2, kind: input, shape index: {}]
  %s3 = inlined_call_operand.vmem [shape: f32[4,16], index: 3, kind: input, shape index: {}]
  %s4 = inlined_call_operand.vmem [shape: f32[4,1], index: 4, kind: input, shape index: {}]
  %s5 = inlined_call_operand.hbm [shape: f32[2,4,122], index: 5, kind: output, shape index: {}]
  %s6 = sld [smem:[#allocation0]]
  $region53: #{rce_bytenet_forward.7} parent=0
    _
  %s8 = ssub.s32 1, %s6
  %s9 = scalar_select 0, %s8, %s6
  $region1: #{rce_bytenet_forward.7} parent=0
    #allocation2 [shape = 'u8[4096]{0}', space=vmem, size = 0x1000, scoped, tag = 'output window, operand 0']
    #allocation3 [shape = 's32[2]{0}', space=sflag, size = 0x8, scoped, tag = 'scoped memory for rce_bytenet_forward.7']
    %10 = vsyncpa [#allocation3], 0
    %s11 = scalar_lea.sflag [#allocation3], 1
    %12 = vsyncpa %s11, 0
    loop: start=0, step=1, limit=4
    $region2: #{rce_bytenet_forward.7} parent=1 // loop_pre_header
      _
    $region3: #{rce_bytenet_forward.7} parent=1 // loop_header
      %s14 = sphi 0, %s18
      %p15 = scmp.ge.s32.totalorder %s14, 4
      %s24 = sphi 0, %s26
      %s27 = sphi 0, %s24
      %s28 = sphi 0, %s27
      %s44 = sphi 0, %s28
      %s48 = sphi 0, %s48
      %s50 = sphi 0, %s48
      %s51 = sphi 0, %s50
      %s65 = sphi 0, %s51
      %s69 = sphi 0, %s69
      %s71 = sphi 0, %s69
      %s72 = sphi 0, %s71
      %s86 = sphi 0, %s72
      %s90 = sphi 0, %s90
      %s92 = sphi 0, %s90
      %s93 = sphi 0, %s92
      %s107 = sphi 0, %s93
      %s111 = sphi 0, %s111
      %s113 = sphi 0, %s111
      %s114 = sphi 0, %s113
      %s128 = sphi 0, %s114
      %s134 = sphi 0, %s136
      %s137 = sphi 0, %s134
      %s138 = sphi 0, %s137
      %s154 = sphi 0, %s138
    $region4: #{rce_bytenet_forward.7} parent=1 // loop_header_branch
      %17 = sbr.rel (%p15) target = $region8
    $region5: #{rce_bytenet_forward.7} parent=1 // loop_body
      %s19 = ssub.s32 %s14, 1
      %s20 = ssub.s32 %s14, 2
      %s21 = sadd.s32 %s14, 1
      %s22 = ssub.s32 %s14, %s21
      %p23 = scmp.eq.s32.totalorder %s22, 0
      %s25 = sadd.s32 %s24, 1
      %s26 = scalar_select %p23, %s24, %s25
      %p29 = pneg %p23
      %p30 = scmp.eq.s32.totalorder %s14, 1
      %p31 = por %p29, %p30
      %p32 = scmp.ne.s32.totalorder %s24, %s27
      %p33 = scmp.eq.s32.totalorder %s14, 0
      %p34 = por %p32, %p33
      %p35 = scmp.ne.s32.totalorder %s24, %s27
      %p36 = scmp.eq.s32.totalorder %s19, 1
      %p37 = por %p35, %p36
      %p38 = scmp.ne.s32.totalorder %s27, %s28
      %p39 = scmp.eq.s32.totalorder %s19, 0
      %p40 = por %p38, %p39
      %p41 = scmp.ne.s32.totalorder %s27, %s28
      %p42 = scmp.eq.s32.totalorder %s20, 1
      %p43 = por %p41, %p42
      %p45 = scmp.ne.s32.totalorder %s28, %s44
      %p46 = scmp.eq.s32.totalorder %s20, 0
      %p47 = por %p45, %p46
      %s49 = sadd.s32 %s48, 1
      %p52 = scmp.eq.s32.totalorder %s14, 1
      %p53 = scmp.ne.s32.totalorder %s48, %s50
      %p54 = scmp.eq.s32.totalorder %s14, 0
      %p55 = por %p53, %p54
      %p56 = scmp.ne.s32.totalorder %s48, %s50
      %p57 = scmp.eq.s32.totalorder %s19, 1
      %p58 = por %p56, %p57
      %p59 = scmp.ne.s32.totalorder %s50, %s51
      %p60 = scmp.eq.s32.totalorder %s19, 0
      %p61 = por %p59, %p60
      %p62 = scmp.ne.s32.totalorder %s50, %s51
      %p63 = scmp.eq.s32.totalorder %s20, 1
      %p64 = por %p62, %p63
      %p66 = scmp.ne.s32.totalorder %s51, %s65
      %p67 = scmp.eq.s32.totalorder %s20, 0
      %p68 = por %p66, %p67
      %s70 = sadd.s32 %s69, 1
      %p73 = scmp.eq.s32.totalorder %s14, 1
      %p74 = scmp.ne.s32.totalorder %s69, %s71
      %p75 = scmp.eq.s32.totalorder %s14, 0
      %p76 = por %p74, %p75
      %p77 = scmp.ne.s32.totalorder %s69, %s71
      %p78 = scmp.eq.s32.totalorder %s19, 1
      %p79 = por %p77, %p78
      %p80 = scmp.ne.s32.totalorder %s71, %s72
      %p81 = scmp.eq.s32.totalorder %s19, 0
      %p82 = por %p80, %p81
      %p83 = scmp.ne.s32.totalorder %s71, %s72
      %p84 = scmp.eq.s32.totalorder %s20, 1
      %p85 = por %p83, %p84
      %p87 = scmp.ne.s32.totalorder %s72, %s86
      %p88 = scmp.eq.s32.totalorder %s20, 0
      %p89 = por %p87, %p88
      %s91 = sadd.s32 %s90, 1
      %p94 = scmp.eq.s32.totalorder %s14, 1
      %p95 = scmp.ne.s32.totalorder %s90, %s92
      %p96 = scmp.eq.s32.totalorder %s14, 0
      %p97 = por %p95, %p96
      %p98 = scmp.ne.s32.totalorder %s90, %s92
      %p99 = scmp.eq.s32.totalorder %s19, 1
      %p100 = por %p98, %p99
      %p101 = scmp.ne.s32.totalorder %s92, %s93
      %p102 = scmp.eq.s32.totalorder %s19, 0
      %p103 = por %p101, %p102
      %p104 = scmp.ne.s32.totalorder %s92, %s93
      %p105 = scmp.eq.s32.totalorder %s20, 1
      %p106 = por %p104, %p105
      %p108 = scmp.ne.s32.totalorder %s93, %s107
      %p109 = scmp.eq.s32.totalorder %s20, 0
      %p110 = por %p108, %p109
      %s112 = sadd.s32 %s111, 1
      %p115 = scmp.eq.s32.totalorder %s14, 1
      %p116 = scmp.ne.s32.totalorder %s111, %s113
      %p117 = scmp.eq.s32.totalorder %s14, 0
      %p118 = por %p116, %p117
      %p119 = scmp.ne.s32.totalorder %s111, %s113
      %p120 = scmp.eq.s32.totalorder %s19, 1
      %p121 = por %p119, %p120
      %p122 = scmp.ne.s32.totalorder %s113, %s114
      %p123 = scmp.eq.s32.totalorder %s19, 0
      %p124 = por %p122, %p123
      %p125 = scmp.ne.s32.totalorder %s113, %s114
      %p126 = scmp.eq.s32.totalorder %s20, 1
      %p127 = por %p125, %p126
      %p129 = scmp.ne.s32.totalorder %s114, %s128
      %p130 = scmp.eq.s32.totalorder %s20, 0
      %p131 = por %p129, %p130
      %s132 = ssub.s32 %s14, %s21
      %p133 = scmp.eq.s32.totalorder %s132, 0
      %s135 = sadd.s32 %s134, 1
      %s136 = scalar_select %p133, %s134, %s135
      %p139 = pneg %p133
      %p140 = scmp.eq.s32.totalorder %s14, 1
      %p141 = por %p139, %p140
      %p142 = scmp.ne.s32.totalorder %s134, %s137
      %p143 = scmp.eq.s32.totalorder %s14, 0
      %p144 = por %p142, %p143
      %p145 = scmp.ne.s32.totalorder %s134, %s137
      %p146 = scmp.eq.s32.totalorder %s19, 1
      %p147 = por %p145, %p146
      %p148 = scmp.ne.s32.totalorder %s137, %s138
      %p149 = scmp.eq.s32.totalorder %s19, 0
      %p150 = por %p148, %p149
      %p151 = scmp.ne.s32.totalorder %s137, %s138
      %p152 = scmp.eq.s32.totalorder %s20, 1
      %p153 = por %p151, %p152
      %p155 = scmp.ne.s32.totalorder %s138, %s154
      %p156 = scmp.eq.s32.totalorder %s20, 0
      %p157 = por %p155, %p156
      %p158 = scmp.le.s32.totalorder 1, %s14
      %p159 = scmp.lt.s32.totalorder %s14, 3
      %p160 = pnand %p158, %p159
      %p161 = pneg %p160
      // Predicated region
      $region9: #{rce_bytenet_forward.7} parent=5 // pred_check
        _
      $region10: #{rce_bytenet_forward.7} parent=5 // pred_check_branch
        %163 = sbr.rel (%p160) target = $region12
      $region11: #{rce_bytenet_forward.7} parent=5 // pred_region
        %s164 = ssub.s32 %s14, 1
        // Predicated region
        $region13: #{rce_bytenet_forward.7} parent=11 // pred_check
          %p165 = pneg %p61
        $region14: #{rce_bytenet_forward.7} parent=11 // pred_check_branch
          %167 = sbr.rel (%p165) target = $region16
        $region15: #{rce_bytenet_forward.7} parent=11 // pred_region
          _
        $region16: #{rce_bytenet_forward.7} parent=11 // pred_fallthru
          _
        // Predicated region
        $region17: #{rce_bytenet_forward.7} parent=11 // pred_check
          %p168 = pneg %p82
        $region18: #{rce_bytenet_forward.7} parent=11 // pred_check_branch
          %170 = sbr.rel (%p168) target = $region20
        $region19: #{rce_bytenet_forward.7} parent=11 // pred_region
          _
        $region20: #{rce_bytenet_forward.7} parent=11 // pred_fallthru
          _
        // Predicated region
        $region21: #{rce_bytenet_forward.7} parent=11 // pred_check
          %p171 = pneg %p103
        $region22: #{rce_bytenet_forward.7} parent=11 // pred_check_branch
          %173 = sbr.rel (%p171) target = $region24
        $region23: #{rce_bytenet_forward.7} parent=11 // pred_region
          _
        $region24: #{rce_bytenet_forward.7} parent=11 // pred_fallthru
          _
        // Predicated region
        $region25: #{rce_bytenet_forward.7} parent=11 // pred_check
          %p174 = pneg %p124
        $region26: #{rce_bytenet_forward.7} parent=11 // pred_check_branch
          %176 = sbr.rel (%p174) target = $region28
        $region27: #{rce_bytenet_forward.7} parent=11 // pred_region
          _
        $region28: #{rce_bytenet_forward.7} parent=11 // pred_fallthru
          _
      $region12: #{rce_bytenet_forward.7} parent=5 // pred_fallthru
        _
      %p177 = scmp.lt.s32.totalorder %s14, 2
      // Predicated region
      $region29: #{rce_bytenet_forward.7} parent=5 // pred_check
        %p178 = pneg %p177
      $region30: #{rce_bytenet_forward.7} parent=5 // pred_check_branch
        %180 = sbr.rel (%p178) target = $region32
      $region31: #{rce_bytenet_forward.7} parent=5 // pred_region
        // Predicated region
        $region33: #{rce_bytenet_forward.7} parent=31 // pred_check
          %p181 = pneg %p34
        $region34: #{rce_bytenet_forward.7} parent=31 // pred_check_branch
          %183 = sbr.rel (%p181) target = $region36
        $region35: #{rce_bytenet_forward.7} parent=31 // pred_region
          %p184 = scmp.lt.s32.totalorder %s14, 1
          %s185 = scalar_select %p184, %s14, 1
          %s186 = smul.addr %s185, 2
          %s187 = smul.addr %s186, 8
          %s188 = scalar_lea.vmem %s0, %s187
        $region36: #{rce_bytenet_forward.7} parent=31 // pred_fallthru
          _
      $region32: #{rce_bytenet_forward.7} parent=5 // pred_fallthru
        _
      %p189 = scmp.le.s32.totalorder 1, %s14
      %p190 = scmp.lt.s32.totalorder %s14, 3
      %p191 = pnand %p189, %p190
      %p192 = pneg %p191
      // Predicated region
      $region37: #{rce_bytenet_forward.7} parent=5 // pred_check
        _
      $region38: #{rce_bytenet_forward.7} parent=5 // pred_check_branch
        %194 = sbr.rel (%p191) target = $region40
      $region39: #{rce_bytenet_forward.7} parent=5 // pred_region
        %s195 = ssub.s32 %s14, 1
        %p196 = scmp.lt.s32.totalorder %s19, 1
        %s197 = scalar_select %p196, %s19, 1
        %s198 = smul.addr %s197, 2
        %s199 = smul.addr %s198, 8
        %s200 = scalar_lea.vmem %s0, %s199
        %p201 = pneg %p40
        %p202 = pneg %p37
        %p203 = pneg %p61
        %p204 = pneg %p58
        %p205 = pneg %p82
        %p206 = pneg %p79
        %p207 = pneg %p103
        %p208 = pneg %p100
        %p209 = pneg %p124
        %p210 = pneg %p121
        %p211 = pneg %p150
        %p212 = pneg %p147
        %s213 = sand.u32 %s137, 1
        %s214 = scalar_lea.sflag [#allocation3], %s213
        %s215 = sand.u32 %s137, 1
        %s216 = smul.addr %s215, 4
        %s217 = scalar_lea.vmem [#allocation2], %s216
        %p218 = scmp.lt.s32.totalorder %s19, 1
        %s219 = scalar_select %p218, %s19, 1
        %s220 = smul.addr %s219, 2
        %s221 = smul.addr %s220, 8
        %s222 = scalar_lea.vmem %s0, %s221
        %v223 = vld [vmem:[%s222] sm:$0xff]
        %v224 = vld [vmem:[%s222 + $0x8] sm:$0xff]
        %v225 = vld [vmem:[%s1] sm:$0xff]
        %v226 = vld [vmem:[%s1 + $0x8] sm:$0xff]
        %v227 = vld [vmem:[%s2] sm:$0xff]
        %v228 = vld [vmem:[%s2 + $0x8] sm:$0xff]
        %vm229 = vcmask 998400
        %v230 = vsel %vm229, %v223, 0.0
        %v231 = vsel %vm229, %v224, 0.0
        %v232 = vadd.f32 %v230, %v231
        %233 = vadd.xlane.f32.xlu0 %v232
        %v234 = vpop.xlane.xlu0 %233
        %v235 = vrot.slane %v234, 4
        %v236 = vadd.f32 %v234, %v235
        %v237 = vrot.slane %v236, 2
        %v238 = vadd.f32 %v236, %v237
        %v239 = vrot.slane %v238, 1
        %v240 = vadd.f32 %v238, %v239
        %s241 = vtos %v240
        %v242 = vstv %s241
        %v243 = vrcp.pop 1952.0
        %v244 = vmul.f32 %v242, %v243
        %v245 = vmul.f32 %v223, %v223
        %v246 = vmul.f32 %v224, %v224
        %v247 = vsel %vm229, %v245, 0.0
        %v248 = vsel %vm229, %v246, 0.0
        %v249 = vadd.f32 %v247, %v248
        %250 = vadd.xlane.f32.xlu0 %v249
        %v251 = vpop.xlane.xlu0 %250
        %v252 = vrot.slane %v251, 4
        %v253 = vadd.f32 %v251, %v252
        %v254 = vrot.slane %v253, 2
        %v255 = vadd.f32 %v253, %v254
        %v256 = vrot.slane %v255, 1
        %v257 = vadd.f32 %v255, %v256
        %s258 = vtos %v257
        %v259 = vstv %s258
        %v260 = vmul.f32 %v259, %v243
        %v261 = vmul.f32 %v244, %v244
        %v262 = vsub.f32 %v260, %v261
        %v263 = vsub.f32 %v223, %v244
        %v264 = vsub.f32 %v224, %v244
        %v265 = vadd.f32 %v262, 1e-05
        %v266 = vrsqrt.pop %v265
        %v267 = vmul.f32 %v263, %v266
        %v268 = vmul.f32 %v264, %v266
        %270 = vset.pattern.permute.xlu0 0
        %271 = vperm.xlu0 %270, %v225
        %v272 = vpop.permute.xlu0 %271
        %275 = vset.pattern.permute.xlu0 0
        %276 = vperm.xlu0 %275, %v226
        %v277 = vpop.permute.xlu0 %276
        %v279 = vmul.f32 %v272, %v267
        %v280 = vmul.f32 %v277, %v268
        %282 = vset.pattern.permute.xlu0 0
        %283 = vperm.xlu0 %282, %v227
        %v284 = vpop.permute.xlu0 %283
        %287 = vset.pattern.permute.xlu0 0
        %288 = vperm.xlu0 %287, %v228
        %v289 = vpop.permute.xlu0 %288
        %v291 = vadd.f32 %v279, %v284
        %v292 = vadd.f32 %v280, %v289
        %v293 = vmul.f32 %v291, 0.5
        %v294 = vmul.f32 %v292, 0.5
        %v295 = vmul.f32 %v291, 0.70710677
        %v296 = vmul.f32 %v292, 0.70710677
        %v297 = verf.f32.pop %v295
        %v298 = verf.f32.pop %v296
        %v299 = vadd.f32 %v297, 1.0
        %v300 = vadd.f32 %v298, 1.0
        %v301 = vmul.f32 %v293, %v299
        %v302 = vmul.f32 %v294, %v300
        %v303 = vld [vmem:[%s3] sm:$0xf]
        %v304 = vld [vmem:[%s4] sm:$0xf]
        %306 = vset.pattern.permute.xlu0 0
        %307 = vperm.xlu0 %306, %v304
        %v308 = vpop.permute.xlu0 %307
        %vm310 = vcmask 130048
        %v312 = vsel %vm310, %v303, 0
        %314 = vmatprep.subr.mxu0 0.0
        %315 = vmatpush1.msra.mxu0 0.0
        %316 = vmatprep.subr.mxu0 0.0
        %317 = vmatpush1.msra.mxu0 0.0
        %318 = vmatprep.subr.mxu0 0.0
        %319 = vmatpush1.msra.mxu0 0.0
        %320 = vmatprep.subr.mxu0 0.0
        %321 = vmatpush1.msra.mxu0 0.0
        %322 = vmatprep.subr.mxu0 0.0
        %323 = vmatpush1.msra.mxu0 0.0
        %324 = vmatprep.subr.mxu0 0.0
        %325 = vmatpush1.msra.mxu0 0.0
        %326 = vmatprep.subr.mxu0 0.0
        %327 = vmatpush1.msra.mxu0 0.0
        %328 = vmatprep.subr.mxu0 0.0
        %329 = vmatpush1.msra.mxu0 0.0
        %330 = vmatprep.subr.mxu0 0.0
        %331 = vmatpush1.msra.mxu0 0.0
        %332 = vmatprep.subr.mxu0 0.0
        %333 = vmatpush1.msra.mxu0 0.0
        %334 = vmatprep.subr.mxu0 0.0
        %335 = vmatpush1.msra.mxu0 0.0
        %336 = vmatprep.subr.mxu0 0.0
        %337 = vmatpush1.msra.mxu0 0.0
        %338 = vmatprep.subr.mxu0 0.0
        %339 = vmatpush1.msra.mxu0 0.0
        %340 = vmatprep.subr.mxu0 0.0
        %341 = vmatpush1.msra.mxu0 0.0
        %342 = vmatprep.subr.mxu0 0.0
        %343 = vmatpush1.msra.mxu0 %v302
        %344 = vmatprep.subr.mxu0 0.0
        %345 = vmatpush1.msra.mxu0 %v301
        %346 = vmatprep.subr.mxu0 0.0
        %347 = vmatpush2.msra.mxu0 0.0
        %348 = vmatprep.subr.mxu0 0.0
        %349 = vmatpush2.msra.mxu0 0.0
        %350 = vmatprep.subr.mxu0 0.0
        %351 = vmatpush2.msra.mxu0 0.0
        %352 = vmatprep.subr.mxu0 0.0
        %353 = vmatpush2.msra.mxu0 0.0
        %354 = vmatprep.subr.mxu0 0.0
        %355 = vmatpush2.msra.mxu0 0.0
        %356 = vmatprep.subr.mxu0 0.0
        %357 = vmatpush2.msra.mxu0 0.0
        %358 = vmatprep.subr.mxu0 0.0
        %359 = vmatpush2.msra.mxu0 0.0
        %360 = vmatprep.subr.mxu0 0.0
        %361 = vmatpush2.msra.mxu0 0.0
        %362 = vmatprep.subr.mxu0 0.0
        %363 = vmatpush2.msra.mxu0 0.0
        %364 = vmatprep.subr.mxu0 0.0
        %365 = vmatpush2.msra.mxu0 0.0
        %366 = vmatprep.subr.mxu0 0.0
        %367 = vmatpush2.msra.mxu0 0.0
        %368 = vmatprep.subr.mxu0 0.0
        %369 = vmatpush2.msra.mxu0 0.0
        %370 = vmatprep.subr.mxu0 0.0
        %371 = vmatpush2.msra.mxu0 0.0
        %372 = vmatprep.subr.mxu0 0.0
        %373 = vmatpush2.msra.mxu0 0.0
        %374 = vmatprep.subr.mxu0 0.0
        %375 = vmatpush2.msra.mxu0 0.0
        %376 = vmatprep.subr.mxu0 0.0
        %377 = vmatpush2.msra.mxu0 0.0
        %378 = vmatprep.mubr.f32.mxu0 0.0
        %379 = vmatmul.mubr.f32.gmra.mxu0 %v312
        %v380 = vpop.f32.mrf.mxu0
        %v381 = vadd.f32 %v308, %v380
        %v382 = vpop.f32.mrf.mxu0
        %383 = vdwg.mxu0
        %vm384 = vcmask 994304
        %385 = vst.msk [vmem:[%s217] sm:$0xf] %vm384, %v381
        %s386 = sand.u32 %s137, 1
        %s387 = scalar_lea.sflag [#allocation3], %s386
        %s388 = sand.u32 %s137, 1
        %s389 = smul.addr %s388, 4
        %s390 = scalar_lea.vmem [#allocation2], %s389
        // Predicated region
        $region41: #{rce_bytenet_forward.7} parent=39 // pred_check
          %p391 = pneg %p147
        $region42: #{rce_bytenet_forward.7} parent=39 // pred_check_branch
          %393 = sbr.rel (%p391) target = $region44
        $region43: #{rce_bytenet_forward.7} parent=39 // pred_region
          %s395 = ssub.s32 64, 64
          %396 = vsyncadd %s387, %s395
          %s397 = smul.addr %s19, 64
          %s398 = scalar_lea.hbm %s5, %s397
          %s400 = sshll.u32 %s390, 4
          %s401 = int_to_ptr.vmem [resolvable:$true] %s400
          %403 = dma.vmem_to_hbm [thread:$0]  %s401, 64, %s398, %s387
        $region44: #{rce_bytenet_forward.7} parent=39 // pred_fallthru
          _
      $region40: #{rce_bytenet_forward.7} parent=5 // pred_fallthru
        _
      %p404 = scmp.le.s32.totalorder 2, %s14
      // Predicated region
      $region45: #{rce_bytenet_forward.7} parent=5 // pred_check
        %p405 = pneg %p404
      $region46: #{rce_bytenet_forward.7} parent=5 // pred_check_branch
        %407 = sbr.rel (%p405) target = $region48
      $region47: #{rce_bytenet_forward.7} parent=5 // pred_region
        %s408 = ssub.s32 %s14, 2
        // Predicated region
        $region49: #{rce_bytenet_forward.7} parent=47 // pred_check
          %p409 = pneg %p153
        $region50: #{rce_bytenet_forward.7} parent=47 // pred_check_branch
          %411 = sbr.rel (%p409) target = $region52
        $region51: #{rce_bytenet_forward.7} parent=47 // pred_region
          %s412 = sand.u32 %s138, 1
          %s413 = scalar_lea.sflag [#allocation3], %s412
          %s414 = sand.u32 %s138, 1
          %s415 = smul.addr %s414, 4
          %s416 = scalar_lea.vmem [#allocation2], %s415
          %417 = dma.done %s413, 64
        $region52: #{rce_bytenet_forward.7} parent=47 // pred_fallthru
          _
      $region48: #{rce_bytenet_forward.7} parent=5 // pred_fallthru
        _
    $region6: #{rce_bytenet_forward.7} parent=1 // loop_footer
      %s18 = sadd.s32 1, %s14
    $region7: #{rce_bytenet_forward.7} parent=1 // loop_footer_branch
      %13 = sbr.rel target = $region3
    $region8: #{rce_bytenet_forward.7} parent=1 // loop_exit
      _
    %418 = vsyncpa [#allocation3], 1
    %s419 = scalar_lea.sflag [#allocation3], 1
    %420 = vsyncpa %s419, 1

</llo_original>
